<compile_context>
chip_gen: v6e
topology: v6e:2x2x1
jax: 0.10.0
libtpu: 0.0.40
codegen_flags: <defaults>
</compile_context>

<pallas_src>
import math

import jax
import jax.numpy as jnp
from jax import lax
from jax.experimental import pallas as pl
from jax.experimental.pallas import tpu as pltpu


def _round_up(x: int, m: int) -> int:
    return ((x + m - 1) // m) * m


# ---------------------------------------------------------------------------
# Pallas kernel: tiled  y = x @ W.T + (x @ V.T) @ U.T + bias
# ---------------------------------------------------------------------------
def _lora_matmul(x2d, w_flat, u_t, v, bias2d, out_dtype):
    """x2d: [M, K]; w_flat: [N, K]; u_t: [rank_pad, N] (alpha already folded);
    v: [rank_pad, K]; bias2d: [1, N]. Returns [M, N]."""
    M, K = x2d.shape
    N = w_flat.shape[0]
    rank_pad = u_t.shape[0]

    # --- tile selection (lane/sublane aligned, fits every generation's VMEM)
    Kp = _round_up(K, 128)
    tk = min(1024, Kp)
    while Kp % tk:          # tk must divide the padded K (K axis is reduced)
        tk -= 128
    tm = min(512, _round_up(M, 8))
    tn = min(512, _round_up(N, 128))

    # --- only the contraction axis needs zero padding
    if Kp != K:
        x2d = jnp.pad(x2d, ((0, 0), (0, Kp - K)))
        w_flat = jnp.pad(w_flat, ((0, 0), (0, Kp - K)))
        v = jnp.pad(v, ((0, 0), (0, Kp - K)))

    grid = (pl.cdiv(M, tm), pl.cdiv(N, tn), Kp // tk)

    def kernel(x_ref, w_ref, ut_ref, v_ref, b_ref, o_ref, acc_ref, t_ref):
        j = pl.program_id(1)
        k = pl.program_id(2)

        @pl.when(k == 0)
        def _():
            acc_ref[...] = jnp.zeros_like(acc_ref)

        x = x_ref[...]  # operands stay in input dtype; accumulate in f32

        # Frozen path: x[tm,tk] contracted against W[tn,tk] along last dims
        # (transpose folded into the MXU contraction).
        acc_ref[...] += lax.dot_general(
            x, w_ref[...], (((1,), (1,)), ((), ())),
            preferred_element_type=jnp.float32)

        # Thin LoRA path: computed once per M-row tile (j == 0 only);
        # t_ref is scratch and persists across the j sweep.
        @pl.when((j == 0) & (k == 0))
        def _():
            t_ref[...] = jnp.zeros_like(t_ref)

        @pl.when(j == 0)
        def _():
            v_blk = v_ref[:, pl.ds(pl.multiple_of(k * tk, 128), tk)]
            t_ref[...] += lax.dot_general(
                x, v_blk, (((1,), (1,)), ((), ())),
                preferred_element_type=jnp.float32)

        @pl.when(k == pl.num_programs(2) - 1)
        def _():
            y = acc_ref[...] + b_ref[...].astype(jnp.float32)
            t = t_ref[...]
            ut = ut_ref[...].astype(jnp.float32)
            # rank-deep update as VPU broadcast-FMAs (padded cols are zeros).
            for r in range(rank_pad):
                y += t[:, r:r + 1] * ut[r:r + 1, :]
            o_ref[...] = y.astype(o_ref.dtype)

    out = pl.pallas_call(
        kernel,
        out_shape=jax.ShapeDtypeStruct((M, N), out_dtype),
        grid_spec=pltpu.PrefetchScalarGridSpec(
            num_scalar_prefetch=0,
            grid=grid,
            in_specs=[
                pl.BlockSpec((tm, tk), lambda i, j, k: (i, k)),        # patches
                pl.BlockSpec((tn, tk), lambda i, j, k: (j, k)),        # W_flat
                pl.BlockSpec((rank_pad, tn), lambda i, j, k: (0, j)),  # (alpha*U)^T
                pl.BlockSpec((rank_pad, Kp), lambda i, j, k: (0, 0)),  # V (resident)
                pl.BlockSpec((1, tn), lambda i, j, k: (0, j)),         # bias
            ],
            out_specs=pl.BlockSpec((tm, tn), lambda i, j, k: (i, j)),
            scratch_shapes=[
                pltpu.VMEM((tm, tn), jnp.float32),        # main f32 accumulator
                pltpu.VMEM((tm, rank_pad), jnp.float32),  # thin LoRA accumulator
            ],
        ),
        # j must stay "arbitrary": t_ref is per-core scratch reused across j.
        compiler_params=pltpu.CompilerParams(
            dimension_semantics=("parallel", "arbitrary", "arbitrary")),
    )(x2d, w_flat, u_t, v, bias2d)
    return out


# ---------------------------------------------------------------------------
# Wrapper: im2col + Pallas matmul + reshape back to NCHW
# ---------------------------------------------------------------------------
def _im2col(x, kH, kW, stride, padding, dilation):
    """x: [N, C, H, W] -> patches [N*outH*outW, C*kH*kW], fan_in ordered
    (C, kH, kW) row-major to match PyTorch's weight.reshape(out_c, -1)."""
    sh, sw = stride
    ph, pw = padding
    dh, dw = dilation
    N, C, H, W = x.shape
    xp = jnp.pad(x, ((0, 0), (0, 0), (ph, ph), (pw, pw)))
    Hp, Wp = H + 2 * ph, W + 2 * pw
    outH = (Hp - (dh * (kH - 1) + 1)) // sh + 1
    outW = (Wp - (dw * (kW - 1) + 1)) // sw + 1
    cols = []
    for i in range(kH):
        for j in range(kW):
            h0, w0 = i * dh, j * dw
            cols.append(xp[:, :, h0:h0 + sh * (outH - 1) + 1:sh,
                                 w0:w0 + sw * (outW - 1) + 1:sw])
    cols = jnp.stack(cols, axis=2)                    # [N, C, kH*kW, oH, oW]
    cols = cols.reshape(N, C * kH * kW, outH, outW)   # (C, kh, kw) ordering
    patches = cols.transpose(0, 2, 3, 1).reshape(N * outH * outW, C * kH * kW)
    return patches, outH, outW


def lora_conv2d(x, weight, bias, U, V, alpha=1.0,
                stride=(1, 1), padding=(0, 0), dilation=(1, 1), groups=1,
                compute_dtype=None):
    """x: [N, C, H, W]; weight: [out_c, in_c, kH, kW]; bias: [out_c] or None;
    U: [out_c, rank]; V: [rank, in_c*kH*kW]. Returns [N, out_c, outH, outW].
    compute_dtype (e.g. jnp.bfloat16) casts MXU operands; accumulation stays
    f32 and output keeps x.dtype."""
    if groups != 1:
        # TODO(synk): grouped convolution (groups != 1) not implemented.
        raise NotImplementedError("groups != 1 not supported")

    out_c, in_c, kH, kW = weight.shape
    Nb = x.shape[0]
    rank = U.shape[1]
    rank_pad = max(8, _round_up(rank, 8))   # sublane-friendly thin accumulator

    # TODO(synk): im2col is still materialized in HBM; a fused implicit-GEMM
    # (NHWC tiles + kH*kW dot_generals in-kernel) would cut the extra traffic.
    patches, outH, outW = _im2col(x, kH, kW, stride, padding, dilation)
    w_flat = weight.reshape(out_c, in_c * kH * kW)

    # Fold alpha into U, pre-transpose for lane-dense finalize rows, pad rank.
    u_t = (U * jnp.asarray(alpha, U.dtype)).T                      # [rank, out_c]
    u_t = jnp.pad(u_t, ((0, rank_pad - rank), (0, 0)))             # [rank_pad, out_c]
    v_pad = jnp.pad(V, ((0, rank_pad - rank), (0, 0)))             # [rank_pad, fan_in]

    b = bias if bias is not None else jnp.zeros((out_c,), x.dtype)
    b2d = b.reshape(1, out_c)

    if compute_dtype is not None:
        patches = patches.astype(compute_dtype)
        w_flat = w_flat.astype(compute_dtype)
        u_t = u_t.astype(compute_dtype)
        v_pad = v_pad.astype(compute_dtype)

    y2d = _lora_matmul(patches, w_flat, u_t, v_pad, b2d, x.dtype)
    return y2d.reshape(Nb, outH, outW, out_c).transpose(0, 3, 1, 2)


# TODO(synk): training-mode dropout on U not implemented; with dropout=0.0 the
# PyTorch module uses nn.Identity, which this matches exactly.


if __name__ == "__main__":
    # Small shapes consistent with a spectral conv layer.
    batch, in_c, H, W = 2, 4, 16, 16
    out_c, kH, kW = 8, 3, 3
    stride, padding, dilation = (1, 1), (1, 1), (1, 1)
    rank, alpha = 4, 1.0

    fan_in = in_c * kH * kW
    key = jax.random.PRNGKey(0)
    kx, kw, kb, ku, kv = jax.random.split(key, 5)

    bound = 1.0 / math.sqrt(fan_in)                   # nn.Conv2d default-ish
    weight = jax.random.uniform(kw, (out_c, in_c, kH, kW), jnp.float32,
                                minval=-bound, maxval=bound)
    bias = jax.random.uniform(kb, (out_c,), jnp.float32,
                              minval=-bound, maxval=bound)
    lora_scale = math.sqrt(1.0 / fan_in)              # LoRA init std
    U = lora_scale * jax.random.normal(ku, (out_c, rank), jnp.float32)
    V = lora_scale * jax.random.normal(kv, (rank, fan_in), jnp.float32)

    x = jax.random.normal(kx, (batch, in_c, H, W), jnp.float32)

    y = lora_conv2d(x, weight, bias, U, V, alpha=alpha,
                    stride=stride, padding=padding, dilation=dilation)
    y = jax.block_until_ready(y)

    # Pure-JAX reference (materialized W_adapted + dense conv).
    delta = (U @ V).reshape(weight.shape)
    w_adapted = weight + alpha * delta
    y_ref = lax.conv_general_dilated(
        x, w_adapted, window_strides=stride,
        padding=((padding[0], padding[0]), (padding[1], padding[1])),
        rhs_dilation=dilation,
        dimension_numbers=("NCHW", "OIHW", "NCHW"),
        precision=lax.Precision.HIGHEST)
    y_ref = y_ref + bias[None, :, None, None]

    assert y.shape == y_ref.shape, (y.shape, y_ref.shape)
    max_err = float(jnp.max(jnp.abs(y - y_ref)))
    assert max_err < 5e-2, f"mismatch vs reference: max abs err = {max_err}"

    print("KERNEL_OK")
</pallas_src>

<mosaic_0001>
module attributes {stable_mosaic.version = 11 : i64} {
  func.func @kernel(%arg0: i32, %arg1: i32, %arg2: i32, %arg3: memref<512x128xf32, #tpu.memory_space<vmem>>, %arg4: memref<128x128xf32, #tpu.memory_space<vmem>>, %arg5: memref<8x128xf32, #tpu.memory_space<vmem>>, %arg6: memref<8x128xf32, #tpu.memory_space<vmem>>, %arg7: memref<1x128xf32, #tpu.memory_space<vmem>>, %arg8: memref<512x128xf32, #tpu.memory_space<vmem>>, %arg9: memref<512x128xf32, #tpu.memory_space<vmem>>, %arg10: memref<512x8xf32, #tpu.memory_space<vmem>>) attributes {dimension_semantics = [#tpu.dimension_semantics<parallel>, #tpu.dimension_semantics<arbitrary>, #tpu.dimension_semantics<arbitrary>], iteration_bounds = array<i64: 1, 1, 1>, scalar_prefetch = 0 : i64, scratch_operands = 2 : i64, tpu.core_type = #tpu.core_type<tc>, window_params = [{transform_indices = @transform_0, window_bounds = array<i64: 512, 128>}, {transform_indices = @transform_1, window_bounds = array<i64: 128, 128>}, {transform_indices = @transform_2, window_bounds = array<i64: 8, 128>}, {pipeline_mode = #tpu.pipeline_mode<synchronous>, transform_indices = @transform_3, window_bounds = array<i64: 8, 128>}, {transform_indices = @transform_4, window_bounds = array<i64: 1, 128>}, {transform_indices = @transform_5, window_bounds = array<i64: 512, 128>}]} {
    %c0_i32 = arith.constant 0 : i32
    %0 = arith.cmpi eq, %arg2, %c0_i32 : i32
    %1 = arith.extui %0 : i1 to i32
    %c0_i32_0 = arith.constant 0 : i32
    %2 = arith.cmpi ne, %1, %c0_i32_0 : i32
    scf.if %2 {
      %cst_15 = arith.constant 0.000000e+00 : f32
      %20 = vector.broadcast %cst_15 : f32 to vector<512x128xf32>
      %c0_16 = arith.constant 0 : index
      %c0_17 = arith.constant 0 : index
      %21 = vector.load %arg9[%c0_16, %c0_17] : memref<512x128xf32, #tpu.memory_space<vmem>>, vector<512x128xf32>
      tpu.vector_store %arg9[%c0_16, %c0_17], %20 {strides = array<i32>} : memref<512x128xf32, #tpu.memory_space<vmem>>, vector<512x128xf32>,
    } else {
    }
    %c0 = arith.constant 0 : index
    %c0_1 = arith.constant 0 : index
    %3 = vector.load %arg3[%c0, %c0_1] : memref<512x128xf32, #tpu.memory_space<vmem>>, vector<512x128xf32>
    %c0_2 = arith.constant 0 : index
    %c0_3 = arith.constant 0 : index
    %4 = vector.load %arg9[%c0_2, %c0_3] : memref<512x128xf32, #tpu.memory_space<vmem>>, vector<512x128xf32>
    %c0_4 = arith.constant 0 : index
    %c0_5 = arith.constant 0 : index
    %5 = vector.load %arg4[%c0_4, %c0_5] : memref<128x128xf32, #tpu.memory_space<vmem>>, vector<128x128xf32>
    %cst = arith.constant dense<0.000000e+00> : vector<512x128xf32>
    %6 = tpu.matmul %3, %5, %cst {dimension_numbers = #tpu.dot_dimension_numbers<[1], [1], [0], [0], [0, 0, 1, 0], [], []>} : vector<512x128xf32>, vector<128x128xf32>, vector<512x128xf32> -> vector<512x128xf32>
    %7 = arith.addf %4, %6 : vector<512x128xf32>
    %c0_6 = arith.constant 0 : index
    %c0_7 = arith.constant 0 : index
    %8 = vector.load %arg9[%c0_6, %c0_7] : memref<512x128xf32, #tpu.memory_space<vmem>>, vector<512x128xf32>
    tpu.vector_store %arg9[%c0_6, %c0_7], %7 {strides = array<i32>} : memref<512x128xf32, #tpu.memory_space<vmem>>, vector<512x128xf32>,
    %c0_i32_8 = arith.constant 0 : i32
    %9 = arith.cmpi eq, %arg1, %c0_i32_8 : i32
    %c0_i32_9 = arith.constant 0 : i32
    %10 = arith.cmpi eq, %arg2, %c0_i32_9 : i32
    %11 = arith.andi %9, %10 : i1
    %12 = arith.extui %11 : i1 to i32
    %c0_i32_10 = arith.constant 0 : i32
    %13 = arith.cmpi ne, %12, %c0_i32_10 : i32
    scf.if %13 {
      %cst_15 = arith.constant 0.000000e+00 : f32
      %20 = vector.broadcast %cst_15 : f32 to vector<512x8xf32>
      %c0_16 = arith.constant 0 : index
      %c0_17 = arith.constant 0 : index
      %21 = vector.load %arg10[%c0_16, %c0_17] : memref<512x8xf32, #tpu.memory_space<vmem>>, vector<512x8xf32>
      tpu.vector_store %arg10[%c0_16, %c0_17], %20 {strides = array<i32>} : memref<512x8xf32, #tpu.memory_space<vmem>>, vector<512x8xf32>,
    } else {
    }
    %c0_i32_11 = arith.constant 0 : i32
    %14 = arith.cmpi eq, %arg1, %c0_i32_11 : i32
    %15 = arith.extui %14 : i1 to i32
    %c0_i32_12 = arith.constant 0 : i32
    %16 = arith.cmpi ne, %15, %c0_i32_12 : i32
    scf.if %16 {
      %c128_i32 = arith.constant 128 : i32
      %20 = arith.muli %arg2, %c128_i32 : i32
      %21 = tpu.assume_multiple %20, 128 : i32
      %c0_15 = arith.constant 0 : index
      %22 = arith.index_cast %21 : i32 to index
      %23 = vector.load %arg6[%c0_15, %22] : memref<8x128xf32, #tpu.memory_space<vmem>>, vector<8x128xf32>
      %c0_16 = arith.constant 0 : index
      %c0_17 = arith.constant 0 : index
      %24 = vector.load %arg10[%c0_16, %c0_17] : memref<512x8xf32, #tpu.memory_space<vmem>>, vector<512x8xf32>
      %cst_18 = arith.constant dense<0.000000e+00> : vector<512x8xf32>
      %25 = tpu.matmul %3, %23, %cst_18 {dimension_numbers = #tpu.dot_dimension_numbers<[1], [1], [0], [0], [0, 0, 1, 0], [], []>} : vector<512x128xf32>, vector<8x128xf32>, vector<512x8xf32> -> vector<512x8xf32>
      %26 = arith.addf %24, %25 : vector<512x8xf32>
      %c0_19 = arith.constant 0 : index
      %c0_20 = arith.constant 0 : index
      %27 = vector.load %arg10[%c0_19, %c0_20] : memref<512x8xf32, #tpu.memory_space<vmem>>, vector<512x8xf32>
      tpu.vector_store %arg10[%c0_19, %c0_20], %26 {strides = array<i32>} : memref<512x8xf32, #tpu.memory_space<vmem>>, vector<512x8xf32>,
    } else {
    }
    %c0_i32_13 = arith.constant 0 : i32
    %17 = arith.cmpi eq, %arg2, %c0_i32_13 : i32
    %18 = arith.extui %17 : i1 to i32
    %c0_i32_14 = arith.constant 0 : i32
    %19 = arith.cmpi ne, %18, %c0_i32_14 : i32
    scf.if %19 {
      %c0_15 = arith.constant 0 : index
      %c0_16 = arith.constant 0 : index
      %20 = vector.load %arg9[%c0_15, %c0_16] : memref<512x128xf32, #tpu.memory_space<vmem>>, vector<512x128xf32>
      %c0_17 = arith.constant 0 : index
      %c0_18 = arith.constant 0 : index
      %21 = vector.load %arg7[%c0_17, %c0_18] : memref<1x128xf32, #tpu.memory_space<vmem>>, vector<1x128xf32>
      %22 = vector.broadcast %21 : vector<1x128xf32> to vector<512x128xf32>
      %23 = arith.addf %20, %22 : vector<512x128xf32>
      %c0_19 = arith.constant 0 : index
      %c0_20 = arith.constant 0 : index
      %24 = vector.load %arg10[%c0_19, %c0_20] : memref<512x8xf32, #tpu.memory_space<vmem>>, vector<512x8xf32>
      %c0_21 = arith.constant 0 : index
      %c0_22 = arith.constant 0 : index
      %25 = vector.load %arg5[%c0_21, %c0_22] : memref<8x128xf32, #tpu.memory_space<vmem>>, vector<8x128xf32>
      %26 = vector.extract_strided_slice %24 {offsets = [0, 0], sizes = [512, 1], strides = [1, 1]} : vector<512x8xf32> to vector<512x1xf32>
      %27 = vector.extract_strided_slice %25 {offsets = [0, 0], sizes = [1, 128], strides = [1, 1]} : vector<8x128xf32> to vector<1x128xf32>
      %28 = vector.broadcast %26 : vector<512x1xf32> to vector<512x128xf32>
      %29 = vector.broadcast %27 : vector<1x128xf32> to vector<512x128xf32>
      %30 = arith.mulf %28, %29 : vector<512x128xf32>
      %31 = arith.addf %23, %30 : vector<512x128xf32>
      %32 = vector.extract_strided_slice %24 {offsets = [0, 1], sizes = [512, 1], strides = [1, 1]} : vector<512x8xf32> to vector<512x1xf32>
      %33 = vector.extract_strided_slice %25 {offsets = [1, 0], sizes = [1, 128], strides = [1, 1]} : vector<8x128xf32> to vector<1x128xf32>
      %34 = vector.broadcast %32 : vector<512x1xf32> to vector<512x128xf32>
      %35 = vector.broadcast %33 : vector<1x128xf32> to vector<512x128xf32>
      %36 = arith.mulf %34, %35 : vector<512x128xf32>
      %37 = arith.addf %31, %36 : vector<512x128xf32>
      %38 = vector.extract_strided_slice %24 {offsets = [0, 2], sizes = [512, 1], strides = [1, 1]} : vector<512x8xf32> to vector<512x1xf32>
      %39 = vector.extract_strided_slice %25 {offsets = [2, 0], sizes = [1, 128], strides = [1, 1]} : vector<8x128xf32> to vector<1x128xf32>
      %40 = vector.broadcast %38 : vector<512x1xf32> to vector<512x128xf32>
      %41 = vector.broadcast %39 : vector<1x128xf32> to vector<512x128xf32>
      %42 = arith.mulf %40, %41 : vector<512x128xf32>
      %43 = arith.addf %37, %42 : vector<512x128xf32>
      %44 = vector.extract_strided_slice %24 {offsets = [0, 3], sizes = [512, 1], strides = [1, 1]} : vector<512x8xf32> to vector<512x1xf32>
      %45 = vector.extract_strided_slice %25 {offsets = [3, 0], sizes = [1, 128], strides = [1, 1]} : vector<8x128xf32> to vector<1x128xf32>
      %46 = vector.broadcast %44 : vector<512x1xf32> to vector<512x128xf32>
      %47 = vector.broadcast %45 : vector<1x128xf32> to vector<512x128xf32>
      %48 = arith.mulf %46, %47 : vector<512x128xf32>
      %49 = arith.addf %43, %48 : vector<512x128xf32>
      %50 = vector.extract_strided_slice %24 {offsets = [0, 4], sizes = [512, 1], strides = [1, 1]} : vector<512x8xf32> to vector<512x1xf32>
      %51 = vector.extract_strided_slice %25 {offsets = [4, 0], sizes = [1, 128], strides = [1, 1]} : vector<8x128xf32> to vector<1x128xf32>
      %52 = vector.broadcast %50 : vector<512x1xf32> to vector<512x128xf32>
      %53 = vector.broadcast %51 : vector<1x128xf32> to vector<512x128xf32>
      %54 = arith.mulf %52, %53 : vector<512x128xf32>
      %55 = arith.addf %49, %54 : vector<512x128xf32>
      %56 = vector.extract_strided_slice %24 {offsets = [0, 5], sizes = [512, 1], strides = [1, 1]} : vector<512x8xf32> to vector<512x1xf32>
      %57 = vector.extract_strided_slice %25 {offsets = [5, 0], sizes = [1, 128], strides = [1, 1]} : vector<8x128xf32> to vector<1x128xf32>
      %58 = vector.broadcast %56 : vector<512x1xf32> to vector<512x128xf32>
      %59 = vector.broadcast %57 : vector<1x128xf32> to vector<512x128xf32>
      %60 = arith.mulf %58, %59 : vector<512x128xf32>
      %61 = arith.addf %55, %60 : vector<512x128xf32>
      %62 = vector.extract_strided_slice %24 {offsets = [0, 6], sizes = [512, 1], strides = [1, 1]} : vector<512x8xf32> to vector<512x1xf32>
      %63 = vector.extract_strided_slice %25 {offsets = [6, 0], sizes = [1, 128], strides = [1, 1]} : vector<8x128xf32> to vector<1x128xf32>
      %64 = vector.broadcast %62 : vector<512x1xf32> to vector<512x128xf32>
      %65 = vector.broadcast %63 : vector<1x128xf32> to vector<512x128xf32>
      %66 = arith.mulf %64, %65 : vector<512x128xf32>
      %67 = arith.addf %61, %66 : vector<512x128xf32>
      %68 = vector.extract_strided_slice %24 {offsets = [0, 7], sizes = [512, 1], strides = [1, 1]} : vector<512x8xf32> to vector<512x1xf32>
      %69 = vector.extract_strided_slice %25 {offsets = [7, 0], sizes = [1, 128], strides = [1, 1]} : vector<8x128xf32> to vector<1x128xf32>
      %70 = vector.broadcast %68 : vector<512x1xf32> to vector<512x128xf32>
      %71 = vector.broadcast %69 : vector<1x128xf32> to vector<512x128xf32>
      %72 = arith.mulf %70, %71 : vector<512x128xf32>
      %73 = arith.addf %67, %72 : vector<512x128xf32>
      %c0_23 = arith.constant 0 : index
      %c0_24 = arith.constant 0 : index
      %74 = vector.load %arg8[%c0_23, %c0_24] : memref<512x128xf32, #tpu.memory_space<vmem>>, vector<512x128xf32>
      tpu.vector_store %arg8[%c0_23, %c0_24], %73 {strides = array<i32>} : memref<512x128xf32, #tpu.memory_space<vmem>>, vector<512x128xf32>,
    } else {
    }
    return
  }
  func.func @transform_0(%arg0: i32, %arg1: i32, %arg2: i32) -> (i32, i32) {
    %c0_i32 = arith.constant 0 : i32
    return %arg0, %arg2 : i32, i32
  }
  func.func @transform_1(%arg0: i32, %arg1: i32, %arg2: i32) -> (i32, i32) {
    %c0_i32 = arith.constant 0 : i32
    return %arg1, %arg2 : i32, i32
  }
  func.func @transform_2(%arg0: i32, %arg1: i32, %arg2: i32) -> (i32, i32) {
    %c0_i32 = arith.constant 0 : i32
    %c0_i32_0 = arith.constant 0 : i32
    return %c0_i32, %arg1 : i32, i32
  }
  func.func @transform_3(%arg0: i32, %arg1: i32, %arg2: i32) -> (i32, i32) {
    %c0_i32 = arith.constant 0 : i32
    %c0_i32_0 = arith.constant 0 : i32
    %c0_i32_1 = arith.constant 0 : i32
    return %c0_i32, %c0_i32_0 : i32, i32
  }
  func.func @transform_4(%arg0: i32, %arg1: i32, %arg2: i32) -> (i32, i32) {
    %c0_i32 = arith.constant 0 : i32
    %c0_i32_0 = arith.constant 0 : i32
    return %c0_i32, %arg1 : i32, i32
  }
  func.func @transform_5(%arg0: i32, %arg1: i32, %arg2: i32) -> (i32, i32) {
    %c0_i32 = arith.constant 0 : i32
    return %arg0, %arg1 : i32, i32
  }
}

</mosaic_0001>

<llo_original>
// kernel: tpu_custom_call.1
$region0: #{tpu_custom_call.1}
  #allocation0 [shape = 'u32[]', space=smem, size = 0x4, offset = 0x4, fixed_abs, tag = 'smem constant byte address 0x4 - core index']
  #allocation1 [shape = 'u32[144,128]{1,0:T(1,128)}', space=vmem, size = 0x12000, scoped, tag = 'internal scratch']
  #allocation2 [shape = 'f32[512,128]{1,0:T(8,128)}', space=vmem, size = 0x40000, scoped, tag = 'scratch operand']
  #allocation3 [shape = 'f32[512,8]{1,0:T(8,128)}', space=vmem, size = 0x40000, scoped, tag = 'scratch operand']
  %s0 = inlined_call_operand.hbm [shape: f32[512,128], index: 0, kind: input, shape index: {}]
  %s1 = inlined_call_operand.hbm [shape: f32[8,128], index: 1, kind: input, shape index: {}]
  %s2 = inlined_call_operand.hbm [shape: f32[8,8], index: 2, kind: input, shape index: {}]
  %s3 = inlined_call_operand.hbm [shape: f32[8,128], index: 3, kind: input, shape index: {}]
  %s4 = inlined_call_operand.vmem [shape: f32[1,8], index: 4, kind: input, shape index: {}]
  %s5 = inlined_call_operand.vmem [shape: f32[512,8], index: 5, kind: output, shape index: {}]
  %s6 = sld [smem:[#allocation0]]
  $region62: #{tpu_custom_call.1} parent=0
    _
  %s8 = ssub.s32 1, %s6
  %s9 = scalar_select 0, %s8, %s6
  $region1: #{tpu_custom_call.1} parent=0
    #allocation4 [shape = 'u8[262144]{0}', space=vmem, size = 0x40000, scoped, tag = 'input window, operand 0, single buffered']
    #allocation5 [shape = 's32[1]{0}', space=sflag, size = 0x4, scoped, tag = 'scoped memory for tpu_custom_call.1']
    #allocation6 [shape = 'u8[65536]{0}', space=vmem, size = 0x10000, scoped, tag = 'input window, operand 1, single buffered']
    #allocation7 [shape = 's32[1]{0}', space=sflag, size = 0x4, scoped, tag = 'scoped memory for tpu_custom_call.1']
    #allocation8 [shape = 'u8[4096]{0}', space=vmem, size = 0x1000, scoped, tag = 'input window, operand 2, single buffered']
    #allocation9 [shape = 'u8[4096]{0}', space=vmem, size = 0x1000, scoped, tag = 'input window, operand 3, single buffered']
    #allocation10 [shape = 's32[1]{0}', space=sflag, size = 0x4, scoped, tag = 'scoped memory for tpu_custom_call.1']
    %10 = vsyncpa [#allocation5], 0
    %11 = vsyncpa [#allocation7], 0
    %12 = vsyncpa [#allocation10], 0
    // Predicated region
    $region2: #{tpu_custom_call.1} parent=1 // pred_check
      _
    $region3: #{tpu_custom_call.1} parent=1 // pred_check_branch
      %14 = sbr.rel (0) target = $region5
    $region4: #{tpu_custom_call.1} parent=1 // pred_region
      %s16 = ssub.s32 8192, 8192
      %17 = vsyncadd [#allocation5], %s16
      %s18 = sshll.u32 [#allocation4], 4
      %s19 = int_to_ptr.vmem [resolvable:$true] %s18
      %24 = dma.hbm_to_vmem [thread:$0]  %s0, 8192, %s19, [#allocation5], 128, 128, 8
    $region5: #{tpu_custom_call.1} parent=1 // pred_fallthru
      _
    // Predicated region
    $region6: #{tpu_custom_call.1} parent=1 // pred_check
      _
    $region7: #{tpu_custom_call.1} parent=1 // pred_check_branch
      %26 = sbr.rel (0) target = $region9
    $region8: #{tpu_custom_call.1} parent=1 // pred_region
      %s28 = ssub.s32 2048, 128
      %29 = vsyncadd [#allocation7], %s28
      %s30 = sshll.u32 [#allocation6], 4
      %s31 = int_to_ptr.vmem [resolvable:$true] %s30
      %36 = dma.hbm_to_vmem [thread:$0]  %s1, 128, %s31, [#allocation7], 128, 128, 8
    $region9: #{tpu_custom_call.1} parent=1 // pred_fallthru
      _
    // Predicated region
    $region10: #{tpu_custom_call.1} parent=1 // pred_check
      _
    $region11: #{tpu_custom_call.1} parent=1 // pred_check_branch
      %38 = sbr.rel (0) target = $region13
    $region12: #{tpu_custom_call.1} parent=1 // pred_region
      %s40 = ssub.s32 128, 128
      %41 = vsyncadd [#allocation7], %s40
      %s43 = sshll.u32 [#allocation8], 4
      %s44 = int_to_ptr.vmem [resolvable:$true] %s43
      %46 = dma.hbm_to_vmem [thread:$0]  %s2, 128, %s44, [#allocation7]
    $region13: #{tpu_custom_call.1} parent=1 // pred_fallthru
      _
    // Predicated region
    $region14: #{tpu_custom_call.1} parent=1 // pred_check
      _
    $region15: #{tpu_custom_call.1} parent=1 // pred_check_branch
      %48 = sbr.rel (0) target = $region17
    $region16: #{tpu_custom_call.1} parent=1 // pred_region
      %s50 = ssub.s32 128, 128
      %51 = vsyncadd [#allocation10], %s50
      %s53 = sshll.u32 [#allocation9], 4
      %s54 = int_to_ptr.vmem [resolvable:$true] %s53
      %56 = dma.hbm_to_vmem [thread:$0]  %s3, 128, %s54, [#allocation10]
    $region17: #{tpu_custom_call.1} parent=1 // pred_fallthru
      _
    // Predicated region
    $region18: #{tpu_custom_call.1} parent=1 // pred_check
      _
    $region19: #{tpu_custom_call.1} parent=1 // pred_check_branch
      %58 = sbr.rel (0) target = $region21
    $region20: #{tpu_custom_call.1} parent=1 // pred_region
      _
    $region21: #{tpu_custom_call.1} parent=1 // pred_fallthru
      _
    // Predicated region
    $region22: #{tpu_custom_call.1} parent=1 // pred_check
      _
    $region23: #{tpu_custom_call.1} parent=1 // pred_check_branch
      %60 = sbr.rel (0) target = $region25
    $region24: #{tpu_custom_call.1} parent=1 // pred_region
      %61 = dma.done [#allocation5], 8192
    $region25: #{tpu_custom_call.1} parent=1 // pred_fallthru
      _
    // Predicated region
    $region26: #{tpu_custom_call.1} parent=1 // pred_check
      _
    $region27: #{tpu_custom_call.1} parent=1 // pred_check_branch
      %63 = sbr.rel (0) target = $region29
    $region28: #{tpu_custom_call.1} parent=1 // pred_region
      %64 = dma.done [#allocation7], 2048
    $region29: #{tpu_custom_call.1} parent=1 // pred_fallthru
      _
    // Predicated region
    $region30: #{tpu_custom_call.1} parent=1 // pred_check
      _
    $region31: #{tpu_custom_call.1} parent=1 // pred_check_branch
      %66 = sbr.rel (0) target = $region33
    $region32: #{tpu_custom_call.1} parent=1 // pred_region
      %67 = dma.done [#allocation7], 128
    $region33: #{tpu_custom_call.1} parent=1 // pred_fallthru
      _
    // Predicated region
    $region34: #{tpu_custom_call.1} parent=1 // pred_check
      _
    $region35: #{tpu_custom_call.1} parent=1 // pred_check_branch
      %69 = sbr.rel (0) target = $region37
    $region36: #{tpu_custom_call.1} parent=1 // pred_region
      %70 = dma.done [#allocation10], 128
    $region37: #{tpu_custom_call.1} parent=1 // pred_fallthru
      _
    %p71 = scmp.eq.s32.totalorder 0, 0
    // Predicated region
    $region38: #{tpu_custom_call.1} parent=1 // pred_check
      %p72 = pneg %p71
    $region39: #{tpu_custom_call.1} parent=1 // pred_check_branch
      %74 = sbr.rel (%p72) target = $region41
    $region40: #{tpu_custom_call.1} parent=1 // pred_region
      %75 = vst [vmem:[#allocation2] sm:$0xff] 0.0
      %76 = vst [vmem:[#allocation2 + $0x8] sm:$0xff] 0.0
      %77 = vst [vmem:[#allocation2 + $0x10] sm:$0xff] 0.0
      %78 = vst [vmem:[#allocation2 + $0x18] sm:$0xff] 0.0
      %79 = vst [vmem:[#allocation2 + $0x20] sm:$0xff] 0.0
      %80 = vst [vmem:[#allocation2 + $0x28] sm:$0xff] 0.0
      %81 = vst [vmem:[#allocation2 + $0x30] sm:$0xff] 0.0
      %82 = vst [vmem:[#allocation2 + $0x38] sm:$0xff] 0.0
      %83 = vst [vmem:[#allocation2 + $0x40] sm:$0xff] 0.0
      %84 = vst [vmem:[#allocation2 + $0x48] sm:$0xff] 0.0
      %85 = vst [vmem:[#allocation2 + $0x50] sm:$0xff] 0.0
      %86 = vst [vmem:[#allocation2 + $0x58] sm:$0xff] 0.0
      %87 = vst [vmem:[#allocation2 + $0x60] sm:$0xff] 0.0
      %88 = vst [vmem:[#allocation2 + $0x68] sm:$0xff] 0.0
      %89 = vst [vmem:[#allocation2 + $0x70] sm:$0xff] 0.0
      %90 = vst [vmem:[#allocation2 + $0x78] sm:$0xff] 0.0
      %91 = vst [vmem:[#allocation2 + $0x80] sm:$0xff] 0.0
      %92 = vst [vmem:[#allocation2 + $0x88] sm:$0xff] 0.0
      %93 = vst [vmem:[#allocation2 + $0x90] sm:$0xff] 0.0
      %94 = vst [vmem:[#allocation2 + $0x98] sm:$0xff] 0.0
      %95 = vst [vmem:[#allocation2 + $0xa0] sm:$0xff] 0.0
      %96 = vst [vmem:[#allocation2 + $0xa8] sm:$0xff] 0.0
      %97 = vst [vmem:[#allocation2 + $0xb0] sm:$0xff] 0.0
      %98 = vst [vmem:[#allocation2 + $0xb8] sm:$0xff] 0.0
      %99 = vst [vmem:[#allocation2 + $0xc0] sm:$0xff] 0.0
      %100 = vst [vmem:[#allocation2 + $0xc8] sm:$0xff] 0.0
      %101 = vst [vmem:[#allocation2 + $0xd0] sm:$0xff] 0.0
      %102 = vst [vmem:[#allocation2 + $0xd8] sm:$0xff] 0.0
      %103 = vst [vmem:[#allocation2 + $0xe0] sm:$0xff] 0.0
      %104 = vst [vmem:[#allocation2 + $0xe8] sm:$0xff] 0.0
      %105 = vst [vmem:[#allocation2 + $0xf0] sm:$0xff] 0.0
      %106 = vst [vmem:[#allocation2 + $0xf8] sm:$0xff] 0.0
      %107 = vst [vmem:[#allocation2 + $0x100] sm:$0xff] 0.0
      %108 = vst [vmem:[#allocation2 + $0x108] sm:$0xff] 0.0
      %109 = vst [vmem:[#allocation2 + $0x110] sm:$0xff] 0.0
      %110 = vst [vmem:[#allocation2 + $0x118] sm:$0xff] 0.0
      %111 = vst [vmem:[#allocation2 + $0x120] sm:$0xff] 0.0
      %112 = vst [vmem:[#allocation2 + $0x128] sm:$0xff] 0.0
      %113 = vst [vmem:[#allocation2 + $0x130] sm:$0xff] 0.0
      %114 = vst [vmem:[#allocation2 + $0x138] sm:$0xff] 0.0
      %115 = vst [vmem:[#allocation2 + $0x140] sm:$0xff] 0.0
      %116 = vst [vmem:[#allocation2 + $0x148] sm:$0xff] 0.0
      %117 = vst [vmem:[#allocation2 + $0x150] sm:$0xff] 0.0
      %118 = vst [vmem:[#allocation2 + $0x158] sm:$0xff] 0.0
      %119 = vst [vmem:[#allocation2 + $0x160] sm:$0xff] 0.0
      %120 = vst [vmem:[#allocation2 + $0x168] sm:$0xff] 0.0
      %121 = vst [vmem:[#allocation2 + $0x170] sm:$0xff] 0.0
      %122 = vst [vmem:[#allocation2 + $0x178] sm:$0xff] 0.0
      %123 = vst [vmem:[#allocation2 + $0x180] sm:$0xff] 0.0
      %124 = vst [vmem:[#allocation2 + $0x188] sm:$0xff] 0.0
      %125 = vst [vmem:[#allocation2 + $0x190] sm:$0xff] 0.0
      %126 = vst [vmem:[#allocation2 + $0x198] sm:$0xff] 0.0
      %127 = vst [vmem:[#allocation2 + $0x1a0] sm:$0xff] 0.0
      %128 = vst [vmem:[#allocation2 + $0x1a8] sm:$0xff] 0.0
      %129 = vst [vmem:[#allocation2 + $0x1b0] sm:$0xff] 0.0
      %130 = vst [vmem:[#allocation2 + $0x1b8] sm:$0xff] 0.0
      %131 = vst [vmem:[#allocation2 + $0x1c0] sm:$0xff] 0.0
      %132 = vst [vmem:[#allocation2 + $0x1c8] sm:$0xff] 0.0
      %133 = vst [vmem:[#allocation2 + $0x1d0] sm:$0xff] 0.0
      %134 = vst [vmem:[#allocation2 + $0x1d8] sm:$0xff] 0.0
      %135 = vst [vmem:[#allocation2 + $0x1e0] sm:$0xff] 0.0
      %136 = vst [vmem:[#allocation2 + $0x1e8] sm:$0xff] 0.0
      %137 = vst [vmem:[#allocation2 + $0x1f0] sm:$0xff] 0.0
      %138 = vst [vmem:[#allocation2 + $0x1f8] sm:$0xff] 0.0
    $region41: #{tpu_custom_call.1} parent=1 // pred_fallthru
      _
    %v139 = vld [vmem:[#allocation4] sm:$0xff]
    %v140 = vld [vmem:[#allocation4 + $0x8] sm:$0xff]
    %v141 = vld [vmem:[#allocation4 + $0x10] sm:$0xff]
    %v142 = vld [vmem:[#allocation4 + $0x18] sm:$0xff]
    %v143 = vld [vmem:[#allocation4 + $0x20] sm:$0xff]
    %v144 = vld [vmem:[#allocation4 + $0x28] sm:$0xff]
    %v145 = vld [vmem:[#allocation4 + $0x30] sm:$0xff]
    %v146 = vld [vmem:[#allocation4 + $0x38] sm:$0xff]
    %v147 = vld [vmem:[#allocation4 + $0x40] sm:$0xff]
    %v148 = vld [vmem:[#allocation4 + $0x48] sm:$0xff]
    %v149 = vld [vmem:[#allocation4 + $0x50] sm:$0xff]
    %v150 = vld [vmem:[#allocation4 + $0x58] sm:$0xff]
    %v151 = vld [vmem:[#allocation4 + $0x60] sm:$0xff]
    %v152 = vld [vmem:[#allocation4 + $0x68] sm:$0xff]
    %v153 = vld [vmem:[#allocation4 + $0x70] sm:$0xff]
    %v154 = vld [vmem:[#allocation4 + $0x78] sm:$0xff]
    %v155 = vld [vmem:[#allocation4 + $0x80] sm:$0xff]
    %v156 = vld [vmem:[#allocation4 + $0x88] sm:$0xff]
    %v157 = vld [vmem:[#allocation4 + $0x90] sm:$0xff]
    %v158 = vld [vmem:[#allocation4 + $0x98] sm:$0xff]
    %v159 = vld [vmem:[#allocation4 + $0xa0] sm:$0xff]
    %v160 = vld [vmem:[#allocation4 + $0xa8] sm:$0xff]
    %v161 = vld [vmem:[#allocation4 + $0xb0] sm:$0xff]
    %v162 = vld [vmem:[#allocation4 + $0xb8] sm:$0xff]
    %v163 = vld [vmem:[#allocation4 + $0xc0] sm:$0xff]
    %v164 = vld [vmem:[#allocation4 + $0xc8] sm:$0xff]
    %v165 = vld [vmem:[#allocation4 + $0xd0] sm:$0xff]
    %v166 = vld [vmem:[#allocation4 + $0xd8] sm:$0xff]
    %v167 = vld [vmem:[#allocation4 + $0xe0] sm:$0xff]
    %v168 = vld [vmem:[#allocation4 + $0xe8] sm:$0xff]
    %v169 = vld [vmem:[#allocation4 + $0xf0] sm:$0xff]
    %v170 = vld [vmem:[#allocation4 + $0xf8] sm:$0xff]
    %v171 = vld [vmem:[#allocation4 + $0x100] sm:$0xff]
    %v172 = vld [vmem:[#allocation4 + $0x108] sm:$0xff]
    %v173 = vld [vmem:[#allocation4 + $0x110] sm:$0xff]
    %v174 = vld [vmem:[#allocation4 + $0x118] sm:$0xff]
    %v175 = vld [vmem:[#allocation4 + $0x120] sm:$0xff]
    %v176 = vld [vmem:[#allocation4 + $0x128] sm:$0xff]
    %v177 = vld [vmem:[#allocation4 + $0x130] sm:$0xff]
    %v178 = vld [vmem:[#allocation4 + $0x138] sm:$0xff]
    %v179 = vld [vmem:[#allocation4 + $0x140] sm:$0xff]
    %v180 = vld [vmem:[#allocation4 + $0x148] sm:$0xff]
    %v181 = vld [vmem:[#allocation4 + $0x150] sm:$0xff]
    %v182 = vld [vmem:[#allocation4 + $0x158] sm:$0xff]
    %v183 = vld [vmem:[#allocation4 + $0x160] sm:$0xff]
    %v184 = vld [vmem:[#allocation4 + $0x168] sm:$0xff]
    %v185 = vld [vmem:[#allocation4 + $0x170] sm:$0xff]
    %v186 = vld [vmem:[#allocation4 + $0x178] sm:$0xff]
    %v187 = vld [vmem:[#allocation4 + $0x180] sm:$0xff]
    %v188 = vld [vmem:[#allocation4 + $0x188] sm:$0xff]
    %v189 = vld [vmem:[#allocation4 + $0x190] sm:$0xff]
    %v190 = vld [vmem:[#allocation4 + $0x198] sm:$0xff]
    %v191 = vld [vmem:[#allocation4 + $0x1a0] sm:$0xff]
    %v192 = vld [vmem:[#allocation4 + $0x1a8] sm:$0xff]
    %v193 = vld [vmem:[#allocation4 + $0x1b0] sm:$0xff]
    %v194 = vld [vmem:[#allocation4 + $0x1b8] sm:$0xff]
    %v195 = vld [vmem:[#allocation4 + $0x1c0] sm:$0xff]
    %v196 = vld [vmem:[#allocation4 + $0x1c8] sm:$0xff]
    %v197 = vld [vmem:[#allocation4 + $0x1d0] sm:$0xff]
    %v198 = vld [vmem:[#allocation4 + $0x1d8] sm:$0xff]
    %v199 = vld [vmem:[#allocation4 + $0x1e0] sm:$0xff]
    %v200 = vld [vmem:[#allocation4 + $0x1e8] sm:$0xff]
    %v201 = vld [vmem:[#allocation4 + $0x1f0] sm:$0xff]
    %v202 = vld [vmem:[#allocation4 + $0x1f8] sm:$0xff]
    %v203 = vld [vmem:[#allocation2] sm:$0xff]
    %v204 = vld [vmem:[#allocation2 + $0x8] sm:$0xff]
    %v205 = vld [vmem:[#allocation2 + $0x10] sm:$0xff]
    %v206 = vld [vmem:[#allocation2 + $0x18] sm:$0xff]
    %v207 = vld [vmem:[#allocation2 + $0x20] sm:$0xff]
    %v208 = vld [vmem:[#allocation2 + $0x28] sm:$0xff]
    %v209 = vld [vmem:[#allocation2 + $0x30] sm:$0xff]
    %v210 = vld [vmem:[#allocation2 + $0x38] sm:$0xff]
    %v211 = vld [vmem:[#allocation2 + $0x40] sm:$0xff]
    %v212 = vld [vmem:[#allocation2 + $0x48] sm:$0xff]
    %v213 = vld [vmem:[#allocation2 + $0x50] sm:$0xff]
    %v214 = vld [vmem:[#allocation2 + $0x58] sm:$0xff]
    %v215 = vld [vmem:[#allocation2 + $0x60] sm:$0xff]
    %v216 = vld [vmem:[#allocation2 + $0x68] sm:$0xff]
    %v217 = vld [vmem:[#allocation2 + $0x70] sm:$0xff]
    %v218 = vld [vmem:[#allocation2 + $0x78] sm:$0xff]
    %v219 = vld [vmem:[#allocation2 + $0x80] sm:$0xff]
    %v220 = vld [vmem:[#allocation2 + $0x88] sm:$0xff]
    %v221 = vld [vmem:[#allocation2 + $0x90] sm:$0xff]
    %v222 = vld [vmem:[#allocation2 + $0x98] sm:$0xff]
    %v223 = vld [vmem:[#allocation2 + $0xa0] sm:$0xff]
    %v224 = vld [vmem:[#allocation2 + $0xa8] sm:$0xff]
    %v225 = vld [vmem:[#allocation2 + $0xb0] sm:$0xff]
    %v226 = vld [vmem:[#allocation2 + $0xb8] sm:$0xff]
    %v227 = vld [vmem:[#allocation2 + $0xc0] sm:$0xff]
    %v228 = vld [vmem:[#allocation2 + $0xc8] sm:$0xff]
    %v229 = vld [vmem:[#allocation2 + $0xd0] sm:$0xff]
    %v230 = vld [vmem:[#allocation2 + $0xd8] sm:$0xff]
    %v231 = vld [vmem:[#allocation2 + $0xe0] sm:$0xff]
    %v232 = vld [vmem:[#allocation2 + $0xe8] sm:$0xff]
    %v233 = vld [vmem:[#allocation2 + $0xf0] sm:$0xff]
    %v234 = vld [vmem:[#allocation2 + $0xf8] sm:$0xff]
    %v235 = vld [vmem:[#allocation2 + $0x100] sm:$0xff]
    %v236 = vld [vmem:[#allocation2 + $0x108] sm:$0xff]
    %v237 = vld [vmem:[#allocation2 + $0x110] sm:$0xff]
    %v238 = vld [vmem:[#allocation2 + $0x118] sm:$0xff]
    %v239 = vld [vmem:[#allocation2 + $0x120] sm:$0xff]
    %v240 = vld [vmem:[#allocation2 + $0x128] sm:$0xff]
    %v241 = vld [vmem:[#allocation2 + $0x130] sm:$0xff]
    %v242 = vld [vmem:[#allocation2 + $0x138] sm:$0xff]
    %v243 = vld [vmem:[#allocation2 + $0x140] sm:$0xff]
    %v244 = vld [vmem:[#allocation2 + $0x148] sm:$0xff]
    %v245 = vld [vmem:[#allocation2 + $0x150] sm:$0xff]
    %v246 = vld [vmem:[#allocation2 + $0x158] sm:$0xff]
    %v247 = vld [vmem:[#allocation2 + $0x160] sm:$0xff]
    %v248 = vld [vmem:[#allocation2 + $0x168] sm:$0xff]
    %v249 = vld [vmem:[#allocation2 + $0x170] sm:$0xff]
    %v250 = vld [vmem:[#allocation2 + $0x178] sm:$0xff]
    %v251 = vld [vmem:[#allocation2 + $0x180] sm:$0xff]
    %v252 = vld [vmem:[#allocation2 + $0x188] sm:$0xff]
    %v253 = vld [vmem:[#allocation2 + $0x190] sm:$0xff]
    %v254 = vld [vmem:[#allocation2 + $0x198] sm:$0xff]
    %v255 = vld [vmem:[#allocation2 + $0x1a0] sm:$0xff]
    %v256 = vld [vmem:[#allocation2 + $0x1a8] sm:$0xff]
    %v257 = vld [vmem:[#allocation2 + $0x1b0] sm:$0xff]
    %v258 = vld [vmem:[#allocation2 + $0x1b8] sm:$0xff]
    %v259 = vld [vmem:[#allocation2 + $0x1c0] sm:$0xff]
    %v260 = vld [vmem:[#allocation2 + $0x1c8] sm:$0xff]
    %v261 = vld [vmem:[#allocation2 + $0x1d0] sm:$0xff]
    %v262 = vld [vmem:[#allocation2 + $0x1d8] sm:$0xff]
    %v263 = vld [vmem:[#allocation2 + $0x1e0] sm:$0xff]
    %v264 = vld [vmem:[#allocation2 + $0x1e8] sm:$0xff]
    %v265 = vld [vmem:[#allocation2 + $0x1f0] sm:$0xff]
    %v266 = vld [vmem:[#allocation2 + $0x1f8] sm:$0xff]
    %v267 = vld [vmem:[#allocation6] sm:$0xff]
    %v268 = vld [vmem:[#allocation6 + $0x8] sm:$0xff]
    %v269 = vld [vmem:[#allocation6 + $0x10] sm:$0xff]
    %v270 = vld [vmem:[#allocation6 + $0x18] sm:$0xff]
    %v271 = vld [vmem:[#allocation6 + $0x20] sm:$0xff]
    %v272 = vld [vmem:[#allocation6 + $0x28] sm:$0xff]
    %v273 = vld [vmem:[#allocation6 + $0x30] sm:$0xff]
    %v274 = vld [vmem:[#allocation6 + $0x38] sm:$0xff]
    %v275 = vld [vmem:[#allocation6 + $0x40] sm:$0xff]
    %v276 = vld [vmem:[#allocation6 + $0x48] sm:$0xff]
    %v277 = vld [vmem:[#allocation6 + $0x50] sm:$0xff]
    %v278 = vld [vmem:[#allocation6 + $0x58] sm:$0xff]
    %v279 = vld [vmem:[#allocation6 + $0x60] sm:$0xff]
    %v280 = vld [vmem:[#allocation6 + $0x68] sm:$0xff]
    %v281 = vld [vmem:[#allocation6 + $0x70] sm:$0xff]
    %v282 = vld [vmem:[#allocation6 + $0x78] sm:$0xff]
    %283 = vmatprep.subr.mxu0 0.0
    %284 = vmatpush1.xpose.msra.mxu0 %v282
    %285 = vmatprep.subr.mxu0 0.0
    %286 = vmatpush1.xpose.msra.mxu0 %v281
    %287 = vmatprep.subr.mxu0 0.0
    %288 = vmatpush1.xpose.msra.mxu0 %v280
    %289 = vmatprep.subr.mxu0 0.0
    %290 = vmatpush1.xpose.msra.mxu0 %v279
    %291 = vmatprep.subr.mxu0 0.0
    %292 = vmatpush1.xpose.msra.mxu0 %v278
    %293 = vmatprep.subr.mxu0 0.0
    %294 = vmatpush1.xpose.msra.mxu0 %v277
    %295 = vmatprep.subr.mxu0 0.0
    %296 = vmatpush1.xpose.msra.mxu0 %v276
    %297 = vmatprep.subr.mxu0 0.0
    %298 = vmatpush1.xpose.msra.mxu0 %v275
    %299 = vmatprep.subr.mxu0 0.0
    %300 = vmatpush1.xpose.msra.mxu0 %v274
    %301 = vmatprep.subr.mxu0 0.0
    %302 = vmatpush1.xpose.msra.mxu0 %v273
    %303 = vmatprep.subr.mxu0 0.0
    %304 = vmatpush1.xpose.msra.mxu0 %v272
    %305 = vmatprep.subr.mxu0 0.0
    %306 = vmatpush1.xpose.msra.mxu0 %v271
    %307 = vmatprep.subr.mxu0 0.0
    %308 = vmatpush1.xpose.msra.mxu0 %v270
    %309 = vmatprep.subr.mxu0 0.0
    %310 = vmatpush1.xpose.msra.mxu0 %v269
    %311 = vmatprep.subr.mxu0 0.0
    %312 = vmatpush1.xpose.msra.mxu0 %v268
    %313 = vmatprep.subr.mxu0 0.0
    %314 = vmatpush1.xpose.msra.mxu0 %v267
    %315 = vmatprep.subr.mxu0 0.0
    %316 = vmatpush2.xpose.msra.mxu0 0.0
    %317 = vmatprep.subr.mxu0 0.0
    %318 = vmatpush2.xpose.msra.mxu0 0.0
    %319 = vmatprep.subr.mxu0 0.0
    %320 = vmatpush2.xpose.msra.mxu0 0.0
    %321 = vmatprep.subr.mxu0 0.0
    %322 = vmatpush2.xpose.msra.mxu0 0.0
    %323 = vmatprep.subr.mxu0 0.0
    %324 = vmatpush2.xpose.msra.mxu0 0.0
    %325 = vmatprep.subr.mxu0 0.0
    %326 = vmatpush2.xpose.msra.mxu0 0.0
    %327 = vmatprep.subr.mxu0 0.0
    %328 = vmatpush2.xpose.msra.mxu0 0.0
    %329 = vmatprep.subr.mxu0 0.0
    %330 = vmatpush2.xpose.msra.mxu0 0.0
    %331 = vmatprep.subr.mxu0 0.0
    %332 = vmatpush2.xpose.msra.mxu0 0.0
    %333 = vmatprep.subr.mxu0 0.0
    %334 = vmatpush2.xpose.msra.mxu0 0.0
    %335 = vmatprep.subr.mxu0 0.0
    %336 = vmatpush2.xpose.msra.mxu0 0.0
    %337 = vmatprep.subr.mxu0 0.0
    %338 = vmatpush2.xpose.msra.mxu0 0.0
    %339 = vmatprep.subr.mxu0 0.0
    %340 = vmatpush2.xpose.msra.mxu0 0.0
    %341 = vmatprep.subr.mxu0 0.0
    %342 = vmatpush2.xpose.msra.mxu0 0.0
    %343 = vmatprep.subr.mxu0 0.0
    %344 = vmatpush2.xpose.msra.mxu0 0.0
    %345 = vmatprep.subr.mxu0 0.0
    %346 = vmatpush2.xpose.msra.mxu0 0.0
    %347 = vmatprep.mubr.f32.mxu0 0.0
    %348 = vmatmul.mubr.f32.gmra.mxu0 %v139
    %v349 = vpop.f32.mrf.mxu0
    %v350 = vadd.f32 0.0, %v349
    %v351 = vpop.f32.mrf.mxu0
    %352 = vmatprep.mubr.f32.mxu0 0.0
    %353 = vmatmul.mubr.f32.gmra.mxu0 %v140
    %v354 = vpop.f32.mrf.mxu0
    %v355 = vadd.f32 0.0, %v354
    %v356 = vpop.f32.mrf.mxu0
    %357 = vmatprep.mubr.f32.mxu0 0.0
    %358 = vmatmul.mubr.f32.gmra.mxu0 %v141
    %v359 = vpop.f32.mrf.mxu0
    %v360 = vadd.f32 0.0, %v359
    %v361 = vpop.f32.mrf.mxu0
    %362 = vmatprep.mubr.f32.mxu0 0.0
    %363 = vmatmul.mubr.f32.gmra.mxu0 %v142
    %v364 = vpop.f32.mrf.mxu0
    %v365 = vadd.f32 0.0, %v364
    %v366 = vpop.f32.mrf.mxu0
    %367 = vmatprep.mubr.f32.mxu0 0.0
    %368 = vmatmul.mubr.f32.gmra.mxu0 %v143
    %v369 = vpop.f32.mrf.mxu0
    %v370 = vadd.f32 0.0, %v369
    %v371 = vpop.f32.mrf.mxu0
    %372 = vmatprep.mubr.f32.mxu0 0.0
    %373 = vmatmul.mubr.f32.gmra.mxu0 %v144
    %v374 = vpop.f32.mrf.mxu0
    %v375 = vadd.f32 0.0, %v374
    %v376 = vpop.f32.mrf.mxu0
    %377 = vmatprep.mubr.f32.mxu0 0.0
    %378 = vmatmul.mubr.f32.gmra.mxu0 %v145
    %v379 = vpop.f32.mrf.mxu0
    %v380 = vadd.f32 0.0, %v379
    %v381 = vpop.f32.mrf.mxu0
    %382 = vmatprep.mubr.f32.mxu0 0.0
    %383 = vmatmul.mubr.f32.gmra.mxu0 %v146
    %v384 = vpop.f32.mrf.mxu0
    %v385 = vadd.f32 0.0, %v384
    %v386 = vpop.f32.mrf.mxu0
    %387 = vmatprep.mubr.f32.mxu0 0.0
    %388 = vmatmul.mubr.f32.gmra.mxu0 %v147
    %v389 = vpop.f32.mrf.mxu0
    %v390 = vadd.f32 0.0, %v389
    %v391 = vpop.f32.mrf.mxu0
    %392 = vmatprep.mubr.f32.mxu0 0.0
    %393 = vmatmul.mubr.f32.gmra.mxu0 %v148
    %v394 = vpop.f32.mrf.mxu0
    %v395 = vadd.f32 0.0, %v394
    %v396 = vpop.f32.mrf.mxu0
    %397 = vmatprep.mubr.f32.mxu0 0.0
    %398 = vmatmul.mubr.f32.gmra.mxu0 %v149
    %v399 = vpop.f32.mrf.mxu0
    %v400 = vadd.f32 0.0, %v399
    %v401 = vpop.f32.mrf.mxu0
    %402 = vmatprep.mubr.f32.mxu0 0.0
    %403 = vmatmul.mubr.f32.gmra.mxu0 %v150
    %v404 = vpop.f32.mrf.mxu0
    %v405 = vadd.f32 0.0, %v404
    %v406 = vpop.f32.mrf.mxu0
    %407 = vmatprep.mubr.f32.mxu0 0.0
    %408 = vmatmul.mubr.f32.gmra.mxu0 %v151
    %v409 = vpop.f32.mrf.mxu0
    %v410 = vadd.f32 0.0, %v409
    %v411 = vpop.f32.mrf.mxu0
    %412 = vmatprep.mubr.f32.mxu0 0.0
    %413 = vmatmul.mubr.f32.gmra.mxu0 %v152
    %v414 = vpop.f32.mrf.mxu0
    %v415 = vadd.f32 0.0, %v414
    %v416 = vpop.f32.mrf.mxu0
    %417 = vmatprep.mubr.f32.mxu0 0.0
    %418 = vmatmul.mubr.f32.gmra.mxu0 %v153
    %v419 = vpop.f32.mrf.mxu0
    %v420 = vadd.f32 0.0, %v419
    %v421 = vpop.f32.mrf.mxu0
    %422 = vmatprep.mubr.f32.mxu0 0.0
    %423 = vmatmul.mubr.f32.gmra.mxu0 %v154
    %v424 = vpop.f32.mrf.mxu0
    %v425 = vadd.f32 0.0, %v424
    %v426 = vpop.f32.mrf.mxu0
    %427 = vmatprep.mubr.f32.mxu0 0.0
    %428 = vmatmul.mubr.f32.gmra.mxu0 %v155
    %v429 = vpop.f32.mrf.mxu0
    %v430 = vadd.f32 0.0, %v429
    %v431 = vpop.f32.mrf.mxu0
    %432 = vmatprep.mubr.f32.mxu0 0.0
    %433 = vmatmul.mubr.f32.gmra.mxu0 %v156
    %v434 = vpop.f32.mrf.mxu0
    %v435 = vadd.f32 0.0, %v434
    %v436 = vpop.f32.mrf.mxu0
    %437 = vmatprep.mubr.f32.mxu0 0.0
    %438 = vmatmul.mubr.f32.gmra.mxu0 %v157
    %v439 = vpop.f32.mrf.mxu0
    %v440 = vadd.f32 0.0, %v439
    %v441 = vpop.f32.mrf.mxu0
    %442 = vmatprep.mubr.f32.mxu0 0.0
    %443 = vmatmul.mubr.f32.gmra.mxu0 %v158
    %v444 = vpop.f32.mrf.mxu0
    %v445 = vadd.f32 0.0, %v444
    %v446 = vpop.f32.mrf.mxu0
    %447 = vmatprep.mubr.f32.mxu0 0.0
    %448 = vmatmul.mubr.f32.gmra.mxu0 %v159
    %v449 = vpop.f32.mrf.mxu0
    %v450 = vadd.f32 0.0, %v449
    %v451 = vpop.f32.mrf.mxu0
    %452 = vmatprep.mubr.f32.mxu0 0.0
    %453 = vmatmul.mubr.f32.gmra.mxu0 %v160
    %v454 = vpop.f32.mrf.mxu0
    %v455 = vadd.f32 0.0, %v454
    %v456 = vpop.f32.mrf.mxu0
    %457 = vmatprep.mubr.f32.mxu0 0.0
    %458 = vmatmul.mubr.f32.gmra.mxu0 %v161
    %v459 = vpop.f32.mrf.mxu0
    %v460 = vadd.f32 0.0, %v459
    %v461 = vpop.f32.mrf.mxu0
    %462 = vmatprep.mubr.f32.mxu0 0.0
    %463 = vmatmul.mubr.f32.gmra.mxu0 %v162
    %v464 = vpop.f32.mrf.mxu0
    %v465 = vadd.f32 0.0, %v464
    %v466 = vpop.f32.mrf.mxu0
    %467 = vmatprep.mubr.f32.mxu0 0.0
    %468 = vmatmul.mubr.f32.gmra.mxu0 %v163
    %v469 = vpop.f32.mrf.mxu0
    %v470 = vadd.f32 0.0, %v469
    %v471 = vpop.f32.mrf.mxu0
    %472 = vmatprep.mubr.f32.mxu0 0.0
    %473 = vmatmul.mubr.f32.gmra.mxu0 %v164
    %v474 = vpop.f32.mrf.mxu0
    %v475 = vadd.f32 0.0, %v474
    %v476 = vpop.f32.mrf.mxu0
    %477 = vmatprep.mubr.f32.mxu0 0.0
    %478 = vmatmul.mubr.f32.gmra.mxu0 %v165
    %v479 = vpop.f32.mrf.mxu0
    %v480 = vadd.f32 0.0, %v479
    %v481 = vpop.f32.mrf.mxu0
    %482 = vmatprep.mubr.f32.mxu0 0.0
    %483 = vmatmul.mubr.f32.gmra.mxu0 %v166
    %v484 = vpop.f32.mrf.mxu0
    %v485 = vadd.f32 0.0, %v484
    %v486 = vpop.f32.mrf.mxu0
    %487 = vmatprep.mubr.f32.mxu0 0.0
    %488 = vmatmul.mubr.f32.gmra.mxu0 %v167
    %v489 = vpop.f32.mrf.mxu0
    %v490 = vadd.f32 0.0, %v489
    %v491 = vpop.f32.mrf.mxu0
    %492 = vmatprep.mubr.f32.mxu0 0.0
    %493 = vmatmul.mubr.f32.gmra.mxu0 %v168
    %v494 = vpop.f32.mrf.mxu0
    %v495 = vadd.f32 0.0, %v494
    %v496 = vpop.f32.mrf.mxu0
    %497 = vmatprep.mubr.f32.mxu0 0.0
    %498 = vmatmul.mubr.f32.gmra.mxu0 %v169
    %v499 = vpop.f32.mrf.mxu0
    %v500 = vadd.f32 0.0, %v499
    %v501 = vpop.f32.mrf.mxu0
    %502 = vmatprep.mubr.f32.mxu0 0.0
    %503 = vmatmul.mubr.f32.gmra.mxu0 %v170
    %v504 = vpop.f32.mrf.mxu0
    %v505 = vadd.f32 0.0, %v504
    %v506 = vpop.f32.mrf.mxu0
    %507 = vmatprep.mubr.f32.mxu0 0.0
    %508 = vmatmul.mubr.f32.gmra.mxu0 %v171
    %v509 = vpop.f32.mrf.mxu0
    %v510 = vadd.f32 0.0, %v509
    %v511 = vpop.f32.mrf.mxu0
    %512 = vmatprep.mubr.f32.mxu0 0.0
    %513 = vmatmul.mubr.f32.gmra.mxu0 %v172
    %v514 = vpop.f32.mrf.mxu0
    %v515 = vadd.f32 0.0, %v514
    %v516 = vpop.f32.mrf.mxu0
    %517 = vmatprep.mubr.f32.mxu0 0.0
    %518 = vmatmul.mubr.f32.gmra.mxu0 %v173
    %v519 = vpop.f32.mrf.mxu0
    %v520 = vadd.f32 0.0, %v519
    %v521 = vpop.f32.mrf.mxu0
    %522 = vmatprep.mubr.f32.mxu0 0.0
    %523 = vmatmul.mubr.f32.gmra.mxu0 %v174
    %v524 = vpop.f32.mrf.mxu0
    %v525 = vadd.f32 0.0, %v524
    %v526 = vpop.f32.mrf.mxu0
    %527 = vmatprep.mubr.f32.mxu0 0.0
    %528 = vmatmul.mubr.f32.gmra.mxu0 %v175
    %v529 = vpop.f32.mrf.mxu0
    %v530 = vadd.f32 0.0, %v529
    %v531 = vpop.f32.mrf.mxu0
    %532 = vmatprep.mubr.f32.mxu0 0.0
    %533 = vmatmul.mubr.f32.gmra.mxu0 %v176
    %v534 = vpop.f32.mrf.mxu0
    %v535 = vadd.f32 0.0, %v534
    %v536 = vpop.f32.mrf.mxu0
    %537 = vmatprep.mubr.f32.mxu0 0.0
    %538 = vmatmul.mubr.f32.gmra.mxu0 %v177
    %v539 = vpop.f32.mrf.mxu0
    %v540 = vadd.f32 0.0, %v539
    %v541 = vpop.f32.mrf.mxu0
    %542 = vmatprep.mubr.f32.mxu0 0.0
    %543 = vmatmul.mubr.f32.gmra.mxu0 %v178
    %v544 = vpop.f32.mrf.mxu0
    %v545 = vadd.f32 0.0, %v544
    %v546 = vpop.f32.mrf.mxu0
    %547 = vmatprep.mubr.f32.mxu0 0.0
    %548 = vmatmul.mubr.f32.gmra.mxu0 %v179
    %v549 = vpop.f32.mrf.mxu0
    %v550 = vadd.f32 0.0, %v549
    %v551 = vpop.f32.mrf.mxu0
    %552 = vmatprep.mubr.f32.mxu0 0.0
    %553 = vmatmul.mubr.f32.gmra.mxu0 %v180
    %v554 = vpop.f32.mrf.mxu0
    %v555 = vadd.f32 0.0, %v554
    %v556 = vpop.f32.mrf.mxu0
    %557 = vmatprep.mubr.f32.mxu0 0.0
    %558 = vmatmul.mubr.f32.gmra.mxu0 %v181
    %v559 = vpop.f32.mrf.mxu0
    %v560 = vadd.f32 0.0, %v559
    %v561 = vpop.f32.mrf.mxu0
    %562 = vmatprep.mubr.f32.mxu0 0.0
    %563 = vmatmul.mubr.f32.gmra.mxu0 %v182
    %v564 = vpop.f32.mrf.mxu0
    %v565 = vadd.f32 0.0, %v564
    %v566 = vpop.f32.mrf.mxu0
    %567 = vmatprep.mubr.f32.mxu0 0.0
    %568 = vmatmul.mubr.f32.gmra.mxu0 %v183
    %v569 = vpop.f32.mrf.mxu0
    %v570 = vadd.f32 0.0, %v569
    %v571 = vpop.f32.mrf.mxu0
    %572 = vmatprep.mubr.f32.mxu0 0.0
    %573 = vmatmul.mubr.f32.gmra.mxu0 %v184
    %v574 = vpop.f32.mrf.mxu0
    %v575 = vadd.f32 0.0, %v574
    %v576 = vpop.f32.mrf.mxu0
    %577 = vmatprep.mubr.f32.mxu0 0.0
    %578 = vmatmul.mubr.f32.gmra.mxu0 %v185
    %v579 = vpop.f32.mrf.mxu0
    %v580 = vadd.f32 0.0, %v579
    %v581 = vpop.f32.mrf.mxu0
    %582 = vmatprep.mubr.f32.mxu0 0.0
    %583 = vmatmul.mubr.f32.gmra.mxu0 %v186
    %v584 = vpop.f32.mrf.mxu0
    %v585 = vadd.f32 0.0, %v584
    %v586 = vpop.f32.mrf.mxu0
    %587 = vmatprep.mubr.f32.mxu0 0.0
    %588 = vmatmul.mubr.f32.gmra.mxu0 %v187
    %v589 = vpop.f32.mrf.mxu0
    %v590 = vadd.f32 0.0, %v589
    %v591 = vpop.f32.mrf.mxu0
    %592 = vmatprep.mubr.f32.mxu0 0.0
    %593 = vmatmul.mubr.f32.gmra.mxu0 %v188
    %v594 = vpop.f32.mrf.mxu0
    %v595 = vadd.f32 0.0, %v594
    %v596 = vpop.f32.mrf.mxu0
    %597 = vmatprep.mubr.f32.mxu0 0.0
    %598 = vmatmul.mubr.f32.gmra.mxu0 %v189
    %v599 = vpop.f32.mrf.mxu0
    %v600 = vadd.f32 0.0, %v599
    %v601 = vpop.f32.mrf.mxu0
    %602 = vmatprep.mubr.f32.mxu0 0.0
    %603 = vmatmul.mubr.f32.gmra.mxu0 %v190
    %v604 = vpop.f32.mrf.mxu0
    %v605 = vadd.f32 0.0, %v604
    %v606 = vpop.f32.mrf.mxu0
    %607 = vmatprep.mubr.f32.mxu0 0.0
    %608 = vmatmul.mubr.f32.gmra.mxu0 %v191
    %v609 = vpop.f32.mrf.mxu0
    %v610 = vadd.f32 0.0, %v609
    %v611 = vpop.f32.mrf.mxu0
    %612 = vmatprep.mubr.f32.mxu0 0.0
    %613 = vmatmul.mubr.f32.gmra.mxu0 %v192
    %v614 = vpop.f32.mrf.mxu0
    %v615 = vadd.f32 0.0, %v614
    %v616 = vpop.f32.mrf.mxu0
    %617 = vmatprep.mubr.f32.mxu0 0.0
    %618 = vmatmul.mubr.f32.gmra.mxu0 %v193
    %v619 = vpop.f32.mrf.mxu0
    %v620 = vadd.f32 0.0, %v619
    %v621 = vpop.f32.mrf.mxu0
    %622 = vmatprep.mubr.f32.mxu0 0.0
    %623 = vmatmul.mubr.f32.gmra.mxu0 %v194
    %v624 = vpop.f32.mrf.mxu0
    %v625 = vadd.f32 0.0, %v624
    %v626 = vpop.f32.mrf.mxu0
    %627 = vmatprep.mubr.f32.mxu0 0.0
    %628 = vmatmul.mubr.f32.gmra.mxu0 %v195
    %v629 = vpop.f32.mrf.mxu0
    %v630 = vadd.f32 0.0, %v629
    %v631 = vpop.f32.mrf.mxu0
    %632 = vmatprep.mubr.f32.mxu0 0.0
    %633 = vmatmul.mubr.f32.gmra.mxu0 %v196
    %v634 = vpop.f32.mrf.mxu0
    %v635 = vadd.f32 0.0, %v634
    %v636 = vpop.f32.mrf.mxu0
    %637 = vmatprep.mubr.f32.mxu0 0.0
    %638 = vmatmul.mubr.f32.gmra.mxu0 %v197
    %v639 = vpop.f32.mrf.mxu0
    %v640 = vadd.f32 0.0, %v639
    %v641 = vpop.f32.mrf.mxu0
    %642 = vmatprep.mubr.f32.mxu0 0.0
    %643 = vmatmul.mubr.f32.gmra.mxu0 %v198
    %v644 = vpop.f32.mrf.mxu0
    %v645 = vadd.f32 0.0, %v644
    %v646 = vpop.f32.mrf.mxu0
    %647 = vmatprep.mubr.f32.mxu0 0.0
    %648 = vmatmul.mubr.f32.gmra.mxu0 %v199
    %v649 = vpop.f32.mrf.mxu0
    %v650 = vadd.f32 0.0, %v649
    %v651 = vpop.f32.mrf.mxu0
    %652 = vmatprep.mubr.f32.mxu0 0.0
    %653 = vmatmul.mubr.f32.gmra.mxu0 %v200
    %v654 = vpop.f32.mrf.mxu0
    %v655 = vadd.f32 0.0, %v654
    %v656 = vpop.f32.mrf.mxu0
    %657 = vmatprep.mubr.f32.mxu0 0.0
    %658 = vmatmul.mubr.f32.gmra.mxu0 %v201
    %v659 = vpop.f32.mrf.mxu0
    %v660 = vadd.f32 0.0, %v659
    %v661 = vpop.f32.mrf.mxu0
    %662 = vmatprep.mubr.f32.mxu0 0.0
    %663 = vmatmul.mubr.f32.gmra.mxu0 %v202
    %v664 = vpop.f32.mrf.mxu0
    %v665 = vadd.f32 0.0, %v664
    %v666 = vpop.f32.mrf.mxu0
    %667 = vdwg.mxu0
    %v668 = vadd.f32 %v203, %v350
    %v669 = vadd.f32 %v204, %v355
    %v670 = vadd.f32 %v205, %v360
    %v671 = vadd.f32 %v206, %v365
    %v672 = vadd.f32 %v207, %v370
    %v673 = vadd.f32 %v208, %v375
    %v674 = vadd.f32 %v209, %v380
    %v675 = vadd.f32 %v210, %v385
    %v676 = vadd.f32 %v211, %v390
    %v677 = vadd.f32 %v212, %v395
    %v678 = vadd.f32 %v213, %v400
    %v679 = vadd.f32 %v214, %v405
    %v680 = vadd.f32 %v215, %v410
    %v681 = vadd.f32 %v216, %v415
    %v682 = vadd.f32 %v217, %v420
    %v683 = vadd.f32 %v218, %v425
    %v684 = vadd.f32 %v219, %v430
    %v685 = vadd.f32 %v220, %v435
    %v686 = vadd.f32 %v221, %v440
    %v687 = vadd.f32 %v222, %v445
    %v688 = vadd.f32 %v223, %v450
    %v689 = vadd.f32 %v224, %v455
    %v690 = vadd.f32 %v225, %v460
    %v691 = vadd.f32 %v226, %v465
    %v692 = vadd.f32 %v227, %v470
    %v693 = vadd.f32 %v228, %v475
    %v694 = vadd.f32 %v229, %v480
    %v695 = vadd.f32 %v230, %v485
    %v696 = vadd.f32 %v231, %v490
    %v697 = vadd.f32 %v232, %v495
    %v698 = vadd.f32 %v233, %v500
    %v699 = vadd.f32 %v234, %v505
    %v700 = vadd.f32 %v235, %v510
    %v701 = vadd.f32 %v236, %v515
    %v702 = vadd.f32 %v237, %v520
    %v703 = vadd.f32 %v238, %v525
    %v704 = vadd.f32 %v239, %v530
    %v705 = vadd.f32 %v240, %v535
    %v706 = vadd.f32 %v241, %v540
    %v707 = vadd.f32 %v242, %v545
    %v708 = vadd.f32 %v243, %v550
    %v709 = vadd.f32 %v244, %v555
    %v710 = vadd.f32 %v245, %v560
    %v711 = vadd.f32 %v246, %v565
    %v712 = vadd.f32 %v247, %v570
    %v713 = vadd.f32 %v248, %v575
    %v714 = vadd.f32 %v249, %v580
    %v715 = vadd.f32 %v250, %v585
    %v716 = vadd.f32 %v251, %v590
    %v717 = vadd.f32 %v252, %v595
    %v718 = vadd.f32 %v253, %v600
    %v719 = vadd.f32 %v254, %v605
    %v720 = vadd.f32 %v255, %v610
    %v721 = vadd.f32 %v256, %v615
    %v722 = vadd.f32 %v257, %v620
    %v723 = vadd.f32 %v258, %v625
    %v724 = vadd.f32 %v259, %v630
    %v725 = vadd.f32 %v260, %v635
    %v726 = vadd.f32 %v261, %v640
    %v727 = vadd.f32 %v262, %v645
    %v728 = vadd.f32 %v263, %v650
    %v729 = vadd.f32 %v264, %v655
    %v730 = vadd.f32 %v265, %v660
    %v731 = vadd.f32 %v266, %v665
    %732 = vst [vmem:[#allocation2] sm:$0xff] %v668
    %733 = vst [vmem:[#allocation2 + $0x8] sm:$0xff] %v669
    %734 = vst [vmem:[#allocation2 + $0x10] sm:$0xff] %v670
    %735 = vst [vmem:[#allocation2 + $0x18] sm:$0xff] %v671
    %736 = vst [vmem:[#allocation2 + $0x20] sm:$0xff] %v672
    %737 = vst [vmem:[#allocation2 + $0x28] sm:$0xff] %v673
    %738 = vst [vmem:[#allocation2 + $0x30] sm:$0xff] %v674
    %739 = vst [vmem:[#allocation2 + $0x38] sm:$0xff] %v675
    %740 = vst [vmem:[#allocation2 + $0x40] sm:$0xff] %v676
    %741 = vst [vmem:[#allocation2 + $0x48] sm:$0xff] %v677
    %742 = vst [vmem:[#allocation2 + $0x50] sm:$0xff] %v678
    %743 = vst [vmem:[#allocation2 + $0x58] sm:$0xff] %v679
    %744 = vst [vmem:[#allocation2 + $0x60] sm:$0xff] %v680
    %745 = vst [vmem:[#allocation2 + $0x68] sm:$0xff] %v681
    %746 = vst [vmem:[#allocation2 + $0x70] sm:$0xff] %v682
    %747 = vst [vmem:[#allocation2 + $0x78] sm:$0xff] %v683
    %748 = vst [vmem:[#allocation2 + $0x80] sm:$0xff] %v684
    %749 = vst [vmem:[#allocation2 + $0x88] sm:$0xff] %v685
    %750 = vst [vmem:[#allocation2 + $0x90] sm:$0xff] %v686
    %751 = vst [vmem:[#allocation2 + $0x98] sm:$0xff] %v687
    %752 = vst [vmem:[#allocation2 + $0xa0] sm:$0xff] %v688
    %753 = vst [vmem:[#allocation2 + $0xa8] sm:$0xff] %v689
    %754 = vst [vmem:[#allocation2 + $0xb0] sm:$0xff] %v690
    %755 = vst [vmem:[#allocation2 + $0xb8] sm:$0xff] %v691
    %756 = vst [vmem:[#allocation2 + $0xc0] sm:$0xff] %v692
    %757 = vst [vmem:[#allocation2 + $0xc8] sm:$0xff] %v693
    %758 = vst [vmem:[#allocation2 + $0xd0] sm:$0xff] %v694
    %759 = vst [vmem:[#allocation2 + $0xd8] sm:$0xff] %v695
    %760 = vst [vmem:[#allocation2 + $0xe0] sm:$0xff] %v696
    %761 = vst [vmem:[#allocation2 + $0xe8] sm:$0xff] %v697
    %762 = vst [vmem:[#allocation2 + $0xf0] sm:$0xff] %v698
    %763 = vst [vmem:[#allocation2 + $0xf8] sm:$0xff] %v699
    %764 = vst [vmem:[#allocation2 + $0x100] sm:$0xff] %v700
    %765 = vst [vmem:[#allocation2 + $0x108] sm:$0xff] %v701
    %766 = vst [vmem:[#allocation2 + $0x110] sm:$0xff] %v702
    %767 = vst [vmem:[#allocation2 + $0x118] sm:$0xff] %v703
    %768 = vst [vmem:[#allocation2 + $0x120] sm:$0xff] %v704
    %769 = vst [vmem:[#allocation2 + $0x128] sm:$0xff] %v705
    %770 = vst [vmem:[#allocation2 + $0x130] sm:$0xff] %v706
    %771 = vst [vmem:[#allocation2 + $0x138] sm:$0xff] %v707
    %772 = vst [vmem:[#allocation2 + $0x140] sm:$0xff] %v708
    %773 = vst [vmem:[#allocation2 + $0x148] sm:$0xff] %v709
    %774 = vst [vmem:[#allocation2 + $0x150] sm:$0xff] %v710
    %775 = vst [vmem:[#allocation2 + $0x158] sm:$0xff] %v711
    %776 = vst [vmem:[#allocation2 + $0x160] sm:$0xff] %v712
    %777 = vst [vmem:[#allocation2 + $0x168] sm:$0xff] %v713
    %778 = vst [vmem:[#allocation2 + $0x170] sm:$0xff] %v714
    %779 = vst [vmem:[#allocation2 + $0x178] sm:$0xff] %v715
    %780 = vst [vmem:[#allocation2 + $0x180] sm:$0xff] %v716
    %781 = vst [vmem:[#allocation2 + $0x188] sm:$0xff] %v717
    %782 = vst [vmem:[#allocation2 + $0x190] sm:$0xff] %v718
    %783 = vst [vmem:[#allocation2 + $0x198] sm:$0xff] %v719
    %784 = vst [vmem:[#allocation2 + $0x1a0] sm:$0xff] %v720
    %785 = vst [vmem:[#allocation2 + $0x1a8] sm:$0xff] %v721
    %786 = vst [vmem:[#allocation2 + $0x1b0] sm:$0xff] %v722
    %787 = vst [vmem:[#allocation2 + $0x1b8] sm:$0xff] %v723
    %788 = vst [vmem:[#allocation2 + $0x1c0] sm:$0xff] %v724
    %789 = vst [vmem:[#allocation2 + $0x1c8] sm:$0xff] %v725
    %790 = vst [vmem:[#allocation2 + $0x1d0] sm:$0xff] %v726
    %791 = vst [vmem:[#allocation2 + $0x1d8] sm:$0xff] %v727
    %792 = vst [vmem:[#allocation2 + $0x1e0] sm:$0xff] %v728
    %793 = vst [vmem:[#allocation2 + $0x1e8] sm:$0xff] %v729
    %794 = vst [vmem:[#allocation2 + $0x1f0] sm:$0xff] %v730
    %795 = vst [vmem:[#allocation2 + $0x1f8] sm:$0xff] %v731
    %p796 = scmp.eq.s32.totalorder 0, 0
    %p797 = pnand %p796, %p71
    %p798 = pneg %p797
    // Predicated region
    $region42: #{tpu_custom_call.1} parent=1 // pred_check
      _
    $region43: #{tpu_custom_call.1} parent=1 // pred_check_branch
      %800 = sbr.rel (%p797) target = $region45
    $region44: #{tpu_custom_call.1} parent=1 // pred_region
      %vm801 = vcmask 64512
      %802 = vst.msk [vmem:[#allocation3] sm:$0xff] %vm801, 0.0
      %803 = vst.msk [vmem:[#allocation3 + $0x8] sm:$0xff] %vm801, 0.0
      %804 = vst.msk [vmem:[#allocation3 + $0x10] sm:$0xff] %vm801, 0.0
      %805 = vst.msk [vmem:[#allocation3 + $0x18] sm:$0xff] %vm801, 0.0
      %806 = vst.msk [vmem:[#allocation3 + $0x20] sm:$0xff] %vm801, 0.0
      %807 = vst.msk [vmem:[#allocation3 + $0x28] sm:$0xff] %vm801, 0.0
      %808 = vst.msk [vmem:[#allocation3 + $0x30] sm:$0xff] %vm801, 0.0
      %809 = vst.msk [vmem:[#allocation3 + $0x38] sm:$0xff] %vm801, 0.0
      %810 = vst.msk [vmem:[#allocation3 + $0x40] sm:$0xff] %vm801, 0.0
      %811 = vst.msk [vmem:[#allocation3 + $0x48] sm:$0xff] %vm801, 0.0
      %812 = vst.msk [vmem:[#allocation3 + $0x50] sm:$0xff] %vm801, 0.0
      %813 = vst.msk [vmem:[#allocation3 + $0x58] sm:$0xff] %vm801, 0.0
      %814 = vst.msk [vmem:[#allocation3 + $0x60] sm:$0xff] %vm801, 0.0
      %815 = vst.msk [vmem:[#allocation3 + $0x68] sm:$0xff] %vm801, 0.0
      %816 = vst.msk [vmem:[#allocation3 + $0x70] sm:$0xff] %vm801, 0.0
      %817 = vst.msk [vmem:[#allocation3 + $0x78] sm:$0xff] %vm801, 0.0
      %818 = vst.msk [vmem:[#allocation3 + $0x80] sm:$0xff] %vm801, 0.0
      %819 = vst.msk [vmem:[#allocation3 + $0x88] sm:$0xff] %vm801, 0.0
      %820 = vst.msk [vmem:[#allocation3 + $0x90] sm:$0xff] %vm801, 0.0
      %821 = vst.msk [vmem:[#allocation3 + $0x98] sm:$0xff] %vm801, 0.0
      %822 = vst.msk [vmem:[#allocation3 + $0xa0] sm:$0xff] %vm801, 0.0
      %823 = vst.msk [vmem:[#allocation3 + $0xa8] sm:$0xff] %vm801, 0.0
      %824 = vst.msk [vmem:[#allocation3 + $0xb0] sm:$0xff] %vm801, 0.0
      %825 = vst.msk [vmem:[#allocation3 + $0xb8] sm:$0xff] %vm801, 0.0
      %826 = vst.msk [vmem:[#allocation3 + $0xc0] sm:$0xff] %vm801, 0.0
      %827 = vst.msk [vmem:[#allocation3 + $0xc8] sm:$0xff] %vm801, 0.0
      %828 = vst.msk [vmem:[#allocation3 + $0xd0] sm:$0xff] %vm801, 0.0
      %829 = vst.msk [vmem:[#allocation3 + $0xd8] sm:$0xff] %vm801, 0.0
      %830 = vst.msk [vmem:[#allocation3 + $0xe0] sm:$0xff] %vm801, 0.0
      %831 = vst.msk [vmem:[#allocation3 + $0xe8] sm:$0xff] %vm801, 0.0
      %832 = vst.msk [vmem:[#allocation3 + $0xf0] sm:$0xff] %vm801, 0.0
      %833 = vst.msk [vmem:[#allocation3 + $0xf8] sm:$0xff] %vm801, 0.0
      %834 = vst.msk [vmem:[#allocation3 + $0x100] sm:$0xff] %vm801, 0.0
      %835 = vst.msk [vmem:[#allocation3 + $0x108] sm:$0xff] %vm801, 0.0
      %836 = vst.msk [vmem:[#allocation3 + $0x110] sm:$0xff] %vm801, 0.0
      %837 = vst.msk [vmem:[#allocation3 + $0x118] sm:$0xff] %vm801, 0.0
      %838 = vst.msk [vmem:[#allocation3 + $0x120] sm:$0xff] %vm801, 0.0
      %839 = vst.msk [vmem:[#allocation3 + $0x128] sm:$0xff] %vm801, 0.0
      %840 = vst.msk [vmem:[#allocation3 + $0x130] sm:$0xff] %vm801, 0.0
      %841 = vst.msk [vmem:[#allocation3 + $0x138] sm:$0xff] %vm801, 0.0
      %842 = vst.msk [vmem:[#allocation3 + $0x140] sm:$0xff] %vm801, 0.0
      %843 = vst.msk [vmem:[#allocation3 + $0x148] sm:$0xff] %vm801, 0.0
      %844 = vst.msk [vmem:[#allocation3 + $0x150] sm:$0xff] %vm801, 0.0
      %845 = vst.msk [vmem:[#allocation3 + $0x158] sm:$0xff] %vm801, 0.0
      %846 = vst.msk [vmem:[#allocation3 + $0x160] sm:$0xff] %vm801, 0.0
      %847 = vst.msk [vmem:[#allocation3 + $0x168] sm:$0xff] %vm801, 0.0
      %848 = vst.msk [vmem:[#allocation3 + $0x170] sm:$0xff] %vm801, 0.0
      %849 = vst.msk [vmem:[#allocation3 + $0x178] sm:$0xff] %vm801, 0.0
      %850 = vst.msk [vmem:[#allocation3 + $0x180] sm:$0xff] %vm801, 0.0
      %851 = vst.msk [vmem:[#allocation3 + $0x188] sm:$0xff] %vm801, 0.0
      %852 = vst.msk [vmem:[#allocation3 + $0x190] sm:$0xff] %vm801, 0.0
      %853 = vst.msk [vmem:[#allocation3 + $0x198] sm:$0xff] %vm801, 0.0
      %854 = vst.msk [vmem:[#allocation3 + $0x1a0] sm:$0xff] %vm801, 0.0
      %855 = vst.msk [vmem:[#allocation3 + $0x1a8] sm:$0xff] %vm801, 0.0
      %856 = vst.msk [vmem:[#allocation3 + $0x1b0] sm:$0xff] %vm801, 0.0
      %857 = vst.msk [vmem:[#allocation3 + $0x1b8] sm:$0xff] %vm801, 0.0
      %858 = vst.msk [vmem:[#allocation3 + $0x1c0] sm:$0xff] %vm801, 0.0
      %859 = vst.msk [vmem:[#allocation3 + $0x1c8] sm:$0xff] %vm801, 0.0
      %860 = vst.msk [vmem:[#allocation3 + $0x1d0] sm:$0xff] %vm801, 0.0
      %861 = vst.msk [vmem:[#allocation3 + $0x1d8] sm:$0xff] %vm801, 0.0
      %862 = vst.msk [vmem:[#allocation3 + $0x1e0] sm:$0xff] %vm801, 0.0
      %863 = vst.msk [vmem:[#allocation3 + $0x1e8] sm:$0xff] %vm801, 0.0
      %864 = vst.msk [vmem:[#allocation3 + $0x1f0] sm:$0xff] %vm801, 0.0
      %865 = vst.msk [vmem:[#allocation3 + $0x1f8] sm:$0xff] %vm801, 0.0
    $region45: #{tpu_custom_call.1} parent=1 // pred_fallthru
      _
    // Predicated region
    $region46: #{tpu_custom_call.1} parent=1 // pred_check
      %p866 = pneg %p796
    $region47: #{tpu_custom_call.1} parent=1 // pred_check_branch
      %868 = sbr.rel (%p866) target = $region49
    $region48: #{tpu_custom_call.1} parent=1 // pred_region
      %s869 = smul.u32 0, 128
      %s870 = sshra.s32 %s869, 7
      %s871 = sand.u32 %s869, 127
      %s872 = scalar_lea.vmem [#allocation9], %s870
      %v873 = vld [vmem:[%s872] sm:$0xff]
      %v874 = vld [vmem:[#allocation3] sm:$0xff]
      %v875 = vld [vmem:[#allocation3 + $0x8] sm:$0xff]
      %v876 = vld [vmem:[#allocation3 + $0x10] sm:$0xff]
      %v877 = vld [vmem:[#allocation3 + $0x18] sm:$0xff]
      %v878 = vld [vmem:[#allocation3 + $0x20] sm:$0xff]
      %v879 = vld [vmem:[#allocation3 + $0x28] sm:$0xff]
      %v880 = vld [vmem:[#allocation3 + $0x30] sm:$0xff]
      %v881 = vld [vmem:[#allocation3 + $0x38] sm:$0xff]
      %v882 = vld [vmem:[#allocation3 + $0x40] sm:$0xff]
      %v883 = vld [vmem:[#allocation3 + $0x48] sm:$0xff]
      %v884 = vld [vmem:[#allocation3 + $0x50] sm:$0xff]
      %v885 = vld [vmem:[#allocation3 + $0x58] sm:$0xff]
      %v886 = vld [vmem:[#allocation3 + $0x60] sm:$0xff]
      %v887 = vld [vmem:[#allocation3 + $0x68] sm:$0xff]
      %v888 = vld [vmem:[#allocation3 + $0x70] sm:$0xff]
      %v889 = vld [vmem:[#allocation3 + $0x78] sm:$0xff]
      %v890 = vld [vmem:[#allocation3 + $0x80] sm:$0xff]
      %v891 = vld [vmem:[#allocation3 + $0x88] sm:$0xff]
      %v892 = vld [vmem:[#allocation3 + $0x90] sm:$0xff]
      %v893 = vld [vmem:[#allocation3 + $0x98] sm:$0xff]
      %v894 = vld [vmem:[#allocation3 + $0xa0] sm:$0xff]
      %v895 = vld [vmem:[#allocation3 + $0xa8] sm:$0xff]
      %v896 = vld [vmem:[#allocation3 + $0xb0] sm:$0xff]
      %v897 = vld [vmem:[#allocation3 + $0xb8] sm:$0xff]
      %v898 = vld [vmem:[#allocation3 + $0xc0] sm:$0xff]
      %v899 = vld [vmem:[#allocation3 + $0xc8] sm:$0xff]
      %v900 = vld [vmem:[#allocation3 + $0xd0] sm:$0xff]
      %v901 = vld [vmem:[#allocation3 + $0xd8] sm:$0xff]
      %v902 = vld [vmem:[#allocation3 + $0xe0] sm:$0xff]
      %v903 = vld [vmem:[#allocation3 + $0xe8] sm:$0xff]
      %v904 = vld [vmem:[#allocation3 + $0xf0] sm:$0xff]
      %v905 = vld [vmem:[#allocation3 + $0xf8] sm:$0xff]
      %v906 = vld [vmem:[#allocation3 + $0x100] sm:$0xff]
      %v907 = vld [vmem:[#allocation3 + $0x108] sm:$0xff]
      %v908 = vld [vmem:[#allocation3 + $0x110] sm:$0xff]
      %v909 = vld [vmem:[#allocation3 + $0x118] sm:$0xff]
      %v910 = vld [vmem:[#allocation3 + $0x120] sm:$0xff]
      %v911 = vld [vmem:[#allocation3 + $0x128] sm:$0xff]
      %v912 = vld [vmem:[#allocation3 + $0x130] sm:$0xff]
      %v913 = vld [vmem:[#allocation3 + $0x138] sm:$0xff]
      %v914 = vld [vmem:[#allocation3 + $0x140] sm:$0xff]
      %v915 = vld [vmem:[#allocation3 + $0x148] sm:$0xff]
      %v916 = vld [vmem:[#allocation3 + $0x150] sm:$0xff]
      %v917 = vld [vmem:[#allocation3 + $0x158] sm:$0xff]
      %v918 = vld [vmem:[#allocation3 + $0x160] sm:$0xff]
      %v919 = vld [vmem:[#allocation3 + $0x168] sm:$0xff]
      %v920 = vld [vmem:[#allocation3 + $0x170] sm:$0xff]
      %v921 = vld [vmem:[#allocation3 + $0x178] sm:$0xff]
      %v922 = vld [vmem:[#allocation3 + $0x180] sm:$0xff]
      %v923 = vld [vmem:[#allocation3 + $0x188] sm:$0xff]
      %v924 = vld [vmem:[#allocation3 + $0x190] sm:$0xff]
      %v925 = vld [vmem:[#allocation3 + $0x198] sm:$0xff]
      %v926 = vld [vmem:[#allocation3 + $0x1a0] sm:$0xff]
      %v927 = vld [vmem:[#allocation3 + $0x1a8] sm:$0xff]
      %v928 = vld [vmem:[#allocation3 + $0x1b0] sm:$0xff]
      %v929 = vld [vmem:[#allocation3 + $0x1b8] sm:$0xff]
      %v930 = vld [vmem:[#allocation3 + $0x1c0] sm:$0xff]
      %v931 = vld [vmem:[#allocation3 + $0x1c8] sm:$0xff]
      %v932 = vld [vmem:[#allocation3 + $0x1d0] sm:$0xff]
      %v933 = vld [vmem:[#allocation3 + $0x1d8] sm:$0xff]
      %v934 = vld [vmem:[#allocation3 + $0x1e0] sm:$0xff]
      %v935 = vld [vmem:[#allocation3 + $0x1e8] sm:$0xff]
      %v936 = vld [vmem:[#allocation3 + $0x1f0] sm:$0xff]
      %v937 = vld [vmem:[#allocation3 + $0x1f8] sm:$0xff]
      %938 = vmatprep.subr.mxu0 0.0
      %939 = vmatpush1.xpose.msra.mxu0 0.0
      %940 = vmatprep.subr.mxu0 0.0
      %941 = vmatpush1.xpose.msra.mxu0 0.0
      %942 = vmatprep.subr.mxu0 0.0
      %943 = vmatpush1.xpose.msra.mxu0 0.0
      %944 = vmatprep.subr.mxu0 0.0
      %945 = vmatpush1.xpose.msra.mxu0 0.0
      %946 = vmatprep.subr.mxu0 0.0
      %947 = vmatpush1.xpose.msra.mxu0 0.0
      %948 = vmatprep.subr.mxu0 0.0
      %949 = vmatpush1.xpose.msra.mxu0 0.0
      %950 = vmatprep.subr.mxu0 0.0
      %951 = vmatpush1.xpose.msra.mxu0 0.0
      %952 = vmatprep.subr.mxu0 0.0
      %953 = vmatpush1.xpose.msra.mxu0 0.0
      %954 = vmatprep.subr.mxu0 0.0
      %955 = vmatpush1.xpose.msra.mxu0 0.0
      %956 = vmatprep.subr.mxu0 0.0
      %957 = vmatpush1.xpose.msra.mxu0 0.0
      %958 = vmatprep.subr.mxu0 0.0
      %959 = vmatpush1.xpose.msra.mxu0 0.0
      %960 = vmatprep.subr.mxu0 0.0
      %961 = vmatpush1.xpose.msra.mxu0 0.0
      %962 = vmatprep.subr.mxu0 0.0
      %963 = vmatpush1.xpose.msra.mxu0 0.0
      %964 = vmatprep.subr.mxu0 0.0
      %965 = vmatpush1.xpose.msra.mxu0 0.0
      %966 = vmatprep.subr.mxu0 0.0
      %967 = vmatpush1.xpose.msra.mxu0 0.0
      %968 = vmatprep.subr.mxu0 0.0
      %969 = vmatpush1.xpose.msra.mxu0 %v873
      %970 = vmatprep.subr.mxu0 0.0
      %971 = vmatpush2.xpose.msra.mxu0 0.0
      %972 = vmatprep.subr.mxu0 0.0
      %973 = vmatpush2.xpose.msra.mxu0 0.0
      %974 = vmatprep.subr.mxu0 0.0
      %975 = vmatpush2.xpose.msra.mxu0 0.0
      %976 = vmatprep.subr.mxu0 0.0
      %977 = vmatpush2.xpose.msra.mxu0 0.0
      %978 = vmatprep.subr.mxu0 0.0
      %979 = vmatpush2.xpose.msra.mxu0 0.0
      %980 = vmatprep.subr.mxu0 0.0
      %981 = vmatpush2.xpose.msra.mxu0 0.0
      %982 = vmatprep.subr.mxu0 0.0
      %983 = vmatpush2.xpose.msra.mxu0 0.0
      %984 = vmatprep.subr.mxu0 0.0
      %985 = vmatpush2.xpose.msra.mxu0 0.0
      %986 = vmatprep.subr.mxu0 0.0
      %987 = vmatpush2.xpose.msra.mxu0 0.0
      %988 = vmatprep.subr.mxu0 0.0
      %989 = vmatpush2.xpose.msra.mxu0 0.0
      %990 = vmatprep.subr.mxu0 0.0
      %991 = vmatpush2.xpose.msra.mxu0 0.0
      %992 = vmatprep.subr.mxu0 0.0
      %993 = vmatpush2.xpose.msra.mxu0 0.0
      %994 = vmatprep.subr.mxu0 0.0
      %995 = vmatpush2.xpose.msra.mxu0 0.0
      %996 = vmatprep.subr.mxu0 0.0
      %997 = vmatpush2.xpose.msra.mxu0 0.0
      %998 = vmatprep.subr.mxu0 0.0
      %999 = vmatpush2.xpose.msra.mxu0 0.0
      %1000 = vmatprep.subr.mxu0 0.0
      %1001 = vmatpush2.xpose.msra.mxu0 0.0
      %1002 = vmatprep.mubr.f32.mxu0 0.0
      %1003 = vmatmul.mubr.f32.gmra.mxu0 %v139
      %v1004 = vpop.f32.mrf.mxu0
      %v1005 = vadd.f32 0.0, %v1004
      %v1006 = vpop.f32.mrf.mxu0
      %1007 = vmatprep.mubr.f32.mxu0 0.0
      %1008 = vmatmul.mubr.f32.gmra.mxu0 %v140
      %v1009 = vpop.f32.mrf.mxu0
      %v1010 = vadd.f32 0.0, %v1009
      %v1011 = vpop.f32.mrf.mxu0
      %1012 = vmatprep.mubr.f32.mxu0 0.0
      %1013 = vmatmul.mubr.f32.gmra.mxu0 %v141
      %v1014 = vpop.f32.mrf.mxu0
      %v1015 = vadd.f32 0.0, %v1014
      %v1016 = vpop.f32.mrf.mxu0
      %1017 = vmatprep.mubr.f32.mxu0 0.0
      %1018 = vmatmul.mubr.f32.gmra.mxu0 %v142
      %v1019 = vpop.f32.mrf.mxu0
      %v1020 = vadd.f32 0.0, %v1019
      %v1021 = vpop.f32.mrf.mxu0
      %1022 = vmatprep.mubr.f32.mxu0 0.0
      %1023 = vmatmul.mubr.f32.gmra.mxu0 %v143
      %v1024 = vpop.f32.mrf.mxu0
      %v1025 = vadd.f32 0.0, %v1024
      %v1026 = vpop.f32.mrf.mxu0
      %1027 = vmatprep.mubr.f32.mxu0 0.0
      %1028 = vmatmul.mubr.f32.gmra.mxu0 %v144
      %v1029 = vpop.f32.mrf.mxu0
      %v1030 = vadd.f32 0.0, %v1029
      %v1031 = vpop.f32.mrf.mxu0
      %1032 = vmatprep.mubr.f32.mxu0 0.0
      %1033 = vmatmul.mubr.f32.gmra.mxu0 %v145
      %v1034 = vpop.f32.mrf.mxu0
      %v1035 = vadd.f32 0.0, %v1034
      %v1036 = vpop.f32.mrf.mxu0
      %1037 = vmatprep.mubr.f32.mxu0 0.0
      %1038 = vmatmul.mubr.f32.gmra.mxu0 %v146
      %v1039 = vpop.f32.mrf.mxu0
      %v1040 = vadd.f32 0.0, %v1039
      %v1041 = vpop.f32.mrf.mxu0
      %1042 = vmatprep.mubr.f32.mxu0 0.0
      %1043 = vmatmul.mubr.f32.gmra.mxu0 %v147
      %v1044 = vpop.f32.mrf.mxu0
      %v1045 = vadd.f32 0.0, %v1044
      %v1046 = vpop.f32.mrf.mxu0
      %1047 = vmatprep.mubr.f32.mxu0 0.0
      %1048 = vmatmul.mubr.f32.gmra.mxu0 %v148
      %v1049 = vpop.f32.mrf.mxu0
      %v1050 = vadd.f32 0.0, %v1049
      %v1051 = vpop.f32.mrf.mxu0
      %1052 = vmatprep.mubr.f32.mxu0 0.0
      %1053 = vmatmul.mubr.f32.gmra.mxu0 %v149
      %v1054 = vpop.f32.mrf.mxu0
      %v1055 = vadd.f32 0.0, %v1054
      %v1056 = vpop.f32.mrf.mxu0
      %1057 = vmatprep.mubr.f32.mxu0 0.0
      %1058 = vmatmul.mubr.f32.gmra.mxu0 %v150
      %v1059 = vpop.f32.mrf.mxu0
      %v1060 = vadd.f32 0.0, %v1059
      %v1061 = vpop.f32.mrf.mxu0
      %1062 = vmatprep.mubr.f32.mxu0 0.0
      %1063 = vmatmul.mubr.f32.gmra.mxu0 %v151
      %v1064 = vpop.f32.mrf.mxu0
      %v1065 = vadd.f32 0.0, %v1064
      %v1066 = vpop.f32.mrf.mxu0
      %1067 = vmatprep.mubr.f32.mxu0 0.0
      %1068 = vmatmul.mubr.f32.gmra.mxu0 %v152
      %v1069 = vpop.f32.mrf.mxu0
      %v1070 = vadd.f32 0.0, %v1069
      %v1071 = vpop.f32.mrf.mxu0
      %1072 = vmatprep.mubr.f32.mxu0 0.0
      %1073 = vmatmul.mubr.f32.gmra.mxu0 %v153
      %v1074 = vpop.f32.mrf.mxu0
      %v1075 = vadd.f32 0.0, %v1074
      %v1076 = vpop.f32.mrf.mxu0
      %1077 = vmatprep.mubr.f32.mxu0 0.0
      %1078 = vmatmul.mubr.f32.gmra.mxu0 %v154
      %v1079 = vpop.f32.mrf.mxu0
      %v1080 = vadd.f32 0.0, %v1079
      %v1081 = vpop.f32.mrf.mxu0
      %1082 = vmatprep.mubr.f32.mxu0 0.0
      %1083 = vmatmul.mubr.f32.gmra.mxu0 %v155
      %v1084 = vpop.f32.mrf.mxu0
      %v1085 = vadd.f32 0.0, %v1084
      %v1086 = vpop.f32.mrf.mxu0
      %1087 = vmatprep.mubr.f32.mxu0 0.0
      %1088 = vmatmul.mubr.f32.gmra.mxu0 %v156
      %v1089 = vpop.f32.mrf.mxu0
      %v1090 = vadd.f32 0.0, %v1089
      %v1091 = vpop.f32.mrf.mxu0
      %1092 = vmatprep.mubr.f32.mxu0 0.0
      %1093 = vmatmul.mubr.f32.gmra.mxu0 %v157
      %v1094 = vpop.f32.mrf.mxu0
      %v1095 = vadd.f32 0.0, %v1094
      %v1096 = vpop.f32.mrf.mxu0
      %1097 = vmatprep.mubr.f32.mxu0 0.0
      %1098 = vmatmul.mubr.f32.gmra.mxu0 %v158
      %v1099 = vpop.f32.mrf.mxu0
      %v1100 = vadd.f32 0.0, %v1099
      %v1101 = vpop.f32.mrf.mxu0
      %1102 = vmatprep.mubr.f32.mxu0 0.0
      %1103 = vmatmul.mubr.f32.gmra.mxu0 %v159
      %v1104 = vpop.f32.mrf.mxu0
      %v1105 = vadd.f32 0.0, %v1104
      %v1106 = vpop.f32.mrf.mxu0
      %1107 = vmatprep.mubr.f32.mxu0 0.0
      %1108 = vmatmul.mubr.f32.gmra.mxu0 %v160
      %v1109 = vpop.f32.mrf.mxu0
      %v1110 = vadd.f32 0.0, %v1109
      %v1111 = vpop.f32.mrf.mxu0
      %1112 = vmatprep.mubr.f32.mxu0 0.0
      %1113 = vmatmul.mubr.f32.gmra.mxu0 %v161
      %v1114 = vpop.f32.mrf.mxu0
      %v1115 = vadd.f32 0.0, %v1114
      %v1116 = vpop.f32.mrf.mxu0
      %1117 = vmatprep.mubr.f32.mxu0 0.0
      %1118 = vmatmul.mubr.f32.gmra.mxu0 %v162
      %v1119 = vpop.f32.mrf.mxu0
      %v1120 = vadd.f32 0.0, %v1119
      %v1121 = vpop.f32.mrf.mxu0
      %1122 = vmatprep.mubr.f32.mxu0 0.0
      %1123 = vmatmul.mubr.f32.gmra.mxu0 %v163
      %v1124 = vpop.f32.mrf.mxu0
      %v1125 = vadd.f32 0.0, %v1124
      %v1126 = vpop.f32.mrf.mxu0
      %1127 = vmatprep.mubr.f32.mxu0 0.0
      %1128 = vmatmul.mubr.f32.gmra.mxu0 %v164
      %v1129 = vpop.f32.mrf.mxu0
      %v1130 = vadd.f32 0.0, %v1129
      %v1131 = vpop.f32.mrf.mxu0
      %1132 = vmatprep.mubr.f32.mxu0 0.0
      %1133 = vmatmul.mubr.f32.gmra.mxu0 %v165
      %v1134 = vpop.f32.mrf.mxu0
      %v1135 = vadd.f32 0.0, %v1134
      %v1136 = vpop.f32.mrf.mxu0
      %1137 = vmatprep.mubr.f32.mxu0 0.0
      %1138 = vmatmul.mubr.f32.gmra.mxu0 %v166
      %v1139 = vpop.f32.mrf.mxu0
      %v1140 = vadd.f32 0.0, %v1139
      %v1141 = vpop.f32.mrf.mxu0
      %1142 = vmatprep.mubr.f32.mxu0 0.0
      %1143 = vmatmul.mubr.f32.gmra.mxu0 %v167
      %v1144 = vpop.f32.mrf.mxu0
      %v1145 = vadd.f32 0.0, %v1144
      %v1146 = vpop.f32.mrf.mxu0
      %1147 = vmatprep.mubr.f32.mxu0 0.0
      %1148 = vmatmul.mubr.f32.gmra.mxu0 %v168
      %v1149 = vpop.f32.mrf.mxu0
      %v1150 = vadd.f32 0.0, %v1149
      %v1151 = vpop.f32.mrf.mxu0
      %1152 = vmatprep.mubr.f32.mxu0 0.0
      %1153 = vmatmul.mubr.f32.gmra.mxu0 %v169
      %v1154 = vpop.f32.mrf.mxu0
      %v1155 = vadd.f32 0.0, %v1154
      %v1156 = vpop.f32.mrf.mxu0
      %1157 = vmatprep.mubr.f32.mxu0 0.0
      %1158 = vmatmul.mubr.f32.gmra.mxu0 %v170
      %v1159 = vpop.f32.mrf.mxu0
      %v1160 = vadd.f32 0.0, %v1159
      %v1161 = vpop.f32.mrf.mxu0
      %1162 = vmatprep.mubr.f32.mxu0 0.0
      %1163 = vmatmul.mubr.f32.gmra.mxu0 %v171
      %v1164 = vpop.f32.mrf.mxu0
      %v1165 = vadd.f32 0.0, %v1164
      %v1166 = vpop.f32.mrf.mxu0
      %1167 = vmatprep.mubr.f32.mxu0 0.0
      %1168 = vmatmul.mubr.f32.gmra.mxu0 %v172
      %v1169 = vpop.f32.mrf.mxu0
      %v1170 = vadd.f32 0.0, %v1169
      %v1171 = vpop.f32.mrf.mxu0
      %1172 = vmatprep.mubr.f32.mxu0 0.0
      %1173 = vmatmul.mubr.f32.gmra.mxu0 %v173
      %v1174 = vpop.f32.mrf.mxu0
      %v1175 = vadd.f32 0.0, %v1174
      %v1176 = vpop.f32.mrf.mxu0
      %1177 = vmatprep.mubr.f32.mxu0 0.0
      %1178 = vmatmul.mubr.f32.gmra.mxu0 %v174
      %v1179 = vpop.f32.mrf.mxu0
      %v1180 = vadd.f32 0.0, %v1179
      %v1181 = vpop.f32.mrf.mxu0
      %1182 = vmatprep.mubr.f32.mxu0 0.0
      %1183 = vmatmul.mubr.f32.gmra.mxu0 %v175
      %v1184 = vpop.f32.mrf.mxu0
      %v1185 = vadd.f32 0.0, %v1184
      %v1186 = vpop.f32.mrf.mxu0
      %1187 = vmatprep.mubr.f32.mxu0 0.0
      %1188 = vmatmul.mubr.f32.gmra.mxu0 %v176
      %v1189 = vpop.f32.mrf.mxu0
      %v1190 = vadd.f32 0.0, %v1189
      %v1191 = vpop.f32.mrf.mxu0
      %1192 = vmatprep.mubr.f32.mxu0 0.0
      %1193 = vmatmul.mubr.f32.gmra.mxu0 %v177
      %v1194 = vpop.f32.mrf.mxu0
      %v1195 = vadd.f32 0.0, %v1194
      %v1196 = vpop.f32.mrf.mxu0
      %1197 = vmatprep.mubr.f32.mxu0 0.0
      %1198 = vmatmul.mubr.f32.gmra.mxu0 %v178
      %v1199 = vpop.f32.mrf.mxu0
      %v1200 = vadd.f32 0.0, %v1199
      %v1201 = vpop.f32.mrf.mxu0
      %1202 = vmatprep.mubr.f32.mxu0 0.0
      %1203 = vmatmul.mubr.f32.gmra.mxu0 %v179
      %v1204 = vpop.f32.mrf.mxu0
      %v1205 = vadd.f32 0.0, %v1204
      %v1206 = vpop.f32.mrf.mxu0
      %1207 = vmatprep.mubr.f32.mxu0 0.0
      %1208 = vmatmul.mubr.f32.gmra.mxu0 %v180
      %v1209 = vpop.f32.mrf.mxu0
      %v1210 = vadd.f32 0.0, %v1209
      %v1211 = vpop.f32.mrf.mxu0
      %1212 = vmatprep.mubr.f32.mxu0 0.0
      %1213 = vmatmul.mubr.f32.gmra.mxu0 %v181
      %v1214 = vpop.f32.mrf.mxu0
      %v1215 = vadd.f32 0.0, %v1214
      %v1216 = vpop.f32.mrf.mxu0
      %1217 = vmatprep.mubr.f32.mxu0 0.0
      %1218 = vmatmul.mubr.f32.gmra.mxu0 %v182
      %v1219 = vpop.f32.mrf.mxu0
      %v1220 = vadd.f32 0.0, %v1219
      %v1221 = vpop.f32.mrf.mxu0
      %1222 = vmatprep.mubr.f32.mxu0 0.0
      %1223 = vmatmul.mubr.f32.gmra.mxu0 %v183
      %v1224 = vpop.f32.mrf.mxu0
      %v1225 = vadd.f32 0.0, %v1224
      %v1226 = vpop.f32.mrf.mxu0
      %1227 = vmatprep.mubr.f32.mxu0 0.0
      %1228 = vmatmul.mubr.f32.gmra.mxu0 %v184
      %v1229 = vpop.f32.mrf.mxu0
      %v1230 = vadd.f32 0.0, %v1229
      %v1231 = vpop.f32.mrf.mxu0
      %1232 = vmatprep.mubr.f32.mxu0 0.0
      %1233 = vmatmul.mubr.f32.gmra.mxu0 %v185
      %v1234 = vpop.f32.mrf.mxu0
      %v1235 = vadd.f32 0.0, %v1234
      %v1236 = vpop.f32.mrf.mxu0
      %1237 = vmatprep.mubr.f32.mxu0 0.0
      %1238 = vmatmul.mubr.f32.gmra.mxu0 %v186
      %v1239 = vpop.f32.mrf.mxu0
      %v1240 = vadd.f32 0.0, %v1239
      %v1241 = vpop.f32.mrf.mxu0
      %1242 = vmatprep.mubr.f32.mxu0 0.0
      %1243 = vmatmul.mubr.f32.gmra.mxu0 %v187
      %v1244 = vpop.f32.mrf.mxu0
      %v1245 = vadd.f32 0.0, %v1244
      %v1246 = vpop.f32.mrf.mxu0
      %1247 = vmatprep.mubr.f32.mxu0 0.0
      %1248 = vmatmul.mubr.f32.gmra.mxu0 %v188
      %v1249 = vpop.f32.mrf.mxu0
      %v1250 = vadd.f32 0.0, %v1249
      %v1251 = vpop.f32.mrf.mxu0
      %1252 = vmatprep.mubr.f32.mxu0 0.0
      %1253 = vmatmul.mubr.f32.gmra.mxu0 %v189
      %v1254 = vpop.f32.mrf.mxu0
      %v1255 = vadd.f32 0.0, %v1254
      %v1256 = vpop.f32.mrf.mxu0
      %1257 = vmatprep.mubr.f32.mxu0 0.0
      %1258 = vmatmul.mubr.f32.gmra.mxu0 %v190
      %v1259 = vpop.f32.mrf.mxu0
      %v1260 = vadd.f32 0.0, %v1259
      %v1261 = vpop.f32.mrf.mxu0
      %1262 = vmatprep.mubr.f32.mxu0 0.0
      %1263 = vmatmul.mubr.f32.gmra.mxu0 %v191
      %v1264 = vpop.f32.mrf.mxu0
      %v1265 = vadd.f32 0.0, %v1264
      %v1266 = vpop.f32.mrf.mxu0
      %1267 = vmatprep.mubr.f32.mxu0 0.0
      %1268 = vmatmul.mubr.f32.gmra.mxu0 %v192
      %v1269 = vpop.f32.mrf.mxu0
      %v1270 = vadd.f32 0.0, %v1269
      %v1271 = vpop.f32.mrf.mxu0
      %1272 = vmatprep.mubr.f32.mxu0 0.0
      %1273 = vmatmul.mubr.f32.gmra.mxu0 %v193
      %v1274 = vpop.f32.mrf.mxu0
      %v1275 = vadd.f32 0.0, %v1274
      %v1276 = vpop.f32.mrf.mxu0
      %1277 = vmatprep.mubr.f32.mxu0 0.0
      %1278 = vmatmul.mubr.f32.gmra.mxu0 %v194
      %v1279 = vpop.f32.mrf.mxu0
      %v1280 = vadd.f32 0.0, %v1279
      %v1281 = vpop.f32.mrf.mxu0
      %1282 = vmatprep.mubr.f32.mxu0 0.0
      %1283 = vmatmul.mubr.f32.gmra.mxu0 %v195
      %v1284 = vpop.f32.mrf.mxu0
      %v1285 = vadd.f32 0.0, %v1284
      %v1286 = vpop.f32.mrf.mxu0
      %1287 = vmatprep.mubr.f32.mxu0 0.0
      %1288 = vmatmul.mubr.f32.gmra.mxu0 %v196
      %v1289 = vpop.f32.mrf.mxu0
      %v1290 = vadd.f32 0.0, %v1289
      %v1291 = vpop.f32.mrf.mxu0
      %1292 = vmatprep.mubr.f32.mxu0 0.0
      %1293 = vmatmul.mubr.f32.gmra.mxu0 %v197
      %v1294 = vpop.f32.mrf.mxu0
      %v1295 = vadd.f32 0.0, %v1294
      %v1296 = vpop.f32.mrf.mxu0
      %1297 = vmatprep.mubr.f32.mxu0 0.0
      %1298 = vmatmul.mubr.f32.gmra.mxu0 %v198
      %v1299 = vpop.f32.mrf.mxu0
      %v1300 = vadd.f32 0.0, %v1299
      %v1301 = vpop.f32.mrf.mxu0
      %1302 = vmatprep.mubr.f32.mxu0 0.0
      %1303 = vmatmul.mubr.f32.gmra.mxu0 %v199
      %v1304 = vpop.f32.mrf.mxu0
      %v1305 = vadd.f32 0.0, %v1304
      %v1306 = vpop.f32.mrf.mxu0
      %1307 = vmatprep.mubr.f32.mxu0 0.0
      %1308 = vmatmul.mubr.f32.gmra.mxu0 %v200
      %v1309 = vpop.f32.mrf.mxu0
      %v1310 = vadd.f32 0.0, %v1309
      %v1311 = vpop.f32.mrf.mxu0
      %1312 = vmatprep.mubr.f32.mxu0 0.0
      %1313 = vmatmul.mubr.f32.gmra.mxu0 %v201
      %v1314 = vpop.f32.mrf.mxu0
      %v1315 = vadd.f32 0.0, %v1314
      %v1316 = vpop.f32.mrf.mxu0
      %1317 = vmatprep.mubr.f32.mxu0 0.0
      %1318 = vmatmul.mubr.f32.gmra.mxu0 %v202
      %v1319 = vpop.f32.mrf.mxu0
      %v1320 = vadd.f32 0.0, %v1319
      %v1321 = vpop.f32.mrf.mxu0
      %1322 = vdwg.mxu0
      %v1323 = vadd.f32 %v874, %v1005
      %v1324 = vadd.f32 %v875, %v1010
      %v1325 = vadd.f32 %v876, %v1015
      %v1326 = vadd.f32 %v877, %v1020
      %v1327 = vadd.f32 %v878, %v1025
      %v1328 = vadd.f32 %v879, %v1030
      %v1329 = vadd.f32 %v880, %v1035
      %v1330 = vadd.f32 %v881, %v1040
      %v1331 = vadd.f32 %v882, %v1045
      %v1332 = vadd.f32 %v883, %v1050
      %v1333 = vadd.f32 %v884, %v1055
      %v1334 = vadd.f32 %v885, %v1060
      %v1335 = vadd.f32 %v886, %v1065
      %v1336 = vadd.f32 %v887, %v1070
      %v1337 = vadd.f32 %v888, %v1075
      %v1338 = vadd.f32 %v889, %v1080
      %v1339 = vadd.f32 %v890, %v1085
      %v1340 = vadd.f32 %v891, %v1090
      %v1341 = vadd.f32 %v892, %v1095
      %v1342 = vadd.f32 %v893, %v1100
      %v1343 = vadd.f32 %v894, %v1105
      %v1344 = vadd.f32 %v895, %v1110
      %v1345 = vadd.f32 %v896, %v1115
      %v1346 = vadd.f32 %v897, %v1120
      %v1347 = vadd.f32 %v898, %v1125
      %v1348 = vadd.f32 %v899, %v1130
      %v1349 = vadd.f32 %v900, %v1135
      %v1350 = vadd.f32 %v901, %v1140
      %v1351 = vadd.f32 %v902, %v1145
      %v1352 = vadd.f32 %v903, %v1150
      %v1353 = vadd.f32 %v904, %v1155
      %v1354 = vadd.f32 %v905, %v1160
      %v1355 = vadd.f32 %v906, %v1165
      %v1356 = vadd.f32 %v907, %v1170
      %v1357 = vadd.f32 %v908, %v1175
      %v1358 = vadd.f32 %v909, %v1180
      %v1359 = vadd.f32 %v910, %v1185
      %v1360 = vadd.f32 %v911, %v1190
      %v1361 = vadd.f32 %v912, %v1195
      %v1362 = vadd.f32 %v913, %v1200
      %v1363 = vadd.f32 %v914, %v1205
      %v1364 = vadd.f32 %v915, %v1210
      %v1365 = vadd.f32 %v916, %v1215
      %v1366 = vadd.f32 %v917, %v1220
      %v1367 = vadd.f32 %v918, %v1225
      %v1368 = vadd.f32 %v919, %v1230
      %v1369 = vadd.f32 %v920, %v1235
      %v1370 = vadd.f32 %v921, %v1240
      %v1371 = vadd.f32 %v922, %v1245
      %v1372 = vadd.f32 %v923, %v1250
      %v1373 = vadd.f32 %v924, %v1255
      %v1374 = vadd.f32 %v925, %v1260
      %v1375 = vadd.f32 %v926, %v1265
      %v1376 = vadd.f32 %v927, %v1270
      %v1377 = vadd.f32 %v928, %v1275
      %v1378 = vadd.f32 %v929, %v1280
      %v1379 = vadd.f32 %v930, %v1285
      %v1380 = vadd.f32 %v931, %v1290
      %v1381 = vadd.f32 %v932, %v1295
      %v1382 = vadd.f32 %v933, %v1300
      %v1383 = vadd.f32 %v934, %v1305
      %v1384 = vadd.f32 %v935, %v1310
      %v1385 = vadd.f32 %v936, %v1315
      %v1386 = vadd.f32 %v937, %v1320
      %vm1387 = vcmask 64512
      %1388 = vst.msk [vmem:[#allocation3] sm:$0xff] %vm1387, %v1323
      %1389 = vst.msk [vmem:[#allocation3 + $0x8] sm:$0xff] %vm1387, %v1324
      %1390 = vst.msk [vmem:[#allocation3 + $0x10] sm:$0xff] %vm1387, %v1325
      %1391 = vst.msk [vmem:[#allocation3 + $0x18] sm:$0xff] %vm1387, %v1326
      %1392 = vst.msk [vmem:[#allocation3 + $0x20] sm:$0xff] %vm1387, %v1327
      %1393 = vst.msk [vmem:[#allocation3 + $0x28] sm:$0xff] %vm1387, %v1328
      %1394 = vst.msk [vmem:[#allocation3 + $0x30] sm:$0xff] %vm1387, %v1329
      %1395 = vst.msk [vmem:[#allocation3 + $0x38] sm:$0xff] %vm1387, %v1330
      %1396 = vst.msk [vmem:[#allocation3 + $0x40] sm:$0xff] %vm1387, %v1331
      %1397 = vst.msk [vmem:[#allocation3 + $0x48] sm:$0xff] %vm1387, %v1332
      %1398 = vst.msk [vmem:[#allocation3 + $0x50] sm:$0xff] %vm1387, %v1333
      %1399 = vst.msk [vmem:[#allocation3 + $0x58] sm:$0xff] %vm1387, %v1334
      %1400 = vst.msk [vmem:[#allocation3 + $0x60] sm:$0xff] %vm1387, %v1335
      %1401 = vst.msk [vmem:[#allocation3 + $0x68] sm:$0xff] %vm1387, %v1336
      %1402 = vst.msk [vmem:[#allocation3 + $0x70] sm:$0xff] %vm1387, %v1337
      %1403 = vst.msk [vmem:[#allocation3 + $0x78] sm:$0xff] %vm1387, %v1338
      %1404 = vst.msk [vmem:[#allocation3 + $0x80] sm:$0xff] %vm1387, %v1339
      %1405 = vst.msk [vmem:[#allocation3 + $0x88] sm:$0xff] %vm1387, %v1340
      %1406 = vst.msk [vmem:[#allocation3 + $0x90] sm:$0xff] %vm1387, %v1341
      %1407 = vst.msk [vmem:[#allocation3 + $0x98] sm:$0xff] %vm1387, %v1342
      %1408 = vst.msk [vmem:[#allocation3 + $0xa0] sm:$0xff] %vm1387, %v1343
      %1409 = vst.msk [vmem:[#allocation3 + $0xa8] sm:$0xff] %vm1387, %v1344
      %1410 = vst.msk [vmem:[#allocation3 + $0xb0] sm:$0xff] %vm1387, %v1345
      %1411 = vst.msk [vmem:[#allocation3 + $0xb8] sm:$0xff] %vm1387, %v1346
      %1412 = vst.msk [vmem:[#allocation3 + $0xc0] sm:$0xff] %vm1387, %v1347
      %1413 = vst.msk [vmem:[#allocation3 + $0xc8] sm:$0xff] %vm1387, %v1348
      %1414 = vst.msk [vmem:[#allocation3 + $0xd0] sm:$0xff] %vm1387, %v1349
      %1415 = vst.msk [vmem:[#allocation3 + $0xd8] sm:$0xff] %vm1387, %v1350
      %1416 = vst.msk [vmem:[#allocation3 + $0xe0] sm:$0xff] %vm1387, %v1351
      %1417 = vst.msk [vmem:[#allocation3 + $0xe8] sm:$0xff] %vm1387, %v1352
      %1418 = vst.msk [vmem:[#allocation3 + $0xf0] sm:$0xff] %vm1387, %v1353
      %1419 = vst.msk [vmem:[#allocation3 + $0xf8] sm:$0xff] %vm1387, %v1354
      %1420 = vst.msk [vmem:[#allocation3 + $0x100] sm:$0xff] %vm1387, %v1355
      %1421 = vst.msk [vmem:[#allocation3 + $0x108] sm:$0xff] %vm1387, %v1356
      %1422 = vst.msk [vmem:[#allocation3 + $0x110] sm:$0xff] %vm1387, %v1357
      %1423 = vst.msk [vmem:[#allocation3 + $0x118] sm:$0xff] %vm1387, %v1358
      %1424 = vst.msk [vmem:[#allocation3 + $0x120] sm:$0xff] %vm1387, %v1359
      %1425 = vst.msk [vmem:[#allocation3 + $0x128] sm:$0xff] %vm1387, %v1360
      %1426 = vst.msk [vmem:[#allocation3 + $0x130] sm:$0xff] %vm1387, %v1361
      %1427 = vst.msk [vmem:[#allocation3 + $0x138] sm:$0xff] %vm1387, %v1362
      %1428 = vst.msk [vmem:[#allocation3 + $0x140] sm:$0xff] %vm1387, %v1363
      %1429 = vst.msk [vmem:[#allocation3 + $0x148] sm:$0xff] %vm1387, %v1364
      %1430 = vst.msk [vmem:[#allocation3 + $0x150] sm:$0xff] %vm1387, %v1365
      %1431 = vst.msk [vmem:[#allocation3 + $0x158] sm:$0xff] %vm1387, %v1366
      %1432 = vst.msk [vmem:[#allocation3 + $0x160] sm:$0xff] %vm1387, %v1367
      %1433 = vst.msk [vmem:[#allocation3 + $0x168] sm:$0xff] %vm1387, %v1368
      %1434 = vst.msk [vmem:[#allocation3 + $0x170] sm:$0xff] %vm1387, %v1369
      %1435 = vst.msk [vmem:[#allocation3 + $0x178] sm:$0xff] %vm1387, %v1370
      %1436 = vst.msk [vmem:[#allocation3 + $0x180] sm:$0xff] %vm1387, %v1371
      %1437 = vst.msk [vmem:[#allocation3 + $0x188] sm:$0xff] %vm1387, %v1372
      %1438 = vst.msk [vmem:[#allocation3 + $0x190] sm:$0xff] %vm1387, %v1373
      %1439 = vst.msk [vmem:[#allocation3 + $0x198] sm:$0xff] %vm1387, %v1374
      %1440 = vst.msk [vmem:[#allocation3 + $0x1a0] sm:$0xff] %vm1387, %v1375
      %1441 = vst.msk [vmem:[#allocation3 + $0x1a8] sm:$0xff] %vm1387, %v1376
      %1442 = vst.msk [vmem:[#allocation3 + $0x1b0] sm:$0xff] %vm1387, %v1377
      %1443 = vst.msk [vmem:[#allocation3 + $0x1b8] sm:$0xff] %vm1387, %v1378
      %1444 = vst.msk [vmem:[#allocation3 + $0x1c0] sm:$0xff] %vm1387, %v1379
      %1445 = vst.msk [vmem:[#allocation3 + $0x1c8] sm:$0xff] %vm1387, %v1380
      %1446 = vst.msk [vmem:[#allocation3 + $0x1d0] sm:$0xff] %vm1387, %v1381
      %1447 = vst.msk [vmem:[#allocation3 + $0x1d8] sm:$0xff] %vm1387, %v1382
      %1448 = vst.msk [vmem:[#allocation3 + $0x1e0] sm:$0xff] %vm1387, %v1383
      %1449 = vst.msk [vmem:[#allocation3 + $0x1e8] sm:$0xff] %vm1387, %v1384
      %1450 = vst.msk [vmem:[#allocation3 + $0x1f0] sm:$0xff] %vm1387, %v1385
      %1451 = vst.msk [vmem:[#allocation3 + $0x1f8] sm:$0xff] %vm1387, %v1386
    $region49: #{tpu_custom_call.1} parent=1 // pred_fallthru
      _
    // Predicated region
    $region50: #{tpu_custom_call.1} parent=1 // pred_check
      %p1452 = pneg %p71
    $region51: #{tpu_custom_call.1} parent=1 // pred_check_branch
      %1454 = sbr.rel (%p1452) target = $region53
    $region52: #{tpu_custom_call.1} parent=1 // pred_region
      %v1455 = vld [vmem:[#allocation2] sm:$0xff]
      %v1456 = vld [vmem:[#allocation2 + $0x8] sm:$0xff]
      %v1457 = vld [vmem:[#allocation2 + $0x10] sm:$0xff]
      %v1458 = vld [vmem:[#allocation2 + $0x18] sm:$0xff]
      %v1459 = vld [vmem:[#allocation2 + $0x20] sm:$0xff]
      %v1460 = vld [vmem:[#allocation2 + $0x28] sm:$0xff]
      %v1461 = vld [vmem:[#allocation2 + $0x30] sm:$0xff]
      %v1462 = vld [vmem:[#allocation2 + $0x38] sm:$0xff]
      %v1463 = vld [vmem:[#allocation2 + $0x40] sm:$0xff]
      %v1464 = vld [vmem:[#allocation2 + $0x48] sm:$0xff]
      %v1465 = vld [vmem:[#allocation2 + $0x50] sm:$0xff]
      %v1466 = vld [vmem:[#allocation2 + $0x58] sm:$0xff]
      %v1467 = vld [vmem:[#allocation2 + $0x60] sm:$0xff]
      %v1468 = vld [vmem:[#allocation2 + $0x68] sm:$0xff]
      %v1469 = vld [vmem:[#allocation2 + $0x70] sm:$0xff]
      %v1470 = vld [vmem:[#allocation2 + $0x78] sm:$0xff]
      %v1471 = vld [vmem:[#allocation2 + $0x80] sm:$0xff]
      %v1472 = vld [vmem:[#allocation2 + $0x88] sm:$0xff]
      %v1473 = vld [vmem:[#allocation2 + $0x90] sm:$0xff]
      %v1474 = vld [vmem:[#allocation2 + $0x98] sm:$0xff]
      %v1475 = vld [vmem:[#allocation2 + $0xa0] sm:$0xff]
      %v1476 = vld [vmem:[#allocation2 + $0xa8] sm:$0xff]
      %v1477 = vld [vmem:[#allocation2 + $0xb0] sm:$0xff]
      %v1478 = vld [vmem:[#allocation2 + $0xb8] sm:$0xff]
      %v1479 = vld [vmem:[#allocation2 + $0xc0] sm:$0xff]
      %v1480 = vld [vmem:[#allocation2 + $0xc8] sm:$0xff]
      %v1481 = vld [vmem:[#allocation2 + $0xd0] sm:$0xff]
      %v1482 = vld [vmem:[#allocation2 + $0xd8] sm:$0xff]
      %v1483 = vld [vmem:[#allocation2 + $0xe0] sm:$0xff]
      %v1484 = vld [vmem:[#allocation2 + $0xe8] sm:$0xff]
      %v1485 = vld [vmem:[#allocation2 + $0xf0] sm:$0xff]
      %v1486 = vld [vmem:[#allocation2 + $0xf8] sm:$0xff]
      %v1487 = vld [vmem:[#allocation2 + $0x100] sm:$0xff]
      %v1488 = vld [vmem:[#allocation2 + $0x108] sm:$0xff]
      %v1489 = vld [vmem:[#allocation2 + $0x110] sm:$0xff]
      %v1490 = vld [vmem:[#allocation2 + $0x118] sm:$0xff]
      %v1491 = vld [vmem:[#allocation2 + $0x120] sm:$0xff]
      %v1492 = vld [vmem:[#allocation2 + $0x128] sm:$0xff]
      %v1493 = vld [vmem:[#allocation2 + $0x130] sm:$0xff]
      %v1494 = vld [vmem:[#allocation2 + $0x138] sm:$0xff]
      %v1495 = vld [vmem:[#allocation2 + $0x140] sm:$0xff]
      %v1496 = vld [vmem:[#allocation2 + $0x148] sm:$0xff]
      %v1497 = vld [vmem:[#allocation2 + $0x150] sm:$0xff]
      %v1498 = vld [vmem:[#allocation2 + $0x158] sm:$0xff]
      %v1499 = vld [vmem:[#allocation2 + $0x160] sm:$0xff]
      %v1500 = vld [vmem:[#allocation2 + $0x168] sm:$0xff]
      %v1501 = vld [vmem:[#allocation2 + $0x170] sm:$0xff]
      %v1502 = vld [vmem:[#allocation2 + $0x178] sm:$0xff]
      %v1503 = vld [vmem:[#allocation2 + $0x180] sm:$0xff]
      %v1504 = vld [vmem:[#allocation2 + $0x188] sm:$0xff]
      %v1505 = vld [vmem:[#allocation2 + $0x190] sm:$0xff]
      %v1506 = vld [vmem:[#allocation2 + $0x198] sm:$0xff]
      %v1507 = vld [vmem:[#allocation2 + $0x1a0] sm:$0xff]
      %v1508 = vld [vmem:[#allocation2 + $0x1a8] sm:$0xff]
      %v1509 = vld [vmem:[#allocation2 + $0x1b0] sm:$0xff]
      %v1510 = vld [vmem:[#allocation2 + $0x1b8] sm:$0xff]
      %v1511 = vld [vmem:[#allocation2 + $0x1c0] sm:$0xff]
      %v1512 = vld [vmem:[#allocation2 + $0x1c8] sm:$0xff]
      %v1513 = vld [vmem:[#allocation2 + $0x1d0] sm:$0xff]
      %v1514 = vld [vmem:[#allocation2 + $0x1d8] sm:$0xff]
      %v1515 = vld [vmem:[#allocation2 + $0x1e0] sm:$0xff]
      %v1516 = vld [vmem:[#allocation2 + $0x1e8] sm:$0xff]
      %v1517 = vld [vmem:[#allocation2 + $0x1f0] sm:$0xff]
      %v1518 = vld [vmem:[#allocation2 + $0x1f8] sm:$0xff]
      %v1519 = vld [vmem:[%s4] sm:$0x1]
      %v1521 = vlaneseq
      %v1522 = vshrl.u32 %v1521, 7
      %v1523 = vsub.s32 0, %v1522
      %v1524 = vrot.slane %v1519, %v1523
      %v1526 = vadd.f32 %v1455, %v1524
      %v1527 = vadd.f32 %v1456, %v1524
      %v1528 = vadd.f32 %v1457, %v1524
      %v1529 = vadd.f32 %v1458, %v1524
      %v1530 = vadd.f32 %v1459, %v1524
      %v1531 = vadd.f32 %v1460, %v1524
      %v1532 = vadd.f32 %v1461, %v1524
      %v1533 = vadd.f32 %v1462, %v1524
      %v1534 = vadd.f32 %v1463, %v1524
      %v1535 = vadd.f32 %v1464, %v1524
      %v1536 = vadd.f32 %v1465, %v1524
      %v1537 = vadd.f32 %v1466, %v1524
      %v1538 = vadd.f32 %v1467, %v1524
      %v1539 = vadd.f32 %v1468, %v1524
      %v1540 = vadd.f32 %v1469, %v1524
      %v1541 = vadd.f32 %v1470, %v1524
      %v1542 = vadd.f32 %v1471, %v1524
      %v1543 = vadd.f32 %v1472, %v1524
      %v1544 = vadd.f32 %v1473, %v1524
      %v1545 = vadd.f32 %v1474, %v1524
      %v1546 = vadd.f32 %v1475, %v1524
      %v1547 = vadd.f32 %v1476, %v1524
      %v1548 = vadd.f32 %v1477, %v1524
      %v1549 = vadd.f32 %v1478, %v1524
      %v1550 = vadd.f32 %v1479, %v1524
      %v1551 = vadd.f32 %v1480, %v1524
      %v1552 = vadd.f32 %v1481, %v1524
      %v1553 = vadd.f32 %v1482, %v1524
      %v1554 = vadd.f32 %v1483, %v1524
      %v1555 = vadd.f32 %v1484, %v1524
      %v1556 = vadd.f32 %v1485, %v1524
      %v1557 = vadd.f32 %v1486, %v1524
      %v1558 = vadd.f32 %v1487, %v1524
      %v1559 = vadd.f32 %v1488, %v1524
      %v1560 = vadd.f32 %v1489, %v1524
      %v1561 = vadd.f32 %v1490, %v1524
      %v1562 = vadd.f32 %v1491, %v1524
      %v1563 = vadd.f32 %v1492, %v1524
      %v1564 = vadd.f32 %v1493, %v1524
      %v1565 = vadd.f32 %v1494, %v1524
      %v1566 = vadd.f32 %v1495, %v1524
      %v1567 = vadd.f32 %v1496, %v1524
      %v1568 = vadd.f32 %v1497, %v1524
      %v1569 = vadd.f32 %v1498, %v1524
      %v1570 = vadd.f32 %v1499, %v1524
      %v1571 = vadd.f32 %v1500, %v1524
      %v1572 = vadd.f32 %v1501, %v1524
      %v1573 = vadd.f32 %v1502, %v1524
      %v1574 = vadd.f32 %v1503, %v1524
      %v1575 = vadd.f32 %v1504, %v1524
      %v1576 = vadd.f32 %v1505, %v1524
      %v1577 = vadd.f32 %v1506, %v1524
      %v1578 = vadd.f32 %v1507, %v1524
      %v1579 = vadd.f32 %v1508, %v1524
      %v1580 = vadd.f32 %v1509, %v1524
      %v1581 = vadd.f32 %v1510, %v1524
      %v1582 = vadd.f32 %v1511, %v1524
      %v1583 = vadd.f32 %v1512, %v1524
      %v1584 = vadd.f32 %v1513, %v1524
      %v1585 = vadd.f32 %v1514, %v1524
      %v1586 = vadd.f32 %v1515, %v1524
      %v1587 = vadd.f32 %v1516, %v1524
      %v1588 = vadd.f32 %v1517, %v1524
      %v1589 = vadd.f32 %v1518, %v1524
      %v1590 = vld [vmem:[#allocation3] sm:$0xff]
      %v1591 = vld [vmem:[#allocation3 + $0x8] sm:$0xff]
      %v1592 = vld [vmem:[#allocation3 + $0x10] sm:$0xff]
      %v1593 = vld [vmem:[#allocation3 + $0x18] sm:$0xff]
      %v1594 = vld [vmem:[#allocation3 + $0x20] sm:$0xff]
      %v1595 = vld [vmem:[#allocation3 + $0x28] sm:$0xff]
      %v1596 = vld [vmem:[#allocation3 + $0x30] sm:$0xff]
      %v1597 = vld [vmem:[#allocation3 + $0x38] sm:$0xff]
      %v1598 = vld [vmem:[#allocation3 + $0x40] sm:$0xff]
      %v1599 = vld [vmem:[#allocation3 + $0x48] sm:$0xff]
      %v1600 = vld [vmem:[#allocation3 + $0x50] sm:$0xff]
      %v1601 = vld [vmem:[#allocation3 + $0x58] sm:$0xff]
      %v1602 = vld [vmem:[#allocation3 + $0x60] sm:$0xff]
      %v1603 = vld [vmem:[#allocation3 + $0x68] sm:$0xff]
      %v1604 = vld [vmem:[#allocation3 + $0x70] sm:$0xff]
      %v1605 = vld [vmem:[#allocation3 + $0x78] sm:$0xff]
      %v1606 = vld [vmem:[#allocation3 + $0x80] sm:$0xff]
      %v1607 = vld [vmem:[#allocation3 + $0x88] sm:$0xff]
      %v1608 = vld [vmem:[#allocation3 + $0x90] sm:$0xff]
      %v1609 = vld [vmem:[#allocation3 + $0x98] sm:$0xff]
      %v1610 = vld [vmem:[#allocation3 + $0xa0] sm:$0xff]
      %v1611 = vld [vmem:[#allocation3 + $0xa8] sm:$0xff]
      %v1612 = vld [vmem:[#allocation3 + $0xb0] sm:$0xff]
      %v1613 = vld [vmem:[#allocation3 + $0xb8] sm:$0xff]
      %v1614 = vld [vmem:[#allocation3 + $0xc0] sm:$0xff]
      %v1615 = vld [vmem:[#allocation3 + $0xc8] sm:$0xff]
      %v1616 = vld [vmem:[#allocation3 + $0xd0] sm:$0xff]
      %v1617 = vld [vmem:[#allocation3 + $0xd8] sm:$0xff]
      %v1618 = vld [vmem:[#allocation3 + $0xe0] sm:$0xff]
      %v1619 = vld [vmem:[#allocation3 + $0xe8] sm:$0xff]
      %v1620 = vld [vmem:[#allocation3 + $0xf0] sm:$0xff]
      %v1621 = vld [vmem:[#allocation3 + $0xf8] sm:$0xff]
      %v1622 = vld [vmem:[#allocation3 + $0x100] sm:$0xff]
      %v1623 = vld [vmem:[#allocation3 + $0x108] sm:$0xff]
      %v1624 = vld [vmem:[#allocation3 + $0x110] sm:$0xff]
      %v1625 = vld [vmem:[#allocation3 + $0x118] sm:$0xff]
      %v1626 = vld [vmem:[#allocation3 + $0x120] sm:$0xff]
      %v1627 = vld [vmem:[#allocation3 + $0x128] sm:$0xff]
      %v1628 = vld [vmem:[#allocation3 + $0x130] sm:$0xff]
      %v1629 = vld [vmem:[#allocation3 + $0x138] sm:$0xff]
      %v1630 = vld [vmem:[#allocation3 + $0x140] sm:$0xff]
      %v1631 = vld [vmem:[#allocation3 + $0x148] sm:$0xff]
      %v1632 = vld [vmem:[#allocation3 + $0x150] sm:$0xff]
      %v1633 = vld [vmem:[#allocation3 + $0x158] sm:$0xff]
      %v1634 = vld [vmem:[#allocation3 + $0x160] sm:$0xff]
      %v1635 = vld [vmem:[#allocation3 + $0x168] sm:$0xff]
      %v1636 = vld [vmem:[#allocation3 + $0x170] sm:$0xff]
      %v1637 = vld [vmem:[#allocation3 + $0x178] sm:$0xff]
      %v1638 = vld [vmem:[#allocation3 + $0x180] sm:$0xff]
      %v1639 = vld [vmem:[#allocation3 + $0x188] sm:$0xff]
      %v1640 = vld [vmem:[#allocation3 + $0x190] sm:$0xff]
      %v1641 = vld [vmem:[#allocation3 + $0x198] sm:$0xff]
      %v1642 = vld [vmem:[#allocation3 + $0x1a0] sm:$0xff]
      %v1643 = vld [vmem:[#allocation3 + $0x1a8] sm:$0xff]
      %v1644 = vld [vmem:[#allocation3 + $0x1b0] sm:$0xff]
      %v1645 = vld [vmem:[#allocation3 + $0x1b8] sm:$0xff]
      %v1646 = vld [vmem:[#allocation3 + $0x1c0] sm:$0xff]
      %v1647 = vld [vmem:[#allocation3 + $0x1c8] sm:$0xff]
      %v1648 = vld [vmem:[#allocation3 + $0x1d0] sm:$0xff]
      %v1649 = vld [vmem:[#allocation3 + $0x1d8] sm:$0xff]
      %v1650 = vld [vmem:[#allocation3 + $0x1e0] sm:$0xff]
      %v1651 = vld [vmem:[#allocation3 + $0x1e8] sm:$0xff]
      %v1652 = vld [vmem:[#allocation3 + $0x1f0] sm:$0xff]
      %v1653 = vld [vmem:[#allocation3 + $0x1f8] sm:$0xff]
      %v1654 = vld [vmem:[#allocation8] sm:$0xff]
      %1656 = vset.pattern.permute.xlu0 0
      %1657 = vperm.xlu0 %1656, %v1590
      %v1658 = vpop.permute.xlu0 %1657
      %1661 = vset.pattern.permute.xlu0 0
      %1662 = vperm.xlu0 %1661, %v1591
      %v1663 = vpop.permute.xlu0 %1662
      %1666 = vset.pattern.permute.xlu0 0
      %1667 = vperm.xlu0 %1666, %v1592
      %v1668 = vpop.permute.xlu0 %1667
      %1671 = vset.pattern.permute.xlu0 0
      %1672 = vperm.xlu0 %1671, %v1593
      %v1673 = vpop.permute.xlu0 %1672
      %1676 = vset.pattern.permute.xlu0 0
      %1677 = vperm.xlu0 %1676, %v1594
      %v1678 = vpop.permute.xlu0 %1677
      %1681 = vset.pattern.permute.xlu0 0
      %1682 = vperm.xlu0 %1681, %v1595
      %v1683 = vpop.permute.xlu0 %1682
      %1686 = vset.pattern.permute.xlu0 0
      %1687 = vperm.xlu0 %1686, %v1596
      %v1688 = vpop.permute.xlu0 %1687
      %1691 = vset.pattern.permute.xlu0 0
      %1692 = vperm.xlu0 %1691, %v1597
      %v1693 = vpop.permute.xlu0 %1692
      %1696 = vset.pattern.permute.xlu0 0
      %1697 = vperm.xlu0 %1696, %v1598
      %v1698 = vpop.permute.xlu0 %1697
      %1701 = vset.pattern.permute.xlu0 0
      %1702 = vperm.xlu0 %1701, %v1599
      %v1703 = vpop.permute.xlu0 %1702
      %1706 = vset.pattern.permute.xlu0 0
      %1707 = vperm.xlu0 %1706, %v1600
      %v1708 = vpop.permute.xlu0 %1707
      %1711 = vset.pattern.permute.xlu0 0
      %1712 = vperm.xlu0 %1711, %v1601
      %v1713 = vpop.permute.xlu0 %1712
      %1716 = vset.pattern.permute.xlu0 0
      %1717 = vperm.xlu0 %1716, %v1602
      %v1718 = vpop.permute.xlu0 %1717
      %1721 = vset.pattern.permute.xlu0 0
      %1722 = vperm.xlu0 %1721, %v1603
      %v1723 = vpop.permute.xlu0 %1722
      %1726 = vset.pattern.permute.xlu0 0
      %1727 = vperm.xlu0 %1726, %v1604
      %v1728 = vpop.permute.xlu0 %1727
      %1731 = vset.pattern.permute.xlu0 0
      %1732 = vperm.xlu0 %1731, %v1605
      %v1733 = vpop.permute.xlu0 %1732
      %1736 = vset.pattern.permute.xlu0 0
      %1737 = vperm.xlu0 %1736, %v1606
      %v1738 = vpop.permute.xlu0 %1737
      %1741 = vset.pattern.permute.xlu0 0
      %1742 = vperm.xlu0 %1741, %v1607
      %v1743 = vpop.permute.xlu0 %1742
      %1746 = vset.pattern.permute.xlu0 0
      %1747 = vperm.xlu0 %1746, %v1608
      %v1748 = vpop.permute.xlu0 %1747
      %1751 = vset.pattern.permute.xlu0 0
      %1752 = vperm.xlu0 %1751, %v1609
      %v1753 = vpop.permute.xlu0 %1752
      %1756 = vset.pattern.permute.xlu0 0
      %1757 = vperm.xlu0 %1756, %v1610
      %v1758 = vpop.permute.xlu0 %1757
      %1761 = vset.pattern.permute.xlu0 0
      %1762 = vperm.xlu0 %1761, %v1611
      %v1763 = vpop.permute.xlu0 %1762
      %1766 = vset.pattern.permute.xlu0 0
      %1767 = vperm.xlu0 %1766, %v1612
      %v1768 = vpop.permute.xlu0 %1767
      %1771 = vset.pattern.permute.xlu0 0
      %1772 = vperm.xlu0 %1771, %v1613
      %v1773 = vpop.permute.xlu0 %1772
      %1776 = vset.pattern.permute.xlu0 0
      %1777 = vperm.xlu0 %1776, %v1614
      %v1778 = vpop.permute.xlu0 %1777
      %1781 = vset.pattern.permute.xlu0 0
      %1782 = vperm.xlu0 %1781, %v1615
      %v1783 = vpop.permute.xlu0 %1782
      %1786 = vset.pattern.permute.xlu0 0
      %1787 = vperm.xlu0 %1786, %v1616
      %v1788 = vpop.permute.xlu0 %1787
      %1791 = vset.pattern.permute.xlu0 0
      %1792 = vperm.xlu0 %1791, %v1617
      %v1793 = vpop.permute.xlu0 %1792
      %1796 = vset.pattern.permute.xlu0 0
      %1797 = vperm.xlu0 %1796, %v1618
      %v1798 = vpop.permute.xlu0 %1797
      %1801 = vset.pattern.permute.xlu0 0
      %1802 = vperm.xlu0 %1801, %v1619
      %v1803 = vpop.permute.xlu0 %1802
      %1806 = vset.pattern.permute.xlu0 0
      %1807 = vperm.xlu0 %1806, %v1620
      %v1808 = vpop.permute.xlu0 %1807
      %1811 = vset.pattern.permute.xlu0 0
      %1812 = vperm.xlu0 %1811, %v1621
      %v1813 = vpop.permute.xlu0 %1812
      %1816 = vset.pattern.permute.xlu0 0
      %1817 = vperm.xlu0 %1816, %v1622
      %v1818 = vpop.permute.xlu0 %1817
      %1821 = vset.pattern.permute.xlu0 0
      %1822 = vperm.xlu0 %1821, %v1623
      %v1823 = vpop.permute.xlu0 %1822
      %1826 = vset.pattern.permute.xlu0 0
      %1827 = vperm.xlu0 %1826, %v1624
      %v1828 = vpop.permute.xlu0 %1827
      %1831 = vset.pattern.permute.xlu0 0
      %1832 = vperm.xlu0 %1831, %v1625
      %v1833 = vpop.permute.xlu0 %1832
      %1836 = vset.pattern.permute.xlu0 0
      %1837 = vperm.xlu0 %1836, %v1626
      %v1838 = vpop.permute.xlu0 %1837
      %1841 = vset.pattern.permute.xlu0 0
      %1842 = vperm.xlu0 %1841, %v1627
      %v1843 = vpop.permute.xlu0 %1842
      %1846 = vset.pattern.permute.xlu0 0
      %1847 = vperm.xlu0 %1846, %v1628
      %v1848 = vpop.permute.xlu0 %1847
      %1851 = vset.pattern.permute.xlu0 0
      %1852 = vperm.xlu0 %1851, %v1629
      %v1853 = vpop.permute.xlu0 %1852
      %1856 = vset.pattern.permute.xlu0 0
      %1857 = vperm.xlu0 %1856, %v1630
      %v1858 = vpop.permute.xlu0 %1857
      %1861 = vset.pattern.permute.xlu0 0
      %1862 = vperm.xlu0 %1861, %v1631
      %v1863 = vpop.permute.xlu0 %1862
      %1866 = vset.pattern.permute.xlu0 0
      %1867 = vperm.xlu0 %1866, %v1632
      %v1868 = vpop.permute.xlu0 %1867
      %1871 = vset.pattern.permute.xlu0 0
      %1872 = vperm.xlu0 %1871, %v1633
      %v1873 = vpop.permute.xlu0 %1872
      %1876 = vset.pattern.permute.xlu0 0
      %1877 = vperm.xlu0 %1876, %v1634
      %v1878 = vpop.permute.xlu0 %1877
      %1881 = vset.pattern.permute.xlu0 0
      %1882 = vperm.xlu0 %1881, %v1635
      %v1883 = vpop.permute.xlu0 %1882
      %1886 = vset.pattern.permute.xlu0 0
      %1887 = vperm.xlu0 %1886, %v1636
      %v1888 = vpop.permute.xlu0 %1887
      %1891 = vset.pattern.permute.xlu0 0
      %1892 = vperm.xlu0 %1891, %v1637
      %v1893 = vpop.permute.xlu0 %1892
      %1896 = vset.pattern.permute.xlu0 0
      %1897 = vperm.xlu0 %1896, %v1638
      %v1898 = vpop.permute.xlu0 %1897
      %1901 = vset.pattern.permute.xlu0 0
      %1902 = vperm.xlu0 %1901, %v1639
      %v1903 = vpop.permute.xlu0 %1902
      %1906 = vset.pattern.permute.xlu0 0
      %1907 = vperm.xlu0 %1906, %v1640
      %v1908 = vpop.permute.xlu0 %1907
      %1911 = vset.pattern.permute.xlu0 0
      %1912 = vperm.xlu0 %1911, %v1641
      %v1913 = vpop.permute.xlu0 %1912
      %1916 = vset.pattern.permute.xlu0 0
      %1917 = vperm.xlu0 %1916, %v1642
      %v1918 = vpop.permute.xlu0 %1917
      %1921 = vset.pattern.permute.xlu0 0
      %1922 = vperm.xlu0 %1921, %v1643
      %v1923 = vpop.permute.xlu0 %1922
      %1926 = vset.pattern.permute.xlu0 0
      %1927 = vperm.xlu0 %1926, %v1644
      %v1928 = vpop.permute.xlu0 %1927
      %1931 = vset.pattern.permute.xlu0 0
      %1932 = vperm.xlu0 %1931, %v1645
      %v1933 = vpop.permute.xlu0 %1932
      %1936 = vset.pattern.permute.xlu0 0
      %1937 = vperm.xlu0 %1936, %v1646
      %v1938 = vpop.permute.xlu0 %1937
      %1941 = vset.pattern.permute.xlu0 0
      %1942 = vperm.xlu0 %1941, %v1647
      %v1943 = vpop.permute.xlu0 %1942
      %1946 = vset.pattern.permute.xlu0 0
      %1947 = vperm.xlu0 %1946, %v1648
      %v1948 = vpop.permute.xlu0 %1947
      %1951 = vset.pattern.permute.xlu0 0
      %1952 = vperm.xlu0 %1951, %v1649
      %v1953 = vpop.permute.xlu0 %1952
      %1956 = vset.pattern.permute.xlu0 0
      %1957 = vperm.xlu0 %1956, %v1650
      %v1958 = vpop.permute.xlu0 %1957
      %1961 = vset.pattern.permute.xlu0 0
      %1962 = vperm.xlu0 %1961, %v1651
      %v1963 = vpop.permute.xlu0 %1962
      %1966 = vset.pattern.permute.xlu0 0
      %1967 = vperm.xlu0 %1966, %v1652
      %v1968 = vpop.permute.xlu0 %1967
      %1971 = vset.pattern.permute.xlu0 0
      %1972 = vperm.xlu0 %1971, %v1653
      %v1973 = vpop.permute.xlu0 %1972
      %v1975 = vlaneseq
      %v1976 = vshrl.u32 %v1975, 7
      %v1977 = vsub.s32 0, %v1976
      %v1978 = vrot.slane %v1654, %v1977
      %v1979 = vmul.f32 %v1658, %v1978
      %v1980 = vmul.f32 %v1663, %v1978
      %v1981 = vmul.f32 %v1668, %v1978
      %v1982 = vmul.f32 %v1673, %v1978
      %v1983 = vmul.f32 %v1678, %v1978
      %v1984 = vmul.f32 %v1683, %v1978
      %v1985 = vmul.f32 %v1688, %v1978
      %v1986 = vmul.f32 %v1693, %v1978
      %v1987 = vmul.f32 %v1698, %v1978
      %v1988 = vmul.f32 %v1703, %v1978
      %v1989 = vmul.f32 %v1708, %v1978
      %v1990 = vmul.f32 %v1713, %v1978
      %v1991 = vmul.f32 %v1718, %v1978
      %v1992 = vmul.f32 %v1723, %v1978
      %v1993 = vmul.f32 %v1728, %v1978
      %v1994 = vmul.f32 %v1733, %v1978
      %v1995 = vmul.f32 %v1738, %v1978
      %v1996 = vmul.f32 %v1743, %v1978
      %v1997 = vmul.f32 %v1748, %v1978
      %v1998 = vmul.f32 %v1753, %v1978
      %v1999 = vmul.f32 %v1758, %v1978
      %v2000 = vmul.f32 %v1763, %v1978
      %v2001 = vmul.f32 %v1768, %v1978
      %v2002 = vmul.f32 %v1773, %v1978
      %v2003 = vmul.f32 %v1778, %v1978
      %v2004 = vmul.f32 %v1783, %v1978
      %v2005 = vmul.f32 %v1788, %v1978
      %v2006 = vmul.f32 %v1793, %v1978
      %v2007 = vmul.f32 %v1798, %v1978
      %v2008 = vmul.f32 %v1803, %v1978
      %v2009 = vmul.f32 %v1808, %v1978
      %v2010 = vmul.f32 %v1813, %v1978
      %v2011 = vmul.f32 %v1818, %v1978
      %v2012 = vmul.f32 %v1823, %v1978
      %v2013 = vmul.f32 %v1828, %v1978
      %v2014 = vmul.f32 %v1833, %v1978
      %v2015 = vmul.f32 %v1838, %v1978
      %v2016 = vmul.f32 %v1843, %v1978
      %v2017 = vmul.f32 %v1848, %v1978
      %v2018 = vmul.f32 %v1853, %v1978
      %v2019 = vmul.f32 %v1858, %v1978
      %v2020 = vmul.f32 %v1863, %v1978
      %v2021 = vmul.f32 %v1868, %v1978
      %v2022 = vmul.f32 %v1873, %v1978
      %v2023 = vmul.f32 %v1878, %v1978
      %v2024 = vmul.f32 %v1883, %v1978
      %v2025 = vmul.f32 %v1888, %v1978
      %v2026 = vmul.f32 %v1893, %v1978
      %v2027 = vmul.f32 %v1898, %v1978
      %v2028 = vmul.f32 %v1903, %v1978
      %v2029 = vmul.f32 %v1908, %v1978
      %v2030 = vmul.f32 %v1913, %v1978
      %v2031 = vmul.f32 %v1918, %v1978
      %v2032 = vmul.f32 %v1923, %v1978
      %v2033 = vmul.f32 %v1928, %v1978
      %v2034 = vmul.f32 %v1933, %v1978
      %v2035 = vmul.f32 %v1938, %v1978
      %v2036 = vmul.f32 %v1943, %v1978
      %v2037 = vmul.f32 %v1948, %v1978
      %v2038 = vmul.f32 %v1953, %v1978
      %v2039 = vmul.f32 %v1958, %v1978
      %v2040 = vmul.f32 %v1963, %v1978
      %v2041 = vmul.f32 %v1968, %v1978
      %v2042 = vmul.f32 %v1973, %v1978
      %v2043 = vadd.f32 %v1526, %v1979
      %v2044 = vadd.f32 %v1527, %v1980
      %v2045 = vadd.f32 %v1528, %v1981
      %v2046 = vadd.f32 %v1529, %v1982
      %v2047 = vadd.f32 %v1530, %v1983
      %v2048 = vadd.f32 %v1531, %v1984
      %v2049 = vadd.f32 %v1532, %v1985
      %v2050 = vadd.f32 %v1533, %v1986
      %v2051 = vadd.f32 %v1534, %v1987
      %v2052 = vadd.f32 %v1535, %v1988
      %v2053 = vadd.f32 %v1536, %v1989
      %v2054 = vadd.f32 %v1537, %v1990
      %v2055 = vadd.f32 %v1538, %v1991
      %v2056 = vadd.f32 %v1539, %v1992
      %v2057 = vadd.f32 %v1540, %v1993
      %v2058 = vadd.f32 %v1541, %v1994
      %v2059 = vadd.f32 %v1542, %v1995
      %v2060 = vadd.f32 %v1543, %v1996
      %v2061 = vadd.f32 %v1544, %v1997
      %v2062 = vadd.f32 %v1545, %v1998
      %v2063 = vadd.f32 %v1546, %v1999
      %v2064 = vadd.f32 %v1547, %v2000
      %v2065 = vadd.f32 %v1548, %v2001
      %v2066 = vadd.f32 %v1549, %v2002
      %v2067 = vadd.f32 %v1550, %v2003
      %v2068 = vadd.f32 %v1551, %v2004
      %v2069 = vadd.f32 %v1552, %v2005
      %v2070 = vadd.f32 %v1553, %v2006
      %v2071 = vadd.f32 %v1554, %v2007
      %v2072 = vadd.f32 %v1555, %v2008
      %v2073 = vadd.f32 %v1556, %v2009
      %v2074 = vadd.f32 %v1557, %v2010
      %v2075 = vadd.f32 %v1558, %v2011
      %v2076 = vadd.f32 %v1559, %v2012
      %v2077 = vadd.f32 %v1560, %v2013
      %v2078 = vadd.f32 %v1561, %v2014
      %v2079 = vadd.f32 %v1562, %v2015
      %v2080 = vadd.f32 %v1563, %v2016
      %v2081 = vadd.f32 %v1564, %v2017
      %v2082 = vadd.f32 %v1565, %v2018
      %v2083 = vadd.f32 %v1566, %v2019
      %v2084 = vadd.f32 %v1567, %v2020
      %v2085 = vadd.f32 %v1568, %v2021
      %v2086 = vadd.f32 %v1569, %v2022
      %v2087 = vadd.f32 %v1570, %v2023
      %v2088 = vadd.f32 %v1571, %v2024
      %v2089 = vadd.f32 %v1572, %v2025
      %v2090 = vadd.f32 %v1573, %v2026
      %v2091 = vadd.f32 %v1574, %v2027
      %v2092 = vadd.f32 %v1575, %v2028
      %v2093 = vadd.f32 %v1576, %v2029
      %v2094 = vadd.f32 %v1577, %v2030
      %v2095 = vadd.f32 %v1578, %v2031
      %v2096 = vadd.f32 %v1579, %v2032
      %v2097 = vadd.f32 %v1580, %v2033
      %v2098 = vadd.f32 %v1581, %v2034
      %v2099 = vadd.f32 %v1582, %v2035
      %v2100 = vadd.f32 %v1583, %v2036
      %v2101 = vadd.f32 %v1584, %v2037
      %v2102 = vadd.f32 %v1585, %v2038
      %v2103 = vadd.f32 %v1586, %v2039
      %v2104 = vadd.f32 %v1587, %v2040
      %v2105 = vadd.f32 %v1588, %v2041
      %v2106 = vadd.f32 %v1589, %v2042
      %2107 = vset.pattern.permute.xlu0 1
      %2108 = vperm.xlu0 %2107, %v1590
      %v2109 = vpop.permute.xlu0 %2108
      %2111 = vset.pattern.permute.xlu0 1
      %2112 = vperm.xlu0 %2111, %v1591
      %v2113 = vpop.permute.xlu0 %2112
      %2115 = vset.pattern.permute.xlu0 1
      %2116 = vperm.xlu0 %2115, %v1592
      %v2117 = vpop.permute.xlu0 %2116
      %2119 = vset.pattern.permute.xlu0 1
      %2120 = vperm.xlu0 %2119, %v1593
      %v2121 = vpop.permute.xlu0 %2120
      %2123 = vset.pattern.permute.xlu0 1
      %2124 = vperm.xlu0 %2123, %v1594
      %v2125 = vpop.permute.xlu0 %2124
      %2127 = vset.pattern.permute.xlu0 1
      %2128 = vperm.xlu0 %2127, %v1595
      %v2129 = vpop.permute.xlu0 %2128
      %2131 = vset.pattern.permute.xlu0 1
      %2132 = vperm.xlu0 %2131, %v1596
      %v2133 = vpop.permute.xlu0 %2132
      %2135 = vset.pattern.permute.xlu0 1
      %2136 = vperm.xlu0 %2135, %v1597
      %v2137 = vpop.permute.xlu0 %2136
      %2139 = vset.pattern.permute.xlu0 1
      %2140 = vperm.xlu0 %2139, %v1598
      %v2141 = vpop.permute.xlu0 %2140
      %2143 = vset.pattern.permute.xlu0 1
      %2144 = vperm.xlu0 %2143, %v1599
      %v2145 = vpop.permute.xlu0 %2144
      %2147 = vset.pattern.permute.xlu0 1
      %2148 = vperm.xlu0 %2147, %v1600
      %v2149 = vpop.permute.xlu0 %2148
      %2151 = vset.pattern.permute.xlu0 1
      %2152 = vperm.xlu0 %2151, %v1601
      %v2153 = vpop.permute.xlu0 %2152
      %2155 = vset.pattern.permute.xlu0 1
      %2156 = vperm.xlu0 %2155, %v1602
      %v2157 = vpop.permute.xlu0 %2156
      %2159 = vset.pattern.permute.xlu0 1
      %2160 = vperm.xlu0 %2159, %v1603
      %v2161 = vpop.permute.xlu0 %2160
      %2163 = vset.pattern.permute.xlu0 1
      %2164 = vperm.xlu0 %2163, %v1604
      %v2165 = vpop.permute.xlu0 %2164
      %2167 = vset.pattern.permute.xlu0 1
      %2168 = vperm.xlu0 %2167, %v1605
      %v2169 = vpop.permute.xlu0 %2168
      %2171 = vset.pattern.permute.xlu0 1
      %2172 = vperm.xlu0 %2171, %v1606
      %v2173 = vpop.permute.xlu0 %2172
      %2175 = vset.pattern.permute.xlu0 1
      %2176 = vperm.xlu0 %2175, %v1607
      %v2177 = vpop.permute.xlu0 %2176
      %2179 = vset.pattern.permute.xlu0 1
      %2180 = vperm.xlu0 %2179, %v1608
      %v2181 = vpop.permute.xlu0 %2180
      %2183 = vset.pattern.permute.xlu0 1
      %2184 = vperm.xlu0 %2183, %v1609
      %v2185 = vpop.permute.xlu0 %2184
      %2187 = vset.pattern.permute.xlu0 1
      %2188 = vperm.xlu0 %2187, %v1610
      %v2189 = vpop.permute.xlu0 %2188
      %2191 = vset.pattern.permute.xlu0 1
      %2192 = vperm.xlu0 %2191, %v1611
      %v2193 = vpop.permute.xlu0 %2192
      %2195 = vset.pattern.permute.xlu0 1
      %2196 = vperm.xlu0 %2195, %v1612
      %v2197 = vpop.permute.xlu0 %2196
      %2199 = vset.pattern.permute.xlu0 1
      %2200 = vperm.xlu0 %2199, %v1613
      %v2201 = vpop.permute.xlu0 %2200
      %2203 = vset.pattern.permute.xlu0 1
      %2204 = vperm.xlu0 %2203, %v1614
      %v2205 = vpop.permute.xlu0 %2204
      %2207 = vset.pattern.permute.xlu0 1
      %2208 = vperm.xlu0 %2207, %v1615
      %v2209 = vpop.permute.xlu0 %2208
      %2211 = vset.pattern.permute.xlu0 1
      %2212 = vperm.xlu0 %2211, %v1616
      %v2213 = vpop.permute.xlu0 %2212
      %2215 = vset.pattern.permute.xlu0 1
      %2216 = vperm.xlu0 %2215, %v1617
      %v2217 = vpop.permute.xlu0 %2216
      %2219 = vset.pattern.permute.xlu0 1
      %2220 = vperm.xlu0 %2219, %v1618
      %v2221 = vpop.permute.xlu0 %2220
      %2223 = vset.pattern.permute.xlu0 1
      %2224 = vperm.xlu0 %2223, %v1619
      %v2225 = vpop.permute.xlu0 %2224
      %2227 = vset.pattern.permute.xlu0 1
      %2228 = vperm.xlu0 %2227, %v1620
      %v2229 = vpop.permute.xlu0 %2228
      %2231 = vset.pattern.permute.xlu0 1
      %2232 = vperm.xlu0 %2231, %v1621
      %v2233 = vpop.permute.xlu0 %2232
      %2235 = vset.pattern.permute.xlu0 1
      %2236 = vperm.xlu0 %2235, %v1622
      %v2237 = vpop.permute.xlu0 %2236
      %2239 = vset.pattern.permute.xlu0 1
      %2240 = vperm.xlu0 %2239, %v1623
      %v2241 = vpop.permute.xlu0 %2240
      %2243 = vset.pattern.permute.xlu0 1
      %2244 = vperm.xlu0 %2243, %v1624
      %v2245 = vpop.permute.xlu0 %2244
      %2247 = vset.pattern.permute.xlu0 1
      %2248 = vperm.xlu0 %2247, %v1625
      %v2249 = vpop.permute.xlu0 %2248
      %2251 = vset.pattern.permute.xlu0 1
      %2252 = vperm.xlu0 %2251, %v1626
      %v2253 = vpop.permute.xlu0 %2252
      %2255 = vset.pattern.permute.xlu0 1
      %2256 = vperm.xlu0 %2255, %v1627
      %v2257 = vpop.permute.xlu0 %2256
      %2259 = vset.pattern.permute.xlu0 1
      %2260 = vperm.xlu0 %2259, %v1628
      %v2261 = vpop.permute.xlu0 %2260
      %2263 = vset.pattern.permute.xlu0 1
      %2264 = vperm.xlu0 %2263, %v1629
      %v2265 = vpop.permute.xlu0 %2264
      %2267 = vset.pattern.permute.xlu0 1
      %2268 = vperm.xlu0 %2267, %v1630
      %v2269 = vpop.permute.xlu0 %2268
      %2271 = vset.pattern.permute.xlu0 1
      %2272 = vperm.xlu0 %2271, %v1631
      %v2273 = vpop.permute.xlu0 %2272
      %2275 = vset.pattern.permute.xlu0 1
      %2276 = vperm.xlu0 %2275, %v1632
      %v2277 = vpop.permute.xlu0 %2276
      %2279 = vset.pattern.permute.xlu0 1
      %2280 = vperm.xlu0 %2279, %v1633
      %v2281 = vpop.permute.xlu0 %2280
      %2283 = vset.pattern.permute.xlu0 1
      %2284 = vperm.xlu0 %2283, %v1634
      %v2285 = vpop.permute.xlu0 %2284
      %2287 = vset.pattern.permute.xlu0 1
      %2288 = vperm.xlu0 %2287, %v1635
      %v2289 = vpop.permute.xlu0 %2288
      %2291 = vset.pattern.permute.xlu0 1
      %2292 = vperm.xlu0 %2291, %v1636
      %v2293 = vpop.permute.xlu0 %2292
      %2295 = vset.pattern.permute.xlu0 1
      %2296 = vperm.xlu0 %2295, %v1637
      %v2297 = vpop.permute.xlu0 %2296
      %2299 = vset.pattern.permute.xlu0 1
      %2300 = vperm.xlu0 %2299, %v1638
      %v2301 = vpop.permute.xlu0 %2300
      %2303 = vset.pattern.permute.xlu0 1
      %2304 = vperm.xlu0 %2303, %v1639
      %v2305 = vpop.permute.xlu0 %2304
      %2307 = vset.pattern.permute.xlu0 1
      %2308 = vperm.xlu0 %2307, %v1640
      %v2309 = vpop.permute.xlu0 %2308
      %2311 = vset.pattern.permute.xlu0 1
      %2312 = vperm.xlu0 %2311, %v1641
      %v2313 = vpop.permute.xlu0 %2312
      %2315 = vset.pattern.permute.xlu0 1
      %2316 = vperm.xlu0 %2315, %v1642
      %v2317 = vpop.permute.xlu0 %2316
      %2319 = vset.pattern.permute.xlu0 1
      %2320 = vperm.xlu0 %2319, %v1643
      %v2321 = vpop.permute.xlu0 %2320
      %2323 = vset.pattern.permute.xlu0 1
      %2324 = vperm.xlu0 %2323, %v1644
      %v2325 = vpop.permute.xlu0 %2324
      %2327 = vset.pattern.permute.xlu0 1
      %2328 = vperm.xlu0 %2327, %v1645
      %v2329 = vpop.permute.xlu0 %2328
      %2331 = vset.pattern.permute.xlu0 1
      %2332 = vperm.xlu0 %2331, %v1646
      %v2333 = vpop.permute.xlu0 %2332
      %2335 = vset.pattern.permute.xlu0 1
      %2336 = vperm.xlu0 %2335, %v1647
      %v2337 = vpop.permute.xlu0 %2336
      %2339 = vset.pattern.permute.xlu0 1
      %2340 = vperm.xlu0 %2339, %v1648
      %v2341 = vpop.permute.xlu0 %2340
      %2343 = vset.pattern.permute.xlu0 1
      %2344 = vperm.xlu0 %2343, %v1649
      %v2345 = vpop.permute.xlu0 %2344
      %2347 = vset.pattern.permute.xlu0 1
      %2348 = vperm.xlu0 %2347, %v1650
      %v2349 = vpop.permute.xlu0 %2348
      %2351 = vset.pattern.permute.xlu0 1
      %2352 = vperm.xlu0 %2351, %v1651
      %v2353 = vpop.permute.xlu0 %2352
      %2355 = vset.pattern.permute.xlu0 1
      %2356 = vperm.xlu0 %2355, %v1652
      %v2357 = vpop.permute.xlu0 %2356
      %2359 = vset.pattern.permute.xlu0 1
      %2360 = vperm.xlu0 %2359, %v1653
      %v2361 = vpop.permute.xlu0 %2360
      %v2363 = vlaneseq
      %v2364 = vshrl.u32 %v2363, 7
      %v2365 = vsub.s32 1, %v2364
      %v2366 = vrot.slane %v1654, %v2365
      %v2367 = vmul.f32 %v2109, %v2366
      %v2368 = vmul.f32 %v2113, %v2366
      %v2369 = vmul.f32 %v2117, %v2366
      %v2370 = vmul.f32 %v2121, %v2366
      %v2371 = vmul.f32 %v2125, %v2366
      %v2372 = vmul.f32 %v2129, %v2366
      %v2373 = vmul.f32 %v2133, %v2366
      %v2374 = vmul.f32 %v2137, %v2366
      %v2375 = vmul.f32 %v2141, %v2366
      %v2376 = vmul.f32 %v2145, %v2366
      %v2377 = vmul.f32 %v2149, %v2366
      %v2378 = vmul.f32 %v2153, %v2366
      %v2379 = vmul.f32 %v2157, %v2366
      %v2380 = vmul.f32 %v2161, %v2366
      %v2381 = vmul.f32 %v2165, %v2366
      %v2382 = vmul.f32 %v2169, %v2366
      %v2383 = vmul.f32 %v2173, %v2366
      %v2384 = vmul.f32 %v2177, %v2366
      %v2385 = vmul.f32 %v2181, %v2366
      %v2386 = vmul.f32 %v2185, %v2366
      %v2387 = vmul.f32 %v2189, %v2366
      %v2388 = vmul.f32 %v2193, %v2366
      %v2389 = vmul.f32 %v2197, %v2366
      %v2390 = vmul.f32 %v2201, %v2366
      %v2391 = vmul.f32 %v2205, %v2366
      %v2392 = vmul.f32 %v2209, %v2366
      %v2393 = vmul.f32 %v2213, %v2366
      %v2394 = vmul.f32 %v2217, %v2366
      %v2395 = vmul.f32 %v2221, %v2366
      %v2396 = vmul.f32 %v2225, %v2366
      %v2397 = vmul.f32 %v2229, %v2366
      %v2398 = vmul.f32 %v2233, %v2366
      %v2399 = vmul.f32 %v2237, %v2366
      %v2400 = vmul.f32 %v2241, %v2366
      %v2401 = vmul.f32 %v2245, %v2366
      %v2402 = vmul.f32 %v2249, %v2366
      %v2403 = vmul.f32 %v2253, %v2366
      %v2404 = vmul.f32 %v2257, %v2366
      %v2405 = vmul.f32 %v2261, %v2366
      %v2406 = vmul.f32 %v2265, %v2366
      %v2407 = vmul.f32 %v2269, %v2366
      %v2408 = vmul.f32 %v2273, %v2366
      %v2409 = vmul.f32 %v2277, %v2366
      %v2410 = vmul.f32 %v2281, %v2366
      %v2411 = vmul.f32 %v2285, %v2366
      %v2412 = vmul.f32 %v2289, %v2366
      %v2413 = vmul.f32 %v2293, %v2366
      %v2414 = vmul.f32 %v2297, %v2366
      %v2415 = vmul.f32 %v2301, %v2366
      %v2416 = vmul.f32 %v2305, %v2366
      %v2417 = vmul.f32 %v2309, %v2366
      %v2418 = vmul.f32 %v2313, %v2366
      %v2419 = vmul.f32 %v2317, %v2366
      %v2420 = vmul.f32 %v2321, %v2366
      %v2421 = vmul.f32 %v2325, %v2366
      %v2422 = vmul.f32 %v2329, %v2366
      %v2423 = vmul.f32 %v2333, %v2366
      %v2424 = vmul.f32 %v2337, %v2366
      %v2425 = vmul.f32 %v2341, %v2366
      %v2426 = vmul.f32 %v2345, %v2366
      %v2427 = vmul.f32 %v2349, %v2366
      %v2428 = vmul.f32 %v2353, %v2366
      %v2429 = vmul.f32 %v2357, %v2366
      %v2430 = vmul.f32 %v2361, %v2366
      %v2431 = vadd.f32 %v2043, %v2367
      %v2432 = vadd.f32 %v2044, %v2368
      %v2433 = vadd.f32 %v2045, %v2369
      %v2434 = vadd.f32 %v2046, %v2370
      %v2435 = vadd.f32 %v2047, %v2371
      %v2436 = vadd.f32 %v2048, %v2372
      %v2437 = vadd.f32 %v2049, %v2373
      %v2438 = vadd.f32 %v2050, %v2374
      %v2439 = vadd.f32 %v2051, %v2375
      %v2440 = vadd.f32 %v2052, %v2376
      %v2441 = vadd.f32 %v2053, %v2377
      %v2442 = vadd.f32 %v2054, %v2378
      %v2443 = vadd.f32 %v2055, %v2379
      %v2444 = vadd.f32 %v2056, %v2380
      %v2445 = vadd.f32 %v2057, %v2381
      %v2446 = vadd.f32 %v2058, %v2382
      %v2447 = vadd.f32 %v2059, %v2383
      %v2448 = vadd.f32 %v2060, %v2384
      %v2449 = vadd.f32 %v2061, %v2385
      %v2450 = vadd.f32 %v2062, %v2386
      %v2451 = vadd.f32 %v2063, %v2387
      %v2452 = vadd.f32 %v2064, %v2388
      %v2453 = vadd.f32 %v2065, %v2389
      %v2454 = vadd.f32 %v2066, %v2390
      %v2455 = vadd.f32 %v2067, %v2391
      %v2456 = vadd.f32 %v2068, %v2392
      %v2457 = vadd.f32 %v2069, %v2393
      %v2458 = vadd.f32 %v2070, %v2394
      %v2459 = vadd.f32 %v2071, %v2395
      %v2460 = vadd.f32 %v2072, %v2396
      %v2461 = vadd.f32 %v2073, %v2397
      %v2462 = vadd.f32 %v2074, %v2398
      %v2463 = vadd.f32 %v2075, %v2399
      %v2464 = vadd.f32 %v2076, %v2400
      %v2465 = vadd.f32 %v2077, %v2401
      %v2466 = vadd.f32 %v2078, %v2402
      %v2467 = vadd.f32 %v2079, %v2403
      %v2468 = vadd.f32 %v2080, %v2404
      %v2469 = vadd.f32 %v2081, %v2405
      %v2470 = vadd.f32 %v2082, %v2406
      %v2471 = vadd.f32 %v2083, %v2407
      %v2472 = vadd.f32 %v2084, %v2408
      %v2473 = vadd.f32 %v2085, %v2409
      %v2474 = vadd.f32 %v2086, %v2410
      %v2475 = vadd.f32 %v2087, %v2411
      %v2476 = vadd.f32 %v2088, %v2412
      %v2477 = vadd.f32 %v2089, %v2413
      %v2478 = vadd.f32 %v2090, %v2414
      %v2479 = vadd.f32 %v2091, %v2415
      %v2480 = vadd.f32 %v2092, %v2416
      %v2481 = vadd.f32 %v2093, %v2417
      %v2482 = vadd.f32 %v2094, %v2418
      %v2483 = vadd.f32 %v2095, %v2419
      %v2484 = vadd.f32 %v2096, %v2420
      %v2485 = vadd.f32 %v2097, %v2421
      %v2486 = vadd.f32 %v2098, %v2422
      %v2487 = vadd.f32 %v2099, %v2423
      %v2488 = vadd.f32 %v2100, %v2424
      %v2489 = vadd.f32 %v2101, %v2425
      %v2490 = vadd.f32 %v2102, %v2426
      %v2491 = vadd.f32 %v2103, %v2427
      %v2492 = vadd.f32 %v2104, %v2428
      %v2493 = vadd.f32 %v2105, %v2429
      %v2494 = vadd.f32 %v2106, %v2430
      %2495 = vset.pattern.permute.xlu0 2
      %2496 = vperm.xlu0 %2495, %v1590
      %v2497 = vpop.permute.xlu0 %2496
      %2499 = vset.pattern.permute.xlu0 2
      %2500 = vperm.xlu0 %2499, %v1591
      %v2501 = vpop.permute.xlu0 %2500
      %2503 = vset.pattern.permute.xlu0 2
      %2504 = vperm.xlu0 %2503, %v1592
      %v2505 = vpop.permute.xlu0 %2504
      %2507 = vset.pattern.permute.xlu0 2
      %2508 = vperm.xlu0 %2507, %v1593
      %v2509 = vpop.permute.xlu0 %2508
      %2511 = vset.pattern.permute.xlu0 2
      %2512 = vperm.xlu0 %2511, %v1594
      %v2513 = vpop.permute.xlu0 %2512
      %2515 = vset.pattern.permute.xlu0 2
      %2516 = vperm.xlu0 %2515, %v1595
      %v2517 = vpop.permute.xlu0 %2516
      %2519 = vset.pattern.permute.xlu0 2
      %2520 = vperm.xlu0 %2519, %v1596
      %v2521 = vpop.permute.xlu0 %2520
      %2523 = vset.pattern.permute.xlu0 2
      %2524 = vperm.xlu0 %2523, %v1597
      %v2525 = vpop.permute.xlu0 %2524
      %2527 = vset.pattern.permute.xlu0 2
      %2528 = vperm.xlu0 %2527, %v1598
      %v2529 = vpop.permute.xlu0 %2528
      %2531 = vset.pattern.permute.xlu0 2
      %2532 = vperm.xlu0 %2531, %v1599
      %v2533 = vpop.permute.xlu0 %2532
      %2535 = vset.pattern.permute.xlu0 2
      %2536 = vperm.xlu0 %2535, %v1600
      %v2537 = vpop.permute.xlu0 %2536
      %2539 = vset.pattern.permute.xlu0 2
      %2540 = vperm.xlu0 %2539, %v1601
      %v2541 = vpop.permute.xlu0 %2540
      %2543 = vset.pattern.permute.xlu0 2
      %2544 = vperm.xlu0 %2543, %v1602
      %v2545 = vpop.permute.xlu0 %2544
      %2547 = vset.pattern.permute.xlu0 2
      %2548 = vperm.xlu0 %2547, %v1603
      %v2549 = vpop.permute.xlu0 %2548
      %2551 = vset.pattern.permute.xlu0 2
      %2552 = vperm.xlu0 %2551, %v1604
      %v2553 = vpop.permute.xlu0 %2552
      %2555 = vset.pattern.permute.xlu0 2
      %2556 = vperm.xlu0 %2555, %v1605
      %v2557 = vpop.permute.xlu0 %2556
      %2559 = vset.pattern.permute.xlu0 2
      %2560 = vperm.xlu0 %2559, %v1606
      %v2561 = vpop.permute.xlu0 %2560
      %2563 = vset.pattern.permute.xlu0 2
      %2564 = vperm.xlu0 %2563, %v1607
      %v2565 = vpop.permute.xlu0 %2564
      %2567 = vset.pattern.permute.xlu0 2
      %2568 = vperm.xlu0 %2567, %v1608
      %v2569 = vpop.permute.xlu0 %2568
      %2571 = vset.pattern.permute.xlu0 2
      %2572 = vperm.xlu0 %2571, %v1609
      %v2573 = vpop.permute.xlu0 %2572
      %2575 = vset.pattern.permute.xlu0 2
      %2576 = vperm.xlu0 %2575, %v1610
      %v2577 = vpop.permute.xlu0 %2576
      %2579 = vset.pattern.permute.xlu0 2
      %2580 = vperm.xlu0 %2579, %v1611
      %v2581 = vpop.permute.xlu0 %2580
      %2583 = vset.pattern.permute.xlu0 2
      %2584 = vperm.xlu0 %2583, %v1612
      %v2585 = vpop.permute.xlu0 %2584
      %2587 = vset.pattern.permute.xlu0 2
      %2588 = vperm.xlu0 %2587, %v1613
      %v2589 = vpop.permute.xlu0 %2588
      %2591 = vset.pattern.permute.xlu0 2
      %2592 = vperm.xlu0 %2591, %v1614
      %v2593 = vpop.permute.xlu0 %2592
      %2595 = vset.pattern.permute.xlu0 2
      %2596 = vperm.xlu0 %2595, %v1615
      %v2597 = vpop.permute.xlu0 %2596
      %2599 = vset.pattern.permute.xlu0 2
      %2600 = vperm.xlu0 %2599, %v1616
      %v2601 = vpop.permute.xlu0 %2600
      %2603 = vset.pattern.permute.xlu0 2
      %2604 = vperm.xlu0 %2603, %v1617
      %v2605 = vpop.permute.xlu0 %2604
      %2607 = vset.pattern.permute.xlu0 2
      %2608 = vperm.xlu0 %2607, %v1618
      %v2609 = vpop.permute.xlu0 %2608
      %2611 = vset.pattern.permute.xlu0 2
      %2612 = vperm.xlu0 %2611, %v1619
      %v2613 = vpop.permute.xlu0 %2612
      %2615 = vset.pattern.permute.xlu0 2
      %2616 = vperm.xlu0 %2615, %v1620
      %v2617 = vpop.permute.xlu0 %2616
      %2619 = vset.pattern.permute.xlu0 2
      %2620 = vperm.xlu0 %2619, %v1621
      %v2621 = vpop.permute.xlu0 %2620
      %2623 = vset.pattern.permute.xlu0 2
      %2624 = vperm.xlu0 %2623, %v1622
      %v2625 = vpop.permute.xlu0 %2624
      %2627 = vset.pattern.permute.xlu0 2
      %2628 = vperm.xlu0 %2627, %v1623
      %v2629 = vpop.permute.xlu0 %2628
      %2631 = vset.pattern.permute.xlu0 2
      %2632 = vperm.xlu0 %2631, %v1624
      %v2633 = vpop.permute.xlu0 %2632
      %2635 = vset.pattern.permute.xlu0 2
      %2636 = vperm.xlu0 %2635, %v1625
      %v2637 = vpop.permute.xlu0 %2636
      %2639 = vset.pattern.permute.xlu0 2
      %2640 = vperm.xlu0 %2639, %v1626
      %v2641 = vpop.permute.xlu0 %2640
      %2643 = vset.pattern.permute.xlu0 2
      %2644 = vperm.xlu0 %2643, %v1627
      %v2645 = vpop.permute.xlu0 %2644
      %2647 = vset.pattern.permute.xlu0 2
      %2648 = vperm.xlu0 %2647, %v1628
      %v2649 = vpop.permute.xlu0 %2648
      %2651 = vset.pattern.permute.xlu0 2
      %2652 = vperm.xlu0 %2651, %v1629
      %v2653 = vpop.permute.xlu0 %2652
      %2655 = vset.pattern.permute.xlu0 2
      %2656 = vperm.xlu0 %2655, %v1630
      %v2657 = vpop.permute.xlu0 %2656
      %2659 = vset.pattern.permute.xlu0 2
      %2660 = vperm.xlu0 %2659, %v1631
      %v2661 = vpop.permute.xlu0 %2660
      %2663 = vset.pattern.permute.xlu0 2
      %2664 = vperm.xlu0 %2663, %v1632
      %v2665 = vpop.permute.xlu0 %2664
      %2667 = vset.pattern.permute.xlu0 2
      %2668 = vperm.xlu0 %2667, %v1633
      %v2669 = vpop.permute.xlu0 %2668
      %2671 = vset.pattern.permute.xlu0 2
      %2672 = vperm.xlu0 %2671, %v1634
      %v2673 = vpop.permute.xlu0 %2672
      %2675 = vset.pattern.permute.xlu0 2
      %2676 = vperm.xlu0 %2675, %v1635
      %v2677 = vpop.permute.xlu0 %2676
      %2679 = vset.pattern.permute.xlu0 2
      %2680 = vperm.xlu0 %2679, %v1636
      %v2681 = vpop.permute.xlu0 %2680
      %2683 = vset.pattern.permute.xlu0 2
      %2684 = vperm.xlu0 %2683, %v1637
      %v2685 = vpop.permute.xlu0 %2684
      %2687 = vset.pattern.permute.xlu0 2
      %2688 = vperm.xlu0 %2687, %v1638
      %v2689 = vpop.permute.xlu0 %2688
      %2691 = vset.pattern.permute.xlu0 2
      %2692 = vperm.xlu0 %2691, %v1639
      %v2693 = vpop.permute.xlu0 %2692
      %2695 = vset.pattern.permute.xlu0 2
      %2696 = vperm.xlu0 %2695, %v1640
      %v2697 = vpop.permute.xlu0 %2696
      %2699 = vset.pattern.permute.xlu0 2
      %2700 = vperm.xlu0 %2699, %v1641
      %v2701 = vpop.permute.xlu0 %2700
      %2703 = vset.pattern.permute.xlu0 2
      %2704 = vperm.xlu0 %2703, %v1642
      %v2705 = vpop.permute.xlu0 %2704
      %2707 = vset.pattern.permute.xlu0 2
      %2708 = vperm.xlu0 %2707, %v1643
      %v2709 = vpop.permute.xlu0 %2708
      %2711 = vset.pattern.permute.xlu0 2
      %2712 = vperm.xlu0 %2711, %v1644
      %v2713 = vpop.permute.xlu0 %2712
      %2715 = vset.pattern.permute.xlu0 2
      %2716 = vperm.xlu0 %2715, %v1645
      %v2717 = vpop.permute.xlu0 %2716
      %2719 = vset.pattern.permute.xlu0 2
      %2720 = vperm.xlu0 %2719, %v1646
      %v2721 = vpop.permute.xlu0 %2720
      %2723 = vset.pattern.permute.xlu0 2
      %2724 = vperm.xlu0 %2723, %v1647
      %v2725 = vpop.permute.xlu0 %2724
      %2727 = vset.pattern.permute.xlu0 2
      %2728 = vperm.xlu0 %2727, %v1648
      %v2729 = vpop.permute.xlu0 %2728
      %2731 = vset.pattern.permute.xlu0 2
      %2732 = vperm.xlu0 %2731, %v1649
      %v2733 = vpop.permute.xlu0 %2732
      %2735 = vset.pattern.permute.xlu0 2
      %2736 = vperm.xlu0 %2735, %v1650
      %v2737 = vpop.permute.xlu0 %2736
      %2739 = vset.pattern.permute.xlu0 2
      %2740 = vperm.xlu0 %2739, %v1651
      %v2741 = vpop.permute.xlu0 %2740
      %2743 = vset.pattern.permute.xlu0 2
      %2744 = vperm.xlu0 %2743, %v1652
      %v2745 = vpop.permute.xlu0 %2744
      %2747 = vset.pattern.permute.xlu0 2
      %2748 = vperm.xlu0 %2747, %v1653
      %v2749 = vpop.permute.xlu0 %2748
      %v2751 = vlaneseq
      %v2752 = vshrl.u32 %v2751, 7
      %v2753 = vsub.s32 2, %v2752
      %v2754 = vrot.slane %v1654, %v2753
      %v2755 = vmul.f32 %v2497, %v2754
      %v2756 = vmul.f32 %v2501, %v2754
      %v2757 = vmul.f32 %v2505, %v2754
      %v2758 = vmul.f32 %v2509, %v2754
      %v2759 = vmul.f32 %v2513, %v2754
      %v2760 = vmul.f32 %v2517, %v2754
      %v2761 = vmul.f32 %v2521, %v2754
      %v2762 = vmul.f32 %v2525, %v2754
      %v2763 = vmul.f32 %v2529, %v2754
      %v2764 = vmul.f32 %v2533, %v2754
      %v2765 = vmul.f32 %v2537, %v2754
      %v2766 = vmul.f32 %v2541, %v2754
      %v2767 = vmul.f32 %v2545, %v2754
      %v2768 = vmul.f32 %v2549, %v2754
      %v2769 = vmul.f32 %v2553, %v2754
      %v2770 = vmul.f32 %v2557, %v2754
      %v2771 = vmul.f32 %v2561, %v2754
      %v2772 = vmul.f32 %v2565, %v2754
      %v2773 = vmul.f32 %v2569, %v2754
      %v2774 = vmul.f32 %v2573, %v2754
      %v2775 = vmul.f32 %v2577, %v2754
      %v2776 = vmul.f32 %v2581, %v2754
      %v2777 = vmul.f32 %v2585, %v2754
      %v2778 = vmul.f32 %v2589, %v2754
      %v2779 = vmul.f32 %v2593, %v2754
      %v2780 = vmul.f32 %v2597, %v2754
      %v2781 = vmul.f32 %v2601, %v2754
      %v2782 = vmul.f32 %v2605, %v2754
      %v2783 = vmul.f32 %v2609, %v2754
      %v2784 = vmul.f32 %v2613, %v2754
      %v2785 = vmul.f32 %v2617, %v2754
      %v2786 = vmul.f32 %v2621, %v2754
      %v2787 = vmul.f32 %v2625, %v2754
      %v2788 = vmul.f32 %v2629, %v2754
      %v2789 = vmul.f32 %v2633, %v2754
      %v2790 = vmul.f32 %v2637, %v2754
      %v2791 = vmul.f32 %v2641, %v2754
      %v2792 = vmul.f32 %v2645, %v2754
      %v2793 = vmul.f32 %v2649, %v2754
      %v2794 = vmul.f32 %v2653, %v2754
      %v2795 = vmul.f32 %v2657, %v2754
      %v2796 = vmul.f32 %v2661, %v2754
      %v2797 = vmul.f32 %v2665, %v2754
      %v2798 = vmul.f32 %v2669, %v2754
      %v2799 = vmul.f32 %v2673, %v2754
      %v2800 = vmul.f32 %v2677, %v2754
      %v2801 = vmul.f32 %v2681, %v2754
      %v2802 = vmul.f32 %v2685, %v2754
      %v2803 = vmul.f32 %v2689, %v2754
      %v2804 = vmul.f32 %v2693, %v2754
      %v2805 = vmul.f32 %v2697, %v2754
      %v2806 = vmul.f32 %v2701, %v2754
      %v2807 = vmul.f32 %v2705, %v2754
      %v2808 = vmul.f32 %v2709, %v2754
      %v2809 = vmul.f32 %v2713, %v2754
      %v2810 = vmul.f32 %v2717, %v2754
      %v2811 = vmul.f32 %v2721, %v2754
      %v2812 = vmul.f32 %v2725, %v2754
      %v2813 = vmul.f32 %v2729, %v2754
      %v2814 = vmul.f32 %v2733, %v2754
      %v2815 = vmul.f32 %v2737, %v2754
      %v2816 = vmul.f32 %v2741, %v2754
      %v2817 = vmul.f32 %v2745, %v2754
      %v2818 = vmul.f32 %v2749, %v2754
      %v2819 = vadd.f32 %v2431, %v2755
      %v2820 = vadd.f32 %v2432, %v2756
      %v2821 = vadd.f32 %v2433, %v2757
      %v2822 = vadd.f32 %v2434, %v2758
      %v2823 = vadd.f32 %v2435, %v2759
      %v2824 = vadd.f32 %v2436, %v2760
      %v2825 = vadd.f32 %v2437, %v2761
      %v2826 = vadd.f32 %v2438, %v2762
      %v2827 = vadd.f32 %v2439, %v2763
      %v2828 = vadd.f32 %v2440, %v2764
      %v2829 = vadd.f32 %v2441, %v2765
      %v2830 = vadd.f32 %v2442, %v2766
      %v2831 = vadd.f32 %v2443, %v2767
      %v2832 = vadd.f32 %v2444, %v2768
      %v2833 = vadd.f32 %v2445, %v2769
      %v2834 = vadd.f32 %v2446, %v2770
      %v2835 = vadd.f32 %v2447, %v2771
      %v2836 = vadd.f32 %v2448, %v2772
      %v2837 = vadd.f32 %v2449, %v2773
      %v2838 = vadd.f32 %v2450, %v2774
      %v2839 = vadd.f32 %v2451, %v2775
      %v2840 = vadd.f32 %v2452, %v2776
      %v2841 = vadd.f32 %v2453, %v2777
      %v2842 = vadd.f32 %v2454, %v2778
      %v2843 = vadd.f32 %v2455, %v2779
      %v2844 = vadd.f32 %v2456, %v2780
      %v2845 = vadd.f32 %v2457, %v2781
      %v2846 = vadd.f32 %v2458, %v2782
      %v2847 = vadd.f32 %v2459, %v2783
      %v2848 = vadd.f32 %v2460, %v2784
      %v2849 = vadd.f32 %v2461, %v2785
      %v2850 = vadd.f32 %v2462, %v2786
      %v2851 = vadd.f32 %v2463, %v2787
      %v2852 = vadd.f32 %v2464, %v2788
      %v2853 = vadd.f32 %v2465, %v2789
      %v2854 = vadd.f32 %v2466, %v2790
      %v2855 = vadd.f32 %v2467, %v2791
      %v2856 = vadd.f32 %v2468, %v2792
      %v2857 = vadd.f32 %v2469, %v2793
      %v2858 = vadd.f32 %v2470, %v2794
      %v2859 = vadd.f32 %v2471, %v2795
      %v2860 = vadd.f32 %v2472, %v2796
      %v2861 = vadd.f32 %v2473, %v2797
      %v2862 = vadd.f32 %v2474, %v2798
      %v2863 = vadd.f32 %v2475, %v2799
      %v2864 = vadd.f32 %v2476, %v2800
      %v2865 = vadd.f32 %v2477, %v2801
      %v2866 = vadd.f32 %v2478, %v2802
      %v2867 = vadd.f32 %v2479, %v2803
      %v2868 = vadd.f32 %v2480, %v2804
      %v2869 = vadd.f32 %v2481, %v2805
      %v2870 = vadd.f32 %v2482, %v2806
      %v2871 = vadd.f32 %v2483, %v2807
      %v2872 = vadd.f32 %v2484, %v2808
      %v2873 = vadd.f32 %v2485, %v2809
      %v2874 = vadd.f32 %v2486, %v2810
      %v2875 = vadd.f32 %v2487, %v2811
      %v2876 = vadd.f32 %v2488, %v2812
      %v2877 = vadd.f32 %v2489, %v2813
      %v2878 = vadd.f32 %v2490, %v2814
      %v2879 = vadd.f32 %v2491, %v2815
      %v2880 = vadd.f32 %v2492, %v2816
      %v2881 = vadd.f32 %v2493, %v2817
      %v2882 = vadd.f32 %v2494, %v2818
      %2883 = vset.pattern.permute.xlu0 3
      %2884 = vperm.xlu0 %2883, %v1590
      %v2885 = vpop.permute.xlu0 %2884
      %2887 = vset.pattern.permute.xlu0 3
      %2888 = vperm.xlu0 %2887, %v1591
      %v2889 = vpop.permute.xlu0 %2888
      %2891 = vset.pattern.permute.xlu0 3
      %2892 = vperm.xlu0 %2891, %v1592
      %v2893 = vpop.permute.xlu0 %2892
      %2895 = vset.pattern.permute.xlu0 3
      %2896 = vperm.xlu0 %2895, %v1593
      %v2897 = vpop.permute.xlu0 %2896
      %2899 = vset.pattern.permute.xlu0 3
      %2900 = vperm.xlu0 %2899, %v1594
      %v2901 = vpop.permute.xlu0 %2900
      %2903 = vset.pattern.permute.xlu0 3
      %2904 = vperm.xlu0 %2903, %v1595
      %v2905 = vpop.permute.xlu0 %2904
      %2907 = vset.pattern.permute.xlu0 3
      %2908 = vperm.xlu0 %2907, %v1596
      %v2909 = vpop.permute.xlu0 %2908
      %2911 = vset.pattern.permute.xlu0 3
      %2912 = vperm.xlu0 %2911, %v1597
      %v2913 = vpop.permute.xlu0 %2912
      %2915 = vset.pattern.permute.xlu0 3
      %2916 = vperm.xlu0 %2915, %v1598
      %v2917 = vpop.permute.xlu0 %2916
      %2919 = vset.pattern.permute.xlu0 3
      %2920 = vperm.xlu0 %2919, %v1599
      %v2921 = vpop.permute.xlu0 %2920
      %2923 = vset.pattern.permute.xlu0 3
      %2924 = vperm.xlu0 %2923, %v1600
      %v2925 = vpop.permute.xlu0 %2924
      %2927 = vset.pattern.permute.xlu0 3
      %2928 = vperm.xlu0 %2927, %v1601
      %v2929 = vpop.permute.xlu0 %2928
      %2931 = vset.pattern.permute.xlu0 3
      %2932 = vperm.xlu0 %2931, %v1602
      %v2933 = vpop.permute.xlu0 %2932
      %2935 = vset.pattern.permute.xlu0 3
      %2936 = vperm.xlu0 %2935, %v1603
      %v2937 = vpop.permute.xlu0 %2936
      %2939 = vset.pattern.permute.xlu0 3
      %2940 = vperm.xlu0 %2939, %v1604
      %v2941 = vpop.permute.xlu0 %2940
      %2943 = vset.pattern.permute.xlu0 3
      %2944 = vperm.xlu0 %2943, %v1605
      %v2945 = vpop.permute.xlu0 %2944
      %2947 = vset.pattern.permute.xlu0 3
      %2948 = vperm.xlu0 %2947, %v1606
      %v2949 = vpop.permute.xlu0 %2948
      %2951 = vset.pattern.permute.xlu0 3
      %2952 = vperm.xlu0 %2951, %v1607
      %v2953 = vpop.permute.xlu0 %2952
      %2955 = vset.pattern.permute.xlu0 3
      %2956 = vperm.xlu0 %2955, %v1608
      %v2957 = vpop.permute.xlu0 %2956
      %2959 = vset.pattern.permute.xlu0 3
      %2960 = vperm.xlu0 %2959, %v1609
      %v2961 = vpop.permute.xlu0 %2960
      %2963 = vset.pattern.permute.xlu0 3
      %2964 = vperm.xlu0 %2963, %v1610
      %v2965 = vpop.permute.xlu0 %2964
      %2967 = vset.pattern.permute.xlu0 3
      %2968 = vperm.xlu0 %2967, %v1611
      %v2969 = vpop.permute.xlu0 %2968
      %2971 = vset.pattern.permute.xlu0 3
      %2972 = vperm.xlu0 %2971, %v1612
      %v2973 = vpop.permute.xlu0 %2972
      %2975 = vset.pattern.permute.xlu0 3
      %2976 = vperm.xlu0 %2975, %v1613
      %v2977 = vpop.permute.xlu0 %2976
      %2979 = vset.pattern.permute.xlu0 3
      %2980 = vperm.xlu0 %2979, %v1614
      %v2981 = vpop.permute.xlu0 %2980
      %2983 = vset.pattern.permute.xlu0 3
      %2984 = vperm.xlu0 %2983, %v1615
      %v2985 = vpop.permute.xlu0 %2984
      %2987 = vset.pattern.permute.xlu0 3
      %2988 = vperm.xlu0 %2987, %v1616
      %v2989 = vpop.permute.xlu0 %2988
      %2991 = vset.pattern.permute.xlu0 3
      %2992 = vperm.xlu0 %2991, %v1617
      %v2993 = vpop.permute.xlu0 %2992
      %2995 = vset.pattern.permute.xlu0 3
      %2996 = vperm.xlu0 %2995, %v1618
      %v2997 = vpop.permute.xlu0 %2996
      %2999 = vset.pattern.permute.xlu0 3
      %3000 = vperm.xlu0 %2999, %v1619
      %v3001 = vpop.permute.xlu0 %3000
      %3003 = vset.pattern.permute.xlu0 3
      %3004 = vperm.xlu0 %3003, %v1620
      %v3005 = vpop.permute.xlu0 %3004
      %3007 = vset.pattern.permute.xlu0 3
      %3008 = vperm.xlu0 %3007, %v1621
      %v3009 = vpop.permute.xlu0 %3008
      %3011 = vset.pattern.permute.xlu0 3
      %3012 = vperm.xlu0 %3011, %v1622
      %v3013 = vpop.permute.xlu0 %3012
      %3015 = vset.pattern.permute.xlu0 3
      %3016 = vperm.xlu0 %3015, %v1623
      %v3017 = vpop.permute.xlu0 %3016
      %3019 = vset.pattern.permute.xlu0 3
      %3020 = vperm.xlu0 %3019, %v1624
      %v3021 = vpop.permute.xlu0 %3020
      %3023 = vset.pattern.permute.xlu0 3
      %3024 = vperm.xlu0 %3023, %v1625
      %v3025 = vpop.permute.xlu0 %3024
      %3027 = vset.pattern.permute.xlu0 3
      %3028 = vperm.xlu0 %3027, %v1626
      %v3029 = vpop.permute.xlu0 %3028
      %3031 = vset.pattern.permute.xlu0 3
      %3032 = vperm.xlu0 %3031, %v1627
      %v3033 = vpop.permute.xlu0 %3032
      %3035 = vset.pattern.permute.xlu0 3
      %3036 = vperm.xlu0 %3035, %v1628
      %v3037 = vpop.permute.xlu0 %3036
      %3039 = vset.pattern.permute.xlu0 3
      %3040 = vperm.xlu0 %3039, %v1629
      %v3041 = vpop.permute.xlu0 %3040
      %3043 = vset.pattern.permute.xlu0 3
      %3044 = vperm.xlu0 %3043, %v1630
      %v3045 = vpop.permute.xlu0 %3044
      %3047 = vset.pattern.permute.xlu0 3
      %3048 = vperm.xlu0 %3047, %v1631
      %v3049 = vpop.permute.xlu0 %3048
      %3051 = vset.pattern.permute.xlu0 3
      %3052 = vperm.xlu0 %3051, %v1632
      %v3053 = vpop.permute.xlu0 %3052
      %3055 = vset.pattern.permute.xlu0 3
      %3056 = vperm.xlu0 %3055, %v1633
      %v3057 = vpop.permute.xlu0 %3056
      %3059 = vset.pattern.permute.xlu0 3
      %3060 = vperm.xlu0 %3059, %v1634
      %v3061 = vpop.permute.xlu0 %3060
      %3063 = vset.pattern.permute.xlu0 3
      %3064 = vperm.xlu0 %3063, %v1635
      %v3065 = vpop.permute.xlu0 %3064
      %3067 = vset.pattern.permute.xlu0 3
      %3068 = vperm.xlu0 %3067, %v1636
      %v3069 = vpop.permute.xlu0 %3068
      %3071 = vset.pattern.permute.xlu0 3
      %3072 = vperm.xlu0 %3071, %v1637
      %v3073 = vpop.permute.xlu0 %3072
      %3075 = vset.pattern.permute.xlu0 3
      %3076 = vperm.xlu0 %3075, %v1638
      %v3077 = vpop.permute.xlu0 %3076
      %3079 = vset.pattern.permute.xlu0 3
      %3080 = vperm.xlu0 %3079, %v1639
      %v3081 = vpop.permute.xlu0 %3080
      %3083 = vset.pattern.permute.xlu0 3
      %3084 = vperm.xlu0 %3083, %v1640
      %v3085 = vpop.permute.xlu0 %3084
      %3087 = vset.pattern.permute.xlu0 3
      %3088 = vperm.xlu0 %3087, %v1641
      %v3089 = vpop.permute.xlu0 %3088
      %3091 = vset.pattern.permute.xlu0 3
      %3092 = vperm.xlu0 %3091, %v1642
      %v3093 = vpop.permute.xlu0 %3092
      %3095 = vset.pattern.permute.xlu0 3
      %3096 = vperm.xlu0 %3095, %v1643
      %v3097 = vpop.permute.xlu0 %3096
      %3099 = vset.pattern.permute.xlu0 3
      %3100 = vperm.xlu0 %3099, %v1644
      %v3101 = vpop.permute.xlu0 %3100
      %3103 = vset.pattern.permute.xlu0 3
      %3104 = vperm.xlu0 %3103, %v1645
      %v3105 = vpop.permute.xlu0 %3104
      %3107 = vset.pattern.permute.xlu0 3
      %3108 = vperm.xlu0 %3107, %v1646
      %v3109 = vpop.permute.xlu0 %3108
      %3111 = vset.pattern.permute.xlu0 3
      %3112 = vperm.xlu0 %3111, %v1647
      %v3113 = vpop.permute.xlu0 %3112
      %3115 = vset.pattern.permute.xlu0 3
      %3116 = vperm.xlu0 %3115, %v1648
      %v3117 = vpop.permute.xlu0 %3116
      %3119 = vset.pattern.permute.xlu0 3
      %3120 = vperm.xlu0 %3119, %v1649
      %v3121 = vpop.permute.xlu0 %3120
      %3123 = vset.pattern.permute.xlu0 3
      %3124 = vperm.xlu0 %3123, %v1650
      %v3125 = vpop.permute.xlu0 %3124
      %3127 = vset.pattern.permute.xlu0 3
      %3128 = vperm.xlu0 %3127, %v1651
      %v3129 = vpop.permute.xlu0 %3128
      %3131 = vset.pattern.permute.xlu0 3
      %3132 = vperm.xlu0 %3131, %v1652
      %v3133 = vpop.permute.xlu0 %3132
      %3135 = vset.pattern.permute.xlu0 3
      %3136 = vperm.xlu0 %3135, %v1653
      %v3137 = vpop.permute.xlu0 %3136
      %v3139 = vlaneseq
      %v3140 = vshrl.u32 %v3139, 7
      %v3141 = vsub.s32 3, %v3140
      %v3142 = vrot.slane %v1654, %v3141
      %v3143 = vmul.f32 %v2885, %v3142
      %v3144 = vmul.f32 %v2889, %v3142
      %v3145 = vmul.f32 %v2893, %v3142
      %v3146 = vmul.f32 %v2897, %v3142
      %v3147 = vmul.f32 %v2901, %v3142
      %v3148 = vmul.f32 %v2905, %v3142
      %v3149 = vmul.f32 %v2909, %v3142
      %v3150 = vmul.f32 %v2913, %v3142
      %v3151 = vmul.f32 %v2917, %v3142
      %v3152 = vmul.f32 %v2921, %v3142
      %v3153 = vmul.f32 %v2925, %v3142
      %v3154 = vmul.f32 %v2929, %v3142
      %v3155 = vmul.f32 %v2933, %v3142
      %v3156 = vmul.f32 %v2937, %v3142
      %v3157 = vmul.f32 %v2941, %v3142
      %v3158 = vmul.f32 %v2945, %v3142
      %v3159 = vmul.f32 %v2949, %v3142
      %v3160 = vmul.f32 %v2953, %v3142
      %v3161 = vmul.f32 %v2957, %v3142
      %v3162 = vmul.f32 %v2961, %v3142
      %v3163 = vmul.f32 %v2965, %v3142
      %v3164 = vmul.f32 %v2969, %v3142
      %v3165 = vmul.f32 %v2973, %v3142
      %v3166 = vmul.f32 %v2977, %v3142
      %v3167 = vmul.f32 %v2981, %v3142
      %v3168 = vmul.f32 %v2985, %v3142
      %v3169 = vmul.f32 %v2989, %v3142
      %v3170 = vmul.f32 %v2993, %v3142
      %v3171 = vmul.f32 %v2997, %v3142
      %v3172 = vmul.f32 %v3001, %v3142
      %v3173 = vmul.f32 %v3005, %v3142
      %v3174 = vmul.f32 %v3009, %v3142
      %v3175 = vmul.f32 %v3013, %v3142
      %v3176 = vmul.f32 %v3017, %v3142
      %v3177 = vmul.f32 %v3021, %v3142
      %v3178 = vmul.f32 %v3025, %v3142
      %v3179 = vmul.f32 %v3029, %v3142
      %v3180 = vmul.f32 %v3033, %v3142
      %v3181 = vmul.f32 %v3037, %v3142
      %v3182 = vmul.f32 %v3041, %v3142
      %v3183 = vmul.f32 %v3045, %v3142
      %v3184 = vmul.f32 %v3049, %v3142
      %v3185 = vmul.f32 %v3053, %v3142
      %v3186 = vmul.f32 %v3057, %v3142
      %v3187 = vmul.f32 %v3061, %v3142
      %v3188 = vmul.f32 %v3065, %v3142
      %v3189 = vmul.f32 %v3069, %v3142
      %v3190 = vmul.f32 %v3073, %v3142
      %v3191 = vmul.f32 %v3077, %v3142
      %v3192 = vmul.f32 %v3081, %v3142
      %v3193 = vmul.f32 %v3085, %v3142
      %v3194 = vmul.f32 %v3089, %v3142
      %v3195 = vmul.f32 %v3093, %v3142
      %v3196 = vmul.f32 %v3097, %v3142
      %v3197 = vmul.f32 %v3101, %v3142
      %v3198 = vmul.f32 %v3105, %v3142
      %v3199 = vmul.f32 %v3109, %v3142
      %v3200 = vmul.f32 %v3113, %v3142
      %v3201 = vmul.f32 %v3117, %v3142
      %v3202 = vmul.f32 %v3121, %v3142
      %v3203 = vmul.f32 %v3125, %v3142
      %v3204 = vmul.f32 %v3129, %v3142
      %v3205 = vmul.f32 %v3133, %v3142
      %v3206 = vmul.f32 %v3137, %v3142
      %v3207 = vadd.f32 %v2819, %v3143
      %v3208 = vadd.f32 %v2820, %v3144
      %v3209 = vadd.f32 %v2821, %v3145
      %v3210 = vadd.f32 %v2822, %v3146
      %v3211 = vadd.f32 %v2823, %v3147
      %v3212 = vadd.f32 %v2824, %v3148
      %v3213 = vadd.f32 %v2825, %v3149
      %v3214 = vadd.f32 %v2826, %v3150
      %v3215 = vadd.f32 %v2827, %v3151
      %v3216 = vadd.f32 %v2828, %v3152
      %v3217 = vadd.f32 %v2829, %v3153
      %v3218 = vadd.f32 %v2830, %v3154
      %v3219 = vadd.f32 %v2831, %v3155
      %v3220 = vadd.f32 %v2832, %v3156
      %v3221 = vadd.f32 %v2833, %v3157
      %v3222 = vadd.f32 %v2834, %v3158
      %v3223 = vadd.f32 %v2835, %v3159
      %v3224 = vadd.f32 %v2836, %v3160
      %v3225 = vadd.f32 %v2837, %v3161
      %v3226 = vadd.f32 %v2838, %v3162
      %v3227 = vadd.f32 %v2839, %v3163
      %v3228 = vadd.f32 %v2840, %v3164
      %v3229 = vadd.f32 %v2841, %v3165
      %v3230 = vadd.f32 %v2842, %v3166
      %v3231 = vadd.f32 %v2843, %v3167
      %v3232 = vadd.f32 %v2844, %v3168
      %v3233 = vadd.f32 %v2845, %v3169
      %v3234 = vadd.f32 %v2846, %v3170
      %v3235 = vadd.f32 %v2847, %v3171
      %v3236 = vadd.f32 %v2848, %v3172
      %v3237 = vadd.f32 %v2849, %v3173
      %v3238 = vadd.f32 %v2850, %v3174
      %v3239 = vadd.f32 %v2851, %v3175
      %v3240 = vadd.f32 %v2852, %v3176
      %v3241 = vadd.f32 %v2853, %v3177
      %v3242 = vadd.f32 %v2854, %v3178
      %v3243 = vadd.f32 %v2855, %v3179
      %v3244 = vadd.f32 %v2856, %v3180
      %v3245 = vadd.f32 %v2857, %v3181
      %v3246 = vadd.f32 %v2858, %v3182
      %v3247 = vadd.f32 %v2859, %v3183
      %v3248 = vadd.f32 %v2860, %v3184
      %v3249 = vadd.f32 %v2861, %v3185
      %v3250 = vadd.f32 %v2862, %v3186
      %v3251 = vadd.f32 %v2863, %v3187
      %v3252 = vadd.f32 %v2864, %v3188
      %v3253 = vadd.f32 %v2865, %v3189
      %v3254 = vadd.f32 %v2866, %v3190
      %v3255 = vadd.f32 %v2867, %v3191
      %v3256 = vadd.f32 %v2868, %v3192
      %v3257 = vadd.f32 %v2869, %v3193
      %v3258 = vadd.f32 %v2870, %v3194
      %v3259 = vadd.f32 %v2871, %v3195
      %v3260 = vadd.f32 %v2872, %v3196
      %v3261 = vadd.f32 %v2873, %v3197
      %v3262 = vadd.f32 %v2874, %v3198
      %v3263 = vadd.f32 %v2875, %v3199
      %v3264 = vadd.f32 %v2876, %v3200
      %v3265 = vadd.f32 %v2877, %v3201
      %v3266 = vadd.f32 %v2878, %v3202
      %v3267 = vadd.f32 %v2879, %v3203
      %v3268 = vadd.f32 %v2880, %v3204
      %v3269 = vadd.f32 %v2881, %v3205
      %v3270 = vadd.f32 %v2882, %v3206
      %3271 = vset.pattern.permute.xlu0 4
      %3272 = vperm.xlu0 %3271, %v1590
      %v3273 = vpop.permute.xlu0 %3272
      %3275 = vset.pattern.permute.xlu0 4
      %3276 = vperm.xlu0 %3275, %v1591
      %v3277 = vpop.permute.xlu0 %3276
      %3279 = vset.pattern.permute.xlu0 4
      %3280 = vperm.xlu0 %3279, %v1592
      %v3281 = vpop.permute.xlu0 %3280
      %3283 = vset.pattern.permute.xlu0 4
      %3284 = vperm.xlu0 %3283, %v1593
      %v3285 = vpop.permute.xlu0 %3284
      %3287 = vset.pattern.permute.xlu0 4
      %3288 = vperm.xlu0 %3287, %v1594
      %v3289 = vpop.permute.xlu0 %3288
      %3291 = vset.pattern.permute.xlu0 4
      %3292 = vperm.xlu0 %3291, %v1595
      %v3293 = vpop.permute.xlu0 %3292
      %3295 = vset.pattern.permute.xlu0 4
      %3296 = vperm.xlu0 %3295, %v1596
      %v3297 = vpop.permute.xlu0 %3296
      %3299 = vset.pattern.permute.xlu0 4
      %3300 = vperm.xlu0 %3299, %v1597
      %v3301 = vpop.permute.xlu0 %3300
      %3303 = vset.pattern.permute.xlu0 4
      %3304 = vperm.xlu0 %3303, %v1598
      %v3305 = vpop.permute.xlu0 %3304
      %3307 = vset.pattern.permute.xlu0 4
      %3308 = vperm.xlu0 %3307, %v1599
      %v3309 = vpop.permute.xlu0 %3308
      %3311 = vset.pattern.permute.xlu0 4
      %3312 = vperm.xlu0 %3311, %v1600
      %v3313 = vpop.permute.xlu0 %3312
      %3315 = vset.pattern.permute.xlu0 4
      %3316 = vperm.xlu0 %3315, %v1601
      %v3317 = vpop.permute.xlu0 %3316
      %3319 = vset.pattern.permute.xlu0 4
      %3320 = vperm.xlu0 %3319, %v1602
      %v3321 = vpop.permute.xlu0 %3320
      %3323 = vset.pattern.permute.xlu0 4
      %3324 = vperm.xlu0 %3323, %v1603
      %v3325 = vpop.permute.xlu0 %3324
      %3327 = vset.pattern.permute.xlu0 4
      %3328 = vperm.xlu0 %3327, %v1604
      %v3329 = vpop.permute.xlu0 %3328
      %3331 = vset.pattern.permute.xlu0 4
      %3332 = vperm.xlu0 %3331, %v1605
      %v3333 = vpop.permute.xlu0 %3332
      %3335 = vset.pattern.permute.xlu0 4
      %3336 = vperm.xlu0 %3335, %v1606
      %v3337 = vpop.permute.xlu0 %3336
      %3339 = vset.pattern.permute.xlu0 4
      %3340 = vperm.xlu0 %3339, %v1607
      %v3341 = vpop.permute.xlu0 %3340
      %3343 = vset.pattern.permute.xlu0 4
      %3344 = vperm.xlu0 %3343, %v1608
      %v3345 = vpop.permute.xlu0 %3344
      %3347 = vset.pattern.permute.xlu0 4
      %3348 = vperm.xlu0 %3347, %v1609
      %v3349 = vpop.permute.xlu0 %3348
      %3351 = vset.pattern.permute.xlu0 4
      %3352 = vperm.xlu0 %3351, %v1610
      %v3353 = vpop.permute.xlu0 %3352
      %3355 = vset.pattern.permute.xlu0 4
      %3356 = vperm.xlu0 %3355, %v1611
      %v3357 = vpop.permute.xlu0 %3356
      %3359 = vset.pattern.permute.xlu0 4
      %3360 = vperm.xlu0 %3359, %v1612
      %v3361 = vpop.permute.xlu0 %3360
      %3363 = vset.pattern.permute.xlu0 4
      %3364 = vperm.xlu0 %3363, %v1613
      %v3365 = vpop.permute.xlu0 %3364
      %3367 = vset.pattern.permute.xlu0 4
      %3368 = vperm.xlu0 %3367, %v1614
      %v3369 = vpop.permute.xlu0 %3368
      %3371 = vset.pattern.permute.xlu0 4
      %3372 = vperm.xlu0 %3371, %v1615
      %v3373 = vpop.permute.xlu0 %3372
      %3375 = vset.pattern.permute.xlu0 4
      %3376 = vperm.xlu0 %3375, %v1616
      %v3377 = vpop.permute.xlu0 %3376
      %3379 = vset.pattern.permute.xlu0 4
      %3380 = vperm.xlu0 %3379, %v1617
      %v3381 = vpop.permute.xlu0 %3380
      %3383 = vset.pattern.permute.xlu0 4
      %3384 = vperm.xlu0 %3383, %v1618
      %v3385 = vpop.permute.xlu0 %3384
      %3387 = vset.pattern.permute.xlu0 4
      %3388 = vperm.xlu0 %3387, %v1619
      %v3389 = vpop.permute.xlu0 %3388
      %3391 = vset.pattern.permute.xlu0 4
      %3392 = vperm.xlu0 %3391, %v1620
      %v3393 = vpop.permute.xlu0 %3392
      %3395 = vset.pattern.permute.xlu0 4
      %3396 = vperm.xlu0 %3395, %v1621
      %v3397 = vpop.permute.xlu0 %3396
      %3399 = vset.pattern.permute.xlu0 4
      %3400 = vperm.xlu0 %3399, %v1622
      %v3401 = vpop.permute.xlu0 %3400
      %3403 = vset.pattern.permute.xlu0 4
      %3404 = vperm.xlu0 %3403, %v1623
      %v3405 = vpop.permute.xlu0 %3404
      %3407 = vset.pattern.permute.xlu0 4
      %3408 = vperm.xlu0 %3407, %v1624
      %v3409 = vpop.permute.xlu0 %3408
      %3411 = vset.pattern.permute.xlu0 4
      %3412 = vperm.xlu0 %3411, %v1625
      %v3413 = vpop.permute.xlu0 %3412
      %3415 = vset.pattern.permute.xlu0 4
      %3416 = vperm.xlu0 %3415, %v1626
      %v3417 = vpop.permute.xlu0 %3416
      %3419 = vset.pattern.permute.xlu0 4
      %3420 = vperm.xlu0 %3419, %v1627
      %v3421 = vpop.permute.xlu0 %3420
      %3423 = vset.pattern.permute.xlu0 4
      %3424 = vperm.xlu0 %3423, %v1628
      %v3425 = vpop.permute.xlu0 %3424
      %3427 = vset.pattern.permute.xlu0 4
      %3428 = vperm.xlu0 %3427, %v1629
      %v3429 = vpop.permute.xlu0 %3428
      %3431 = vset.pattern.permute.xlu0 4
      %3432 = vperm.xlu0 %3431, %v1630
      %v3433 = vpop.permute.xlu0 %3432
      %3435 = vset.pattern.permute.xlu0 4
      %3436 = vperm.xlu0 %3435, %v1631
      %v3437 = vpop.permute.xlu0 %3436
      %3439 = vset.pattern.permute.xlu0 4
      %3440 = vperm.xlu0 %3439, %v1632
      %v3441 = vpop.permute.xlu0 %3440
      %3443 = vset.pattern.permute.xlu0 4
      %3444 = vperm.xlu0 %3443, %v1633
      %v3445 = vpop.permute.xlu0 %3444
      %3447 = vset.pattern.permute.xlu0 4
      %3448 = vperm.xlu0 %3447, %v1634
      %v3449 = vpop.permute.xlu0 %3448
      %3451 = vset.pattern.permute.xlu0 4
      %3452 = vperm.xlu0 %3451, %v1635
      %v3453 = vpop.permute.xlu0 %3452
      %3455 = vset.pattern.permute.xlu0 4
      %3456 = vperm.xlu0 %3455, %v1636
      %v3457 = vpop.permute.xlu0 %3456
      %3459 = vset.pattern.permute.xlu0 4
      %3460 = vperm.xlu0 %3459, %v1637
      %v3461 = vpop.permute.xlu0 %3460
      %3463 = vset.pattern.permute.xlu0 4
      %3464 = vperm.xlu0 %3463, %v1638
      %v3465 = vpop.permute.xlu0 %3464
      %3467 = vset.pattern.permute.xlu0 4
      %3468 = vperm.xlu0 %3467, %v1639
      %v3469 = vpop.permute.xlu0 %3468
      %3471 = vset.pattern.permute.xlu0 4
      %3472 = vperm.xlu0 %3471, %v1640
      %v3473 = vpop.permute.xlu0 %3472
      %3475 = vset.pattern.permute.xlu0 4
      %3476 = vperm.xlu0 %3475, %v1641
      %v3477 = vpop.permute.xlu0 %3476
      %3479 = vset.pattern.permute.xlu0 4
      %3480 = vperm.xlu0 %3479, %v1642
      %v3481 = vpop.permute.xlu0 %3480
      %3483 = vset.pattern.permute.xlu0 4
      %3484 = vperm.xlu0 %3483, %v1643
      %v3485 = vpop.permute.xlu0 %3484
      %3487 = vset.pattern.permute.xlu0 4
      %3488 = vperm.xlu0 %3487, %v1644
      %v3489 = vpop.permute.xlu0 %3488
      %3491 = vset.pattern.permute.xlu0 4
      %3492 = vperm.xlu0 %3491, %v1645
      %v3493 = vpop.permute.xlu0 %3492
      %3495 = vset.pattern.permute.xlu0 4
      %3496 = vperm.xlu0 %3495, %v1646
      %v3497 = vpop.permute.xlu0 %3496
      %3499 = vset.pattern.permute.xlu0 4
      %3500 = vperm.xlu0 %3499, %v1647
      %v3501 = vpop.permute.xlu0 %3500
      %3503 = vset.pattern.permute.xlu0 4
      %3504 = vperm.xlu0 %3503, %v1648
      %v3505 = vpop.permute.xlu0 %3504
      %3507 = vset.pattern.permute.xlu0 4
      %3508 = vperm.xlu0 %3507, %v1649
      %v3509 = vpop.permute.xlu0 %3508
      %3511 = vset.pattern.permute.xlu0 4
      %3512 = vperm.xlu0 %3511, %v1650
      %v3513 = vpop.permute.xlu0 %3512
      %3515 = vset.pattern.permute.xlu0 4
      %3516 = vperm.xlu0 %3515, %v1651
      %v3517 = vpop.permute.xlu0 %3516
      %3519 = vset.pattern.permute.xlu0 4
      %3520 = vperm.xlu0 %3519, %v1652
      %v3521 = vpop.permute.xlu0 %3520
      %3523 = vset.pattern.permute.xlu0 4
      %3524 = vperm.xlu0 %3523, %v1653
      %v3525 = vpop.permute.xlu0 %3524
      %v3527 = vlaneseq
      %v3528 = vshrl.u32 %v3527, 7
      %v3529 = vsub.s32 4, %v3528
      %v3530 = vrot.slane %v1654, %v3529
      %v3531 = vmul.f32 %v3273, %v3530
      %v3532 = vmul.f32 %v3277, %v3530
      %v3533 = vmul.f32 %v3281, %v3530
      %v3534 = vmul.f32 %v3285, %v3530
      %v3535 = vmul.f32 %v3289, %v3530
      %v3536 = vmul.f32 %v3293, %v3530
      %v3537 = vmul.f32 %v3297, %v3530
      %v3538 = vmul.f32 %v3301, %v3530
      %v3539 = vmul.f32 %v3305, %v3530
      %v3540 = vmul.f32 %v3309, %v3530
      %v3541 = vmul.f32 %v3313, %v3530
      %v3542 = vmul.f32 %v3317, %v3530
      %v3543 = vmul.f32 %v3321, %v3530
      %v3544 = vmul.f32 %v3325, %v3530
      %v3545 = vmul.f32 %v3329, %v3530
      %v3546 = vmul.f32 %v3333, %v3530
      %v3547 = vmul.f32 %v3337, %v3530
      %v3548 = vmul.f32 %v3341, %v3530
      %v3549 = vmul.f32 %v3345, %v3530
      %v3550 = vmul.f32 %v3349, %v3530
      %v3551 = vmul.f32 %v3353, %v3530
      %v3552 = vmul.f32 %v3357, %v3530
      %v3553 = vmul.f32 %v3361, %v3530
      %v3554 = vmul.f32 %v3365, %v3530
      %v3555 = vmul.f32 %v3369, %v3530
      %v3556 = vmul.f32 %v3373, %v3530
      %v3557 = vmul.f32 %v3377, %v3530
      %v3558 = vmul.f32 %v3381, %v3530
      %v3559 = vmul.f32 %v3385, %v3530
      %v3560 = vmul.f32 %v3389, %v3530
      %v3561 = vmul.f32 %v3393, %v3530
      %v3562 = vmul.f32 %v3397, %v3530
      %v3563 = vmul.f32 %v3401, %v3530
      %v3564 = vmul.f32 %v3405, %v3530
      %v3565 = vmul.f32 %v3409, %v3530
      %v3566 = vmul.f32 %v3413, %v3530
      %v3567 = vmul.f32 %v3417, %v3530
      %v3568 = vmul.f32 %v3421, %v3530
      %v3569 = vmul.f32 %v3425, %v3530
      %v3570 = vmul.f32 %v3429, %v3530
      %v3571 = vmul.f32 %v3433, %v3530
      %v3572 = vmul.f32 %v3437, %v3530
      %v3573 = vmul.f32 %v3441, %v3530
      %v3574 = vmul.f32 %v3445, %v3530
      %v3575 = vmul.f32 %v3449, %v3530
      %v3576 = vmul.f32 %v3453, %v3530
      %v3577 = vmul.f32 %v3457, %v3530
      %v3578 = vmul.f32 %v3461, %v3530
      %v3579 = vmul.f32 %v3465, %v3530
      %v3580 = vmul.f32 %v3469, %v3530
      %v3581 = vmul.f32 %v3473, %v3530
      %v3582 = vmul.f32 %v3477, %v3530
      %v3583 = vmul.f32 %v3481, %v3530
      %v3584 = vmul.f32 %v3485, %v3530
      %v3585 = vmul.f32 %v3489, %v3530
      %v3586 = vmul.f32 %v3493, %v3530
      %v3587 = vmul.f32 %v3497, %v3530
      %v3588 = vmul.f32 %v3501, %v3530
      %v3589 = vmul.f32 %v3505, %v3530
      %v3590 = vmul.f32 %v3509, %v3530
      %v3591 = vmul.f32 %v3513, %v3530
      %v3592 = vmul.f32 %v3517, %v3530
      %v3593 = vmul.f32 %v3521, %v3530
      %v3594 = vmul.f32 %v3525, %v3530
      %v3595 = vadd.f32 %v3207, %v3531
      %v3596 = vadd.f32 %v3208, %v3532
      %v3597 = vadd.f32 %v3209, %v3533
      %v3598 = vadd.f32 %v3210, %v3534
      %v3599 = vadd.f32 %v3211, %v3535
      %v3600 = vadd.f32 %v3212, %v3536
      %v3601 = vadd.f32 %v3213, %v3537
      %v3602 = vadd.f32 %v3214, %v3538
      %v3603 = vadd.f32 %v3215, %v3539
      %v3604 = vadd.f32 %v3216, %v3540
      %v3605 = vadd.f32 %v3217, %v3541
      %v3606 = vadd.f32 %v3218, %v3542
      %v3607 = vadd.f32 %v3219, %v3543
      %v3608 = vadd.f32 %v3220, %v3544
      %v3609 = vadd.f32 %v3221, %v3545
      %v3610 = vadd.f32 %v3222, %v3546
      %v3611 = vadd.f32 %v3223, %v3547
      %v3612 = vadd.f32 %v3224, %v3548
      %v3613 = vadd.f32 %v3225, %v3549
      %v3614 = vadd.f32 %v3226, %v3550
      %v3615 = vadd.f32 %v3227, %v3551
      %v3616 = vadd.f32 %v3228, %v3552
      %v3617 = vadd.f32 %v3229, %v3553
      %v3618 = vadd.f32 %v3230, %v3554
      %v3619 = vadd.f32 %v3231, %v3555
      %v3620 = vadd.f32 %v3232, %v3556
      %v3621 = vadd.f32 %v3233, %v3557
      %v3622 = vadd.f32 %v3234, %v3558
      %v3623 = vadd.f32 %v3235, %v3559
      %v3624 = vadd.f32 %v3236, %v3560
      %v3625 = vadd.f32 %v3237, %v3561
      %v3626 = vadd.f32 %v3238, %v3562
      %v3627 = vadd.f32 %v3239, %v3563
      %v3628 = vadd.f32 %v3240, %v3564
      %v3629 = vadd.f32 %v3241, %v3565
      %v3630 = vadd.f32 %v3242, %v3566
      %v3631 = vadd.f32 %v3243, %v3567
      %v3632 = vadd.f32 %v3244, %v3568
      %v3633 = vadd.f32 %v3245, %v3569
      %v3634 = vadd.f32 %v3246, %v3570
      %v3635 = vadd.f32 %v3247, %v3571
      %v3636 = vadd.f32 %v3248, %v3572
      %v3637 = vadd.f32 %v3249, %v3573
      %v3638 = vadd.f32 %v3250, %v3574
      %v3639 = vadd.f32 %v3251, %v3575
      %v3640 = vadd.f32 %v3252, %v3576
      %v3641 = vadd.f32 %v3253, %v3577
      %v3642 = vadd.f32 %v3254, %v3578
      %v3643 = vadd.f32 %v3255, %v3579
      %v3644 = vadd.f32 %v3256, %v3580
      %v3645 = vadd.f32 %v3257, %v3581
      %v3646 = vadd.f32 %v3258, %v3582
      %v3647 = vadd.f32 %v3259, %v3583
      %v3648 = vadd.f32 %v3260, %v3584
      %v3649 = vadd.f32 %v3261, %v3585
      %v3650 = vadd.f32 %v3262, %v3586
      %v3651 = vadd.f32 %v3263, %v3587
      %v3652 = vadd.f32 %v3264, %v3588
      %v3653 = vadd.f32 %v3265, %v3589
      %v3654 = vadd.f32 %v3266, %v3590
      %v3655 = vadd.f32 %v3267, %v3591
      %v3656 = vadd.f32 %v3268, %v3592
      %v3657 = vadd.f32 %v3269, %v3593
      %v3658 = vadd.f32 %v3270, %v3594
      %3659 = vset.pattern.permute.xlu0 5
      %3660 = vperm.xlu0 %3659, %v1590
      %v3661 = vpop.permute.xlu0 %3660
      %3663 = vset.pattern.permute.xlu0 5
      %3664 = vperm.xlu0 %3663, %v1591
      %v3665 = vpop.permute.xlu0 %3664
      %3667 = vset.pattern.permute.xlu0 5
      %3668 = vperm.xlu0 %3667, %v1592
      %v3669 = vpop.permute.xlu0 %3668
      %3671 = vset.pattern.permute.xlu0 5
      %3672 = vperm.xlu0 %3671, %v1593
      %v3673 = vpop.permute.xlu0 %3672
      %3675 = vset.pattern.permute.xlu0 5
      %3676 = vperm.xlu0 %3675, %v1594
      %v3677 = vpop.permute.xlu0 %3676
      %3679 = vset.pattern.permute.xlu0 5
      %3680 = vperm.xlu0 %3679, %v1595
      %v3681 = vpop.permute.xlu0 %3680
      %3683 = vset.pattern.permute.xlu0 5
      %3684 = vperm.xlu0 %3683, %v1596
      %v3685 = vpop.permute.xlu0 %3684
      %3687 = vset.pattern.permute.xlu0 5
      %3688 = vperm.xlu0 %3687, %v1597
      %v3689 = vpop.permute.xlu0 %3688
      %3691 = vset.pattern.permute.xlu0 5
      %3692 = vperm.xlu0 %3691, %v1598
      %v3693 = vpop.permute.xlu0 %3692
      %3695 = vset.pattern.permute.xlu0 5
      %3696 = vperm.xlu0 %3695, %v1599
      %v3697 = vpop.permute.xlu0 %3696
      %3699 = vset.pattern.permute.xlu0 5
      %3700 = vperm.xlu0 %3699, %v1600
      %v3701 = vpop.permute.xlu0 %3700
      %3703 = vset.pattern.permute.xlu0 5
      %3704 = vperm.xlu0 %3703, %v1601
      %v3705 = vpop.permute.xlu0 %3704
      %3707 = vset.pattern.permute.xlu0 5
      %3708 = vperm.xlu0 %3707, %v1602
      %v3709 = vpop.permute.xlu0 %3708
      %3711 = vset.pattern.permute.xlu0 5
      %3712 = vperm.xlu0 %3711, %v1603
      %v3713 = vpop.permute.xlu0 %3712
      %3715 = vset.pattern.permute.xlu0 5
      %3716 = vperm.xlu0 %3715, %v1604
      %v3717 = vpop.permute.xlu0 %3716
      %3719 = vset.pattern.permute.xlu0 5
      %3720 = vperm.xlu0 %3719, %v1605
      %v3721 = vpop.permute.xlu0 %3720
      %3723 = vset.pattern.permute.xlu0 5
      %3724 = vperm.xlu0 %3723, %v1606
      %v3725 = vpop.permute.xlu0 %3724
      %3727 = vset.pattern.permute.xlu0 5
      %3728 = vperm.xlu0 %3727, %v1607
      %v3729 = vpop.permute.xlu0 %3728
      %3731 = vset.pattern.permute.xlu0 5
      %3732 = vperm.xlu0 %3731, %v1608
      %v3733 = vpop.permute.xlu0 %3732
      %3735 = vset.pattern.permute.xlu0 5
      %3736 = vperm.xlu0 %3735, %v1609
      %v3737 = vpop.permute.xlu0 %3736
      %3739 = vset.pattern.permute.xlu0 5
      %3740 = vperm.xlu0 %3739, %v1610
      %v3741 = vpop.permute.xlu0 %3740
      %3743 = vset.pattern.permute.xlu0 5
      %3744 = vperm.xlu0 %3743, %v1611
      %v3745 = vpop.permute.xlu0 %3744
      %3747 = vset.pattern.permute.xlu0 5
      %3748 = vperm.xlu0 %3747, %v1612
      %v3749 = vpop.permute.xlu0 %3748
      %3751 = vset.pattern.permute.xlu0 5
      %3752 = vperm.xlu0 %3751, %v1613
      %v3753 = vpop.permute.xlu0 %3752
      %3755 = vset.pattern.permute.xlu0 5
      %3756 = vperm.xlu0 %3755, %v1614
      %v3757 = vpop.permute.xlu0 %3756
      %3759 = vset.pattern.permute.xlu0 5
      %3760 = vperm.xlu0 %3759, %v1615
      %v3761 = vpop.permute.xlu0 %3760
      %3763 = vset.pattern.permute.xlu0 5
      %3764 = vperm.xlu0 %3763, %v1616
      %v3765 = vpop.permute.xlu0 %3764
      %3767 = vset.pattern.permute.xlu0 5
      %3768 = vperm.xlu0 %3767, %v1617
      %v3769 = vpop.permute.xlu0 %3768
      %3771 = vset.pattern.permute.xlu0 5
      %3772 = vperm.xlu0 %3771, %v1618
      %v3773 = vpop.permute.xlu0 %3772
      %3775 = vset.pattern.permute.xlu0 5
      %3776 = vperm.xlu0 %3775, %v1619
      %v3777 = vpop.permute.xlu0 %3776
      %3779 = vset.pattern.permute.xlu0 5
      %3780 = vperm.xlu0 %3779, %v1620
      %v3781 = vpop.permute.xlu0 %3780
      %3783 = vset.pattern.permute.xlu0 5
      %3784 = vperm.xlu0 %3783, %v1621
      %v3785 = vpop.permute.xlu0 %3784
      %3787 = vset.pattern.permute.xlu0 5
      %3788 = vperm.xlu0 %3787, %v1622
      %v3789 = vpop.permute.xlu0 %3788
      %3791 = vset.pattern.permute.xlu0 5
      %3792 = vperm.xlu0 %3791, %v1623
      %v3793 = vpop.permute.xlu0 %3792
      %3795 = vset.pattern.permute.xlu0 5
      %3796 = vperm.xlu0 %3795, %v1624
      %v3797 = vpop.permute.xlu0 %3796
      %3799 = vset.pattern.permute.xlu0 5
      %3800 = vperm.xlu0 %3799, %v1625
      %v3801 = vpop.permute.xlu0 %3800
      %3803 = vset.pattern.permute.xlu0 5
      %3804 = vperm.xlu0 %3803, %v1626
      %v3805 = vpop.permute.xlu0 %3804
      %3807 = vset.pattern.permute.xlu0 5
      %3808 = vperm.xlu0 %3807, %v1627
      %v3809 = vpop.permute.xlu0 %3808
      %3811 = vset.pattern.permute.xlu0 5
      %3812 = vperm.xlu0 %3811, %v1628
      %v3813 = vpop.permute.xlu0 %3812
      %3815 = vset.pattern.permute.xlu0 5
      %3816 = vperm.xlu0 %3815, %v1629
      %v3817 = vpop.permute.xlu0 %3816
      %3819 = vset.pattern.permute.xlu0 5
      %3820 = vperm.xlu0 %3819, %v1630
      %v3821 = vpop.permute.xlu0 %3820
      %3823 = vset.pattern.permute.xlu0 5
      %3824 = vperm.xlu0 %3823, %v1631
      %v3825 = vpop.permute.xlu0 %3824
      %3827 = vset.pattern.permute.xlu0 5
      %3828 = vperm.xlu0 %3827, %v1632
      %v3829 = vpop.permute.xlu0 %3828
      %3831 = vset.pattern.permute.xlu0 5
      %3832 = vperm.xlu0 %3831, %v1633
      %v3833 = vpop.permute.xlu0 %3832
      %3835 = vset.pattern.permute.xlu0 5
      %3836 = vperm.xlu0 %3835, %v1634
      %v3837 = vpop.permute.xlu0 %3836
      %3839 = vset.pattern.permute.xlu0 5
      %3840 = vperm.xlu0 %3839, %v1635
      %v3841 = vpop.permute.xlu0 %3840
      %3843 = vset.pattern.permute.xlu0 5
      %3844 = vperm.xlu0 %3843, %v1636
      %v3845 = vpop.permute.xlu0 %3844
      %3847 = vset.pattern.permute.xlu0 5
      %3848 = vperm.xlu0 %3847, %v1637
      %v3849 = vpop.permute.xlu0 %3848
      %3851 = vset.pattern.permute.xlu0 5
      %3852 = vperm.xlu0 %3851, %v1638
      %v3853 = vpop.permute.xlu0 %3852
      %3855 = vset.pattern.permute.xlu0 5
      %3856 = vperm.xlu0 %3855, %v1639
      %v3857 = vpop.permute.xlu0 %3856
      %3859 = vset.pattern.permute.xlu0 5
      %3860 = vperm.xlu0 %3859, %v1640
      %v3861 = vpop.permute.xlu0 %3860
      %3863 = vset.pattern.permute.xlu0 5
      %3864 = vperm.xlu0 %3863, %v1641
      %v3865 = vpop.permute.xlu0 %3864
      %3867 = vset.pattern.permute.xlu0 5
      %3868 = vperm.xlu0 %3867, %v1642
      %v3869 = vpop.permute.xlu0 %3868
      %3871 = vset.pattern.permute.xlu0 5
      %3872 = vperm.xlu0 %3871, %v1643
      %v3873 = vpop.permute.xlu0 %3872
      %3875 = vset.pattern.permute.xlu0 5
      %3876 = vperm.xlu0 %3875, %v1644
      %v3877 = vpop.permute.xlu0 %3876
      %3879 = vset.pattern.permute.xlu0 5
      %3880 = vperm.xlu0 %3879, %v1645
      %v3881 = vpop.permute.xlu0 %3880
      %3883 = vset.pattern.permute.xlu0 5
      %3884 = vperm.xlu0 %3883, %v1646
      %v3885 = vpop.permute.xlu0 %3884
      %3887 = vset.pattern.permute.xlu0 5
      %3888 = vperm.xlu0 %3887, %v1647
      %v3889 = vpop.permute.xlu0 %3888
      %3891 = vset.pattern.permute.xlu0 5
      %3892 = vperm.xlu0 %3891, %v1648
      %v3893 = vpop.permute.xlu0 %3892
      %3895 = vset.pattern.permute.xlu0 5
      %3896 = vperm.xlu0 %3895, %v1649
      %v3897 = vpop.permute.xlu0 %3896
      %3899 = vset.pattern.permute.xlu0 5
      %3900 = vperm.xlu0 %3899, %v1650
      %v3901 = vpop.permute.xlu0 %3900
      %3903 = vset.pattern.permute.xlu0 5
      %3904 = vperm.xlu0 %3903, %v1651
      %v3905 = vpop.permute.xlu0 %3904
      %3907 = vset.pattern.permute.xlu0 5
      %3908 = vperm.xlu0 %3907, %v1652
      %v3909 = vpop.permute.xlu0 %3908
      %3911 = vset.pattern.permute.xlu0 5
      %3912 = vperm.xlu0 %3911, %v1653
      %v3913 = vpop.permute.xlu0 %3912
      %v3915 = vlaneseq
      %v3916 = vshrl.u32 %v3915, 7
      %v3917 = vsub.s32 5, %v3916
      %v3918 = vrot.slane %v1654, %v3917
      %v3919 = vmul.f32 %v3661, %v3918
      %v3920 = vmul.f32 %v3665, %v3918
      %v3921 = vmul.f32 %v3669, %v3918
      %v3922 = vmul.f32 %v3673, %v3918
      %v3923 = vmul.f32 %v3677, %v3918
      %v3924 = vmul.f32 %v3681, %v3918
      %v3925 = vmul.f32 %v3685, %v3918
      %v3926 = vmul.f32 %v3689, %v3918
      %v3927 = vmul.f32 %v3693, %v3918
      %v3928 = vmul.f32 %v3697, %v3918
      %v3929 = vmul.f32 %v3701, %v3918
      %v3930 = vmul.f32 %v3705, %v3918
      %v3931 = vmul.f32 %v3709, %v3918
      %v3932 = vmul.f32 %v3713, %v3918
      %v3933 = vmul.f32 %v3717, %v3918
      %v3934 = vmul.f32 %v3721, %v3918
      %v3935 = vmul.f32 %v3725, %v3918
      %v3936 = vmul.f32 %v3729, %v3918
      %v3937 = vmul.f32 %v3733, %v3918
      %v3938 = vmul.f32 %v3737, %v3918
      %v3939 = vmul.f32 %v3741, %v3918
      %v3940 = vmul.f32 %v3745, %v3918
      %v3941 = vmul.f32 %v3749, %v3918
      %v3942 = vmul.f32 %v3753, %v3918
      %v3943 = vmul.f32 %v3757, %v3918
      %v3944 = vmul.f32 %v3761, %v3918
      %v3945 = vmul.f32 %v3765, %v3918
      %v3946 = vmul.f32 %v3769, %v3918
      %v3947 = vmul.f32 %v3773, %v3918
      %v3948 = vmul.f32 %v3777, %v3918
      %v3949 = vmul.f32 %v3781, %v3918
      %v3950 = vmul.f32 %v3785, %v3918
      %v3951 = vmul.f32 %v3789, %v3918
      %v3952 = vmul.f32 %v3793, %v3918
      %v3953 = vmul.f32 %v3797, %v3918
      %v3954 = vmul.f32 %v3801, %v3918
      %v3955 = vmul.f32 %v3805, %v3918
      %v3956 = vmul.f32 %v3809, %v3918
      %v3957 = vmul.f32 %v3813, %v3918
      %v3958 = vmul.f32 %v3817, %v3918
      %v3959 = vmul.f32 %v3821, %v3918
      %v3960 = vmul.f32 %v3825, %v3918
      %v3961 = vmul.f32 %v3829, %v3918
      %v3962 = vmul.f32 %v3833, %v3918
      %v3963 = vmul.f32 %v3837, %v3918
      %v3964 = vmul.f32 %v3841, %v3918
      %v3965 = vmul.f32 %v3845, %v3918
      %v3966 = vmul.f32 %v3849, %v3918
      %v3967 = vmul.f32 %v3853, %v3918
      %v3968 = vmul.f32 %v3857, %v3918
      %v3969 = vmul.f32 %v3861, %v3918
      %v3970 = vmul.f32 %v3865, %v3918
      %v3971 = vmul.f32 %v3869, %v3918
      %v3972 = vmul.f32 %v3873, %v3918
      %v3973 = vmul.f32 %v3877, %v3918
      %v3974 = vmul.f32 %v3881, %v3918
      %v3975 = vmul.f32 %v3885, %v3918
      %v3976 = vmul.f32 %v3889, %v3918
      %v3977 = vmul.f32 %v3893, %v3918
      %v3978 = vmul.f32 %v3897, %v3918
      %v3979 = vmul.f32 %v3901, %v3918
      %v3980 = vmul.f32 %v3905, %v3918
      %v3981 = vmul.f32 %v3909, %v3918
      %v3982 = vmul.f32 %v3913, %v3918
      %v3983 = vadd.f32 %v3595, %v3919
      %v3984 = vadd.f32 %v3596, %v3920
      %v3985 = vadd.f32 %v3597, %v3921
      %v3986 = vadd.f32 %v3598, %v3922
      %v3987 = vadd.f32 %v3599, %v3923
      %v3988 = vadd.f32 %v3600, %v3924
      %v3989 = vadd.f32 %v3601, %v3925
      %v3990 = vadd.f32 %v3602, %v3926
      %v3991 = vadd.f32 %v3603, %v3927
      %v3992 = vadd.f32 %v3604, %v3928
      %v3993 = vadd.f32 %v3605, %v3929
      %v3994 = vadd.f32 %v3606, %v3930
      %v3995 = vadd.f32 %v3607, %v3931
      %v3996 = vadd.f32 %v3608, %v3932
      %v3997 = vadd.f32 %v3609, %v3933
      %v3998 = vadd.f32 %v3610, %v3934
      %v3999 = vadd.f32 %v3611, %v3935
      %v4000 = vadd.f32 %v3612, %v3936
      %v4001 = vadd.f32 %v3613, %v3937
      %v4002 = vadd.f32 %v3614, %v3938
      %v4003 = vadd.f32 %v3615, %v3939
      %v4004 = vadd.f32 %v3616, %v3940
      %v4005 = vadd.f32 %v3617, %v3941
      %v4006 = vadd.f32 %v3618, %v3942
      %v4007 = vadd.f32 %v3619, %v3943
      %v4008 = vadd.f32 %v3620, %v3944
      %v4009 = vadd.f32 %v3621, %v3945
      %v4010 = vadd.f32 %v3622, %v3946
      %v4011 = vadd.f32 %v3623, %v3947
      %v4012 = vadd.f32 %v3624, %v3948
      %v4013 = vadd.f32 %v3625, %v3949
      %v4014 = vadd.f32 %v3626, %v3950
      %v4015 = vadd.f32 %v3627, %v3951
      %v4016 = vadd.f32 %v3628, %v3952
      %v4017 = vadd.f32 %v3629, %v3953
      %v4018 = vadd.f32 %v3630, %v3954
      %v4019 = vadd.f32 %v3631, %v3955
      %v4020 = vadd.f32 %v3632, %v3956
      %v4021 = vadd.f32 %v3633, %v3957
      %v4022 = vadd.f32 %v3634, %v3958
      %v4023 = vadd.f32 %v3635, %v3959
      %v4024 = vadd.f32 %v3636, %v3960
      %v4025 = vadd.f32 %v3637, %v3961
      %v4026 = vadd.f32 %v3638, %v3962
      %v4027 = vadd.f32 %v3639, %v3963
      %v4028 = vadd.f32 %v3640, %v3964
      %v4029 = vadd.f32 %v3641, %v3965
      %v4030 = vadd.f32 %v3642, %v3966
      %v4031 = vadd.f32 %v3643, %v3967
      %v4032 = vadd.f32 %v3644, %v3968
      %v4033 = vadd.f32 %v3645, %v3969
      %v4034 = vadd.f32 %v3646, %v3970
      %v4035 = vadd.f32 %v3647, %v3971
      %v4036 = vadd.f32 %v3648, %v3972
      %v4037 = vadd.f32 %v3649, %v3973
      %v4038 = vadd.f32 %v3650, %v3974
      %v4039 = vadd.f32 %v3651, %v3975
      %v4040 = vadd.f32 %v3652, %v3976
      %v4041 = vadd.f32 %v3653, %v3977
      %v4042 = vadd.f32 %v3654, %v3978
      %v4043 = vadd.f32 %v3655, %v3979
      %v4044 = vadd.f32 %v3656, %v3980
      %v4045 = vadd.f32 %v3657, %v3981
      %v4046 = vadd.f32 %v3658, %v3982
      %4047 = vset.pattern.permute.xlu0 6
      %4048 = vperm.xlu0 %4047, %v1590
      %v4049 = vpop.permute.xlu0 %4048
      %4051 = vset.pattern.permute.xlu0 6
      %4052 = vperm.xlu0 %4051, %v1591
      %v4053 = vpop.permute.xlu0 %4052
      %4055 = vset.pattern.permute.xlu0 6
      %4056 = vperm.xlu0 %4055, %v1592
      %v4057 = vpop.permute.xlu0 %4056
      %4059 = vset.pattern.permute.xlu0 6
      %4060 = vperm.xlu0 %4059, %v1593
      %v4061 = vpop.permute.xlu0 %4060
      %4063 = vset.pattern.permute.xlu0 6
      %4064 = vperm.xlu0 %4063, %v1594
      %v4065 = vpop.permute.xlu0 %4064
      %4067 = vset.pattern.permute.xlu0 6
      %4068 = vperm.xlu0 %4067, %v1595
      %v4069 = vpop.permute.xlu0 %4068
      %4071 = vset.pattern.permute.xlu0 6
      %4072 = vperm.xlu0 %4071, %v1596
      %v4073 = vpop.permute.xlu0 %4072
      %4075 = vset.pattern.permute.xlu0 6
      %4076 = vperm.xlu0 %4075, %v1597
      %v4077 = vpop.permute.xlu0 %4076
      %4079 = vset.pattern.permute.xlu0 6
      %4080 = vperm.xlu0 %4079, %v1598
      %v4081 = vpop.permute.xlu0 %4080
      %4083 = vset.pattern.permute.xlu0 6
      %4084 = vperm.xlu0 %4083, %v1599
      %v4085 = vpop.permute.xlu0 %4084
      %4087 = vset.pattern.permute.xlu0 6
      %4088 = vperm.xlu0 %4087, %v1600
      %v4089 = vpop.permute.xlu0 %4088
      %4091 = vset.pattern.permute.xlu0 6
      %4092 = vperm.xlu0 %4091, %v1601
      %v4093 = vpop.permute.xlu0 %4092
      %4095 = vset.pattern.permute.xlu0 6
      %4096 = vperm.xlu0 %4095, %v1602
      %v4097 = vpop.permute.xlu0 %4096
      %4099 = vset.pattern.permute.xlu0 6
      %4100 = vperm.xlu0 %4099, %v1603
      %v4101 = vpop.permute.xlu0 %4100
      %4103 = vset.pattern.permute.xlu0 6
      %4104 = vperm.xlu0 %4103, %v1604
      %v4105 = vpop.permute.xlu0 %4104
      %4107 = vset.pattern.permute.xlu0 6
      %4108 = vperm.xlu0 %4107, %v1605
      %v4109 = vpop.permute.xlu0 %4108
      %4111 = vset.pattern.permute.xlu0 6
      %4112 = vperm.xlu0 %4111, %v1606
      %v4113 = vpop.permute.xlu0 %4112
      %4115 = vset.pattern.permute.xlu0 6
      %4116 = vperm.xlu0 %4115, %v1607
      %v4117 = vpop.permute.xlu0 %4116
      %4119 = vset.pattern.permute.xlu0 6
      %4120 = vperm.xlu0 %4119, %v1608
      %v4121 = vpop.permute.xlu0 %4120
      %4123 = vset.pattern.permute.xlu0 6
      %4124 = vperm.xlu0 %4123, %v1609
      %v4125 = vpop.permute.xlu0 %4124
      %4127 = vset.pattern.permute.xlu0 6
      %4128 = vperm.xlu0 %4127, %v1610
      %v4129 = vpop.permute.xlu0 %4128
      %4131 = vset.pattern.permute.xlu0 6
      %4132 = vperm.xlu0 %4131, %v1611
      %v4133 = vpop.permute.xlu0 %4132
      %4135 = vset.pattern.permute.xlu0 6
      %4136 = vperm.xlu0 %4135, %v1612
      %v4137 = vpop.permute.xlu0 %4136
      %4139 = vset.pattern.permute.xlu0 6
      %4140 = vperm.xlu0 %4139, %v1613
      %v4141 = vpop.permute.xlu0 %4140
      %4143 = vset.pattern.permute.xlu0 6
      %4144 = vperm.xlu0 %4143, %v1614
      %v4145 = vpop.permute.xlu0 %4144
      %4147 = vset.pattern.permute.xlu0 6
      %4148 = vperm.xlu0 %4147, %v1615
      %v4149 = vpop.permute.xlu0 %4148
      %4151 = vset.pattern.permute.xlu0 6
      %4152 = vperm.xlu0 %4151, %v1616
      %v4153 = vpop.permute.xlu0 %4152
      %4155 = vset.pattern.permute.xlu0 6
      %4156 = vperm.xlu0 %4155, %v1617
      %v4157 = vpop.permute.xlu0 %4156
      %4159 = vset.pattern.permute.xlu0 6
      %4160 = vperm.xlu0 %4159, %v1618
      %v4161 = vpop.permute.xlu0 %4160
      %4163 = vset.pattern.permute.xlu0 6
      %4164 = vperm.xlu0 %4163, %v1619
      %v4165 = vpop.permute.xlu0 %4164
      %4167 = vset.pattern.permute.xlu0 6
      %4168 = vperm.xlu0 %4167, %v1620
      %v4169 = vpop.permute.xlu0 %4168
      %4171 = vset.pattern.permute.xlu0 6
      %4172 = vperm.xlu0 %4171, %v1621
      %v4173 = vpop.permute.xlu0 %4172
      %4175 = vset.pattern.permute.xlu0 6
      %4176 = vperm.xlu0 %4175, %v1622
      %v4177 = vpop.permute.xlu0 %4176
      %4179 = vset.pattern.permute.xlu0 6
      %4180 = vperm.xlu0 %4179, %v1623
      %v4181 = vpop.permute.xlu0 %4180
      %4183 = vset.pattern.permute.xlu0 6
      %4184 = vperm.xlu0 %4183, %v1624
      %v4185 = vpop.permute.xlu0 %4184
      %4187 = vset.pattern.permute.xlu0 6
      %4188 = vperm.xlu0 %4187, %v1625
      %v4189 = vpop.permute.xlu0 %4188
      %4191 = vset.pattern.permute.xlu0 6
      %4192 = vperm.xlu0 %4191, %v1626
      %v4193 = vpop.permute.xlu0 %4192
      %4195 = vset.pattern.permute.xlu0 6
      %4196 = vperm.xlu0 %4195, %v1627
      %v4197 = vpop.permute.xlu0 %4196
      %4199 = vset.pattern.permute.xlu0 6
      %4200 = vperm.xlu0 %4199, %v1628
      %v4201 = vpop.permute.xlu0 %4200
      %4203 = vset.pattern.permute.xlu0 6
      %4204 = vperm.xlu0 %4203, %v1629
      %v4205 = vpop.permute.xlu0 %4204
      %4207 = vset.pattern.permute.xlu0 6
      %4208 = vperm.xlu0 %4207, %v1630
      %v4209 = vpop.permute.xlu0 %4208
      %4211 = vset.pattern.permute.xlu0 6
      %4212 = vperm.xlu0 %4211, %v1631
      %v4213 = vpop.permute.xlu0 %4212
      %4215 = vset.pattern.permute.xlu0 6
      %4216 = vperm.xlu0 %4215, %v1632
      %v4217 = vpop.permute.xlu0 %4216
      %4219 = vset.pattern.permute.xlu0 6
      %4220 = vperm.xlu0 %4219, %v1633
      %v4221 = vpop.permute.xlu0 %4220
      %4223 = vset.pattern.permute.xlu0 6
      %4224 = vperm.xlu0 %4223, %v1634
      %v4225 = vpop.permute.xlu0 %4224
      %4227 = vset.pattern.permute.xlu0 6
      %4228 = vperm.xlu0 %4227, %v1635
      %v4229 = vpop.permute.xlu0 %4228
      %4231 = vset.pattern.permute.xlu0 6
      %4232 = vperm.xlu0 %4231, %v1636
      %v4233 = vpop.permute.xlu0 %4232
      %4235 = vset.pattern.permute.xlu0 6
      %4236 = vperm.xlu0 %4235, %v1637
      %v4237 = vpop.permute.xlu0 %4236
      %4239 = vset.pattern.permute.xlu0 6
      %4240 = vperm.xlu0 %4239, %v1638
      %v4241 = vpop.permute.xlu0 %4240
      %4243 = vset.pattern.permute.xlu0 6
      %4244 = vperm.xlu0 %4243, %v1639
      %v4245 = vpop.permute.xlu0 %4244
      %4247 = vset.pattern.permute.xlu0 6
      %4248 = vperm.xlu0 %4247, %v1640
      %v4249 = vpop.permute.xlu0 %4248
      %4251 = vset.pattern.permute.xlu0 6
      %4252 = vperm.xlu0 %4251, %v1641
      %v4253 = vpop.permute.xlu0 %4252
      %4255 = vset.pattern.permute.xlu0 6
      %4256 = vperm.xlu0 %4255, %v1642
      %v4257 = vpop.permute.xlu0 %4256
      %4259 = vset.pattern.permute.xlu0 6
      %4260 = vperm.xlu0 %4259, %v1643
      %v4261 = vpop.permute.xlu0 %4260
      %4263 = vset.pattern.permute.xlu0 6
      %4264 = vperm.xlu0 %4263, %v1644
      %v4265 = vpop.permute.xlu0 %4264
      %4267 = vset.pattern.permute.xlu0 6
      %4268 = vperm.xlu0 %4267, %v1645
      %v4269 = vpop.permute.xlu0 %4268
      %4271 = vset.pattern.permute.xlu0 6
      %4272 = vperm.xlu0 %4271, %v1646
      %v4273 = vpop.permute.xlu0 %4272
      %4275 = vset.pattern.permute.xlu0 6
      %4276 = vperm.xlu0 %4275, %v1647
      %v4277 = vpop.permute.xlu0 %4276
      %4279 = vset.pattern.permute.xlu0 6
      %4280 = vperm.xlu0 %4279, %v1648
      %v4281 = vpop.permute.xlu0 %4280
      %4283 = vset.pattern.permute.xlu0 6
      %4284 = vperm.xlu0 %4283, %v1649
      %v4285 = vpop.permute.xlu0 %4284
      %4287 = vset.pattern.permute.xlu0 6
      %4288 = vperm.xlu0 %4287, %v1650
      %v4289 = vpop.permute.xlu0 %4288
      %4291 = vset.pattern.permute.xlu0 6
      %4292 = vperm.xlu0 %4291, %v1651
      %v4293 = vpop.permute.xlu0 %4292
      %4295 = vset.pattern.permute.xlu0 6
      %4296 = vperm.xlu0 %4295, %v1652
      %v4297 = vpop.permute.xlu0 %4296
      %4299 = vset.pattern.permute.xlu0 6
      %4300 = vperm.xlu0 %4299, %v1653
      %v4301 = vpop.permute.xlu0 %4300
      %v4303 = vlaneseq
      %v4304 = vshrl.u32 %v4303, 7
      %v4305 = vsub.s32 6, %v4304
      %v4306 = vrot.slane %v1654, %v4305
      %v4307 = vmul.f32 %v4049, %v4306
      %v4308 = vmul.f32 %v4053, %v4306
      %v4309 = vmul.f32 %v4057, %v4306
      %v4310 = vmul.f32 %v4061, %v4306
      %v4311 = vmul.f32 %v4065, %v4306
      %v4312 = vmul.f32 %v4069, %v4306
      %v4313 = vmul.f32 %v4073, %v4306
      %v4314 = vmul.f32 %v4077, %v4306
      %v4315 = vmul.f32 %v4081, %v4306
      %v4316 = vmul.f32 %v4085, %v4306
      %v4317 = vmul.f32 %v4089, %v4306
      %v4318 = vmul.f32 %v4093, %v4306
      %v4319 = vmul.f32 %v4097, %v4306
      %v4320 = vmul.f32 %v4101, %v4306
      %v4321 = vmul.f32 %v4105, %v4306
      %v4322 = vmul.f32 %v4109, %v4306
      %v4323 = vmul.f32 %v4113, %v4306
      %v4324 = vmul.f32 %v4117, %v4306
      %v4325 = vmul.f32 %v4121, %v4306
      %v4326 = vmul.f32 %v4125, %v4306
      %v4327 = vmul.f32 %v4129, %v4306
      %v4328 = vmul.f32 %v4133, %v4306
      %v4329 = vmul.f32 %v4137, %v4306
      %v4330 = vmul.f32 %v4141, %v4306
      %v4331 = vmul.f32 %v4145, %v4306
      %v4332 = vmul.f32 %v4149, %v4306
      %v4333 = vmul.f32 %v4153, %v4306
      %v4334 = vmul.f32 %v4157, %v4306
      %v4335 = vmul.f32 %v4161, %v4306
      %v4336 = vmul.f32 %v4165, %v4306
      %v4337 = vmul.f32 %v4169, %v4306
      %v4338 = vmul.f32 %v4173, %v4306
      %v4339 = vmul.f32 %v4177, %v4306
      %v4340 = vmul.f32 %v4181, %v4306
      %v4341 = vmul.f32 %v4185, %v4306
      %v4342 = vmul.f32 %v4189, %v4306
      %v4343 = vmul.f32 %v4193, %v4306
      %v4344 = vmul.f32 %v4197, %v4306
      %v4345 = vmul.f32 %v4201, %v4306
      %v4346 = vmul.f32 %v4205, %v4306
      %v4347 = vmul.f32 %v4209, %v4306
      %v4348 = vmul.f32 %v4213, %v4306
      %v4349 = vmul.f32 %v4217, %v4306
      %v4350 = vmul.f32 %v4221, %v4306
      %v4351 = vmul.f32 %v4225, %v4306
      %v4352 = vmul.f32 %v4229, %v4306
      %v4353 = vmul.f32 %v4233, %v4306
      %v4354 = vmul.f32 %v4237, %v4306
      %v4355 = vmul.f32 %v4241, %v4306
      %v4356 = vmul.f32 %v4245, %v4306
      %v4357 = vmul.f32 %v4249, %v4306
      %v4358 = vmul.f32 %v4253, %v4306
      %v4359 = vmul.f32 %v4257, %v4306
      %v4360 = vmul.f32 %v4261, %v4306
      %v4361 = vmul.f32 %v4265, %v4306
      %v4362 = vmul.f32 %v4269, %v4306
      %v4363 = vmul.f32 %v4273, %v4306
      %v4364 = vmul.f32 %v4277, %v4306
      %v4365 = vmul.f32 %v4281, %v4306
      %v4366 = vmul.f32 %v4285, %v4306
      %v4367 = vmul.f32 %v4289, %v4306
      %v4368 = vmul.f32 %v4293, %v4306
      %v4369 = vmul.f32 %v4297, %v4306
      %v4370 = vmul.f32 %v4301, %v4306
      %v4371 = vadd.f32 %v3983, %v4307
      %v4372 = vadd.f32 %v3984, %v4308
      %v4373 = vadd.f32 %v3985, %v4309
      %v4374 = vadd.f32 %v3986, %v4310
      %v4375 = vadd.f32 %v3987, %v4311
      %v4376 = vadd.f32 %v3988, %v4312
      %v4377 = vadd.f32 %v3989, %v4313
      %v4378 = vadd.f32 %v3990, %v4314
      %v4379 = vadd.f32 %v3991, %v4315
      %v4380 = vadd.f32 %v3992, %v4316
      %v4381 = vadd.f32 %v3993, %v4317
      %v4382 = vadd.f32 %v3994, %v4318
      %v4383 = vadd.f32 %v3995, %v4319
      %v4384 = vadd.f32 %v3996, %v4320
      %v4385 = vadd.f32 %v3997, %v4321
      %v4386 = vadd.f32 %v3998, %v4322
      %v4387 = vadd.f32 %v3999, %v4323
      %v4388 = vadd.f32 %v4000, %v4324
      %v4389 = vadd.f32 %v4001, %v4325
      %v4390 = vadd.f32 %v4002, %v4326
      %v4391 = vadd.f32 %v4003, %v4327
      %v4392 = vadd.f32 %v4004, %v4328
      %v4393 = vadd.f32 %v4005, %v4329
      %v4394 = vadd.f32 %v4006, %v4330
      %v4395 = vadd.f32 %v4007, %v4331
      %v4396 = vadd.f32 %v4008, %v4332
      %v4397 = vadd.f32 %v4009, %v4333
      %v4398 = vadd.f32 %v4010, %v4334
      %v4399 = vadd.f32 %v4011, %v4335
      %v4400 = vadd.f32 %v4012, %v4336
      %v4401 = vadd.f32 %v4013, %v4337
      %v4402 = vadd.f32 %v4014, %v4338
      %v4403 = vadd.f32 %v4015, %v4339
      %v4404 = vadd.f32 %v4016, %v4340
      %v4405 = vadd.f32 %v4017, %v4341
      %v4406 = vadd.f32 %v4018, %v4342
      %v4407 = vadd.f32 %v4019, %v4343
      %v4408 = vadd.f32 %v4020, %v4344
      %v4409 = vadd.f32 %v4021, %v4345
      %v4410 = vadd.f32 %v4022, %v4346
      %v4411 = vadd.f32 %v4023, %v4347
      %v4412 = vadd.f32 %v4024, %v4348
      %v4413 = vadd.f32 %v4025, %v4349
      %v4414 = vadd.f32 %v4026, %v4350
      %v4415 = vadd.f32 %v4027, %v4351
      %v4416 = vadd.f32 %v4028, %v4352
      %v4417 = vadd.f32 %v4029, %v4353
      %v4418 = vadd.f32 %v4030, %v4354
      %v4419 = vadd.f32 %v4031, %v4355
      %v4420 = vadd.f32 %v4032, %v4356
      %v4421 = vadd.f32 %v4033, %v4357
      %v4422 = vadd.f32 %v4034, %v4358
      %v4423 = vadd.f32 %v4035, %v4359
      %v4424 = vadd.f32 %v4036, %v4360
      %v4425 = vadd.f32 %v4037, %v4361
      %v4426 = vadd.f32 %v4038, %v4362
      %v4427 = vadd.f32 %v4039, %v4363
      %v4428 = vadd.f32 %v4040, %v4364
      %v4429 = vadd.f32 %v4041, %v4365
      %v4430 = vadd.f32 %v4042, %v4366
      %v4431 = vadd.f32 %v4043, %v4367
      %v4432 = vadd.f32 %v4044, %v4368
      %v4433 = vadd.f32 %v4045, %v4369
      %v4434 = vadd.f32 %v4046, %v4370
      %4435 = vset.pattern.permute.xlu0 7
      %4436 = vperm.xlu0 %4435, %v1590
      %v4437 = vpop.permute.xlu0 %4436
      %4439 = vset.pattern.permute.xlu0 7
      %4440 = vperm.xlu0 %4439, %v1591
      %v4441 = vpop.permute.xlu0 %4440
      %4443 = vset.pattern.permute.xlu0 7
      %4444 = vperm.xlu0 %4443, %v1592
      %v4445 = vpop.permute.xlu0 %4444
      %4447 = vset.pattern.permute.xlu0 7
      %4448 = vperm.xlu0 %4447, %v1593
      %v4449 = vpop.permute.xlu0 %4448
      %4451 = vset.pattern.permute.xlu0 7
      %4452 = vperm.xlu0 %4451, %v1594
      %v4453 = vpop.permute.xlu0 %4452
      %4455 = vset.pattern.permute.xlu0 7
      %4456 = vperm.xlu0 %4455, %v1595
      %v4457 = vpop.permute.xlu0 %4456
      %4459 = vset.pattern.permute.xlu0 7
      %4460 = vperm.xlu0 %4459, %v1596
      %v4461 = vpop.permute.xlu0 %4460
      %4463 = vset.pattern.permute.xlu0 7
      %4464 = vperm.xlu0 %4463, %v1597
      %v4465 = vpop.permute.xlu0 %4464
      %4467 = vset.pattern.permute.xlu0 7
      %4468 = vperm.xlu0 %4467, %v1598
      %v4469 = vpop.permute.xlu0 %4468
      %4471 = vset.pattern.permute.xlu0 7
      %4472 = vperm.xlu0 %4471, %v1599
      %v4473 = vpop.permute.xlu0 %4472
      %4475 = vset.pattern.permute.xlu0 7
      %4476 = vperm.xlu0 %4475, %v1600
      %v4477 = vpop.permute.xlu0 %4476
      %4479 = vset.pattern.permute.xlu0 7
      %4480 = vperm.xlu0 %4479, %v1601
      %v4481 = vpop.permute.xlu0 %4480
      %4483 = vset.pattern.permute.xlu0 7
      %4484 = vperm.xlu0 %4483, %v1602
      %v4485 = vpop.permute.xlu0 %4484
      %4487 = vset.pattern.permute.xlu0 7
      %4488 = vperm.xlu0 %4487, %v1603
      %v4489 = vpop.permute.xlu0 %4488
      %4491 = vset.pattern.permute.xlu0 7
      %4492 = vperm.xlu0 %4491, %v1604
      %v4493 = vpop.permute.xlu0 %4492
      %4495 = vset.pattern.permute.xlu0 7
      %4496 = vperm.xlu0 %4495, %v1605
      %v4497 = vpop.permute.xlu0 %4496
      %4499 = vset.pattern.permute.xlu0 7
      %4500 = vperm.xlu0 %4499, %v1606
      %v4501 = vpop.permute.xlu0 %4500
      %4503 = vset.pattern.permute.xlu0 7
      %4504 = vperm.xlu0 %4503, %v1607
      %v4505 = vpop.permute.xlu0 %4504
      %4507 = vset.pattern.permute.xlu0 7
      %4508 = vperm.xlu0 %4507, %v1608
      %v4509 = vpop.permute.xlu0 %4508
      %4511 = vset.pattern.permute.xlu0 7
      %4512 = vperm.xlu0 %4511, %v1609
      %v4513 = vpop.permute.xlu0 %4512
      %4515 = vset.pattern.permute.xlu0 7
      %4516 = vperm.xlu0 %4515, %v1610
      %v4517 = vpop.permute.xlu0 %4516
      %4519 = vset.pattern.permute.xlu0 7
      %4520 = vperm.xlu0 %4519, %v1611
      %v4521 = vpop.permute.xlu0 %4520
      %4523 = vset.pattern.permute.xlu0 7
      %4524 = vperm.xlu0 %4523, %v1612
      %v4525 = vpop.permute.xlu0 %4524
      %4527 = vset.pattern.permute.xlu0 7
      %4528 = vperm.xlu0 %4527, %v1613
      %v4529 = vpop.permute.xlu0 %4528
      %4531 = vset.pattern.permute.xlu0 7
      %4532 = vperm.xlu0 %4531, %v1614
      %v4533 = vpop.permute.xlu0 %4532
      %4535 = vset.pattern.permute.xlu0 7
      %4536 = vperm.xlu0 %4535, %v1615
      %v4537 = vpop.permute.xlu0 %4536
      %4539 = vset.pattern.permute.xlu0 7
      %4540 = vperm.xlu0 %4539, %v1616
      %v4541 = vpop.permute.xlu0 %4540
      %4543 = vset.pattern.permute.xlu0 7
      %4544 = vperm.xlu0 %4543, %v1617
      %v4545 = vpop.permute.xlu0 %4544
      %4547 = vset.pattern.permute.xlu0 7
      %4548 = vperm.xlu0 %4547, %v1618
      %v4549 = vpop.permute.xlu0 %4548
      %4551 = vset.pattern.permute.xlu0 7
      %4552 = vperm.xlu0 %4551, %v1619
      %v4553 = vpop.permute.xlu0 %4552
      %4555 = vset.pattern.permute.xlu0 7
      %4556 = vperm.xlu0 %4555, %v1620
      %v4557 = vpop.permute.xlu0 %4556
      %4559 = vset.pattern.permute.xlu0 7
      %4560 = vperm.xlu0 %4559, %v1621
      %v4561 = vpop.permute.xlu0 %4560
      %4563 = vset.pattern.permute.xlu0 7
      %4564 = vperm.xlu0 %4563, %v1622
      %v4565 = vpop.permute.xlu0 %4564
      %4567 = vset.pattern.permute.xlu0 7
      %4568 = vperm.xlu0 %4567, %v1623
      %v4569 = vpop.permute.xlu0 %4568
      %4571 = vset.pattern.permute.xlu0 7
      %4572 = vperm.xlu0 %4571, %v1624
      %v4573 = vpop.permute.xlu0 %4572
      %4575 = vset.pattern.permute.xlu0 7
      %4576 = vperm.xlu0 %4575, %v1625
      %v4577 = vpop.permute.xlu0 %4576
      %4579 = vset.pattern.permute.xlu0 7
      %4580 = vperm.xlu0 %4579, %v1626
      %v4581 = vpop.permute.xlu0 %4580
      %4583 = vset.pattern.permute.xlu0 7
      %4584 = vperm.xlu0 %4583, %v1627
      %v4585 = vpop.permute.xlu0 %4584
      %4587 = vset.pattern.permute.xlu0 7
      %4588 = vperm.xlu0 %4587, %v1628
      %v4589 = vpop.permute.xlu0 %4588
      %4591 = vset.pattern.permute.xlu0 7
      %4592 = vperm.xlu0 %4591, %v1629
      %v4593 = vpop.permute.xlu0 %4592
      %4595 = vset.pattern.permute.xlu0 7
      %4596 = vperm.xlu0 %4595, %v1630
      %v4597 = vpop.permute.xlu0 %4596
      %4599 = vset.pattern.permute.xlu0 7
      %4600 = vperm.xlu0 %4599, %v1631
      %v4601 = vpop.permute.xlu0 %4600
      %4603 = vset.pattern.permute.xlu0 7
      %4604 = vperm.xlu0 %4603, %v1632
      %v4605 = vpop.permute.xlu0 %4604
      %4607 = vset.pattern.permute.xlu0 7
      %4608 = vperm.xlu0 %4607, %v1633
      %v4609 = vpop.permute.xlu0 %4608
      %4611 = vset.pattern.permute.xlu0 7
      %4612 = vperm.xlu0 %4611, %v1634
      %v4613 = vpop.permute.xlu0 %4612
      %4615 = vset.pattern.permute.xlu0 7
      %4616 = vperm.xlu0 %4615, %v1635
      %v4617 = vpop.permute.xlu0 %4616
      %4619 = vset.pattern.permute.xlu0 7
      %4620 = vperm.xlu0 %4619, %v1636
      %v4621 = vpop.permute.xlu0 %4620
      %4623 = vset.pattern.permute.xlu0 7
      %4624 = vperm.xlu0 %4623, %v1637
      %v4625 = vpop.permute.xlu0 %4624
      %4627 = vset.pattern.permute.xlu0 7
      %4628 = vperm.xlu0 %4627, %v1638
      %v4629 = vpop.permute.xlu0 %4628
      %4631 = vset.pattern.permute.xlu0 7
      %4632 = vperm.xlu0 %4631, %v1639
      %v4633 = vpop.permute.xlu0 %4632
      %4635 = vset.pattern.permute.xlu0 7
      %4636 = vperm.xlu0 %4635, %v1640
      %v4637 = vpop.permute.xlu0 %4636
      %4639 = vset.pattern.permute.xlu0 7
      %4640 = vperm.xlu0 %4639, %v1641
      %v4641 = vpop.permute.xlu0 %4640
      %4643 = vset.pattern.permute.xlu0 7
      %4644 = vperm.xlu0 %4643, %v1642
      %v4645 = vpop.permute.xlu0 %4644
      %4647 = vset.pattern.permute.xlu0 7
      %4648 = vperm.xlu0 %4647, %v1643
      %v4649 = vpop.permute.xlu0 %4648
      %4651 = vset.pattern.permute.xlu0 7
      %4652 = vperm.xlu0 %4651, %v1644
      %v4653 = vpop.permute.xlu0 %4652
      %4655 = vset.pattern.permute.xlu0 7
      %4656 = vperm.xlu0 %4655, %v1645
      %v4657 = vpop.permute.xlu0 %4656
      %4659 = vset.pattern.permute.xlu0 7
      %4660 = vperm.xlu0 %4659, %v1646
      %v4661 = vpop.permute.xlu0 %4660
      %4663 = vset.pattern.permute.xlu0 7
      %4664 = vperm.xlu0 %4663, %v1647
      %v4665 = vpop.permute.xlu0 %4664
      %4667 = vset.pattern.permute.xlu0 7
      %4668 = vperm.xlu0 %4667, %v1648
      %v4669 = vpop.permute.xlu0 %4668
      %4671 = vset.pattern.permute.xlu0 7
      %4672 = vperm.xlu0 %4671, %v1649
      %v4673 = vpop.permute.xlu0 %4672
      %4675 = vset.pattern.permute.xlu0 7
      %4676 = vperm.xlu0 %4675, %v1650
      %v4677 = vpop.permute.xlu0 %4676
      %4679 = vset.pattern.permute.xlu0 7
      %4680 = vperm.xlu0 %4679, %v1651
      %v4681 = vpop.permute.xlu0 %4680
      %4683 = vset.pattern.permute.xlu0 7
      %4684 = vperm.xlu0 %4683, %v1652
      %v4685 = vpop.permute.xlu0 %4684
      %4687 = vset.pattern.permute.xlu0 7
      %4688 = vperm.xlu0 %4687, %v1653
      %v4689 = vpop.permute.xlu0 %4688
      %v4691 = vlaneseq
      %v4692 = vshrl.u32 %v4691, 7
      %v4693 = vsub.s32 7, %v4692
      %v4694 = vrot.slane %v1654, %v4693
      %v4695 = vmul.f32 %v4437, %v4694
      %v4696 = vmul.f32 %v4441, %v4694
      %v4697 = vmul.f32 %v4445, %v4694
      %v4698 = vmul.f32 %v4449, %v4694
      %v4699 = vmul.f32 %v4453, %v4694
      %v4700 = vmul.f32 %v4457, %v4694
      %v4701 = vmul.f32 %v4461, %v4694
      %v4702 = vmul.f32 %v4465, %v4694
      %v4703 = vmul.f32 %v4469, %v4694
      %v4704 = vmul.f32 %v4473, %v4694
      %v4705 = vmul.f32 %v4477, %v4694
      %v4706 = vmul.f32 %v4481, %v4694
      %v4707 = vmul.f32 %v4485, %v4694
      %v4708 = vmul.f32 %v4489, %v4694
      %v4709 = vmul.f32 %v4493, %v4694
      %v4710 = vmul.f32 %v4497, %v4694
      %v4711 = vmul.f32 %v4501, %v4694
      %v4712 = vmul.f32 %v4505, %v4694
      %v4713 = vmul.f32 %v4509, %v4694
      %v4714 = vmul.f32 %v4513, %v4694
      %v4715 = vmul.f32 %v4517, %v4694
      %v4716 = vmul.f32 %v4521, %v4694
      %v4717 = vmul.f32 %v4525, %v4694
      %v4718 = vmul.f32 %v4529, %v4694
      %v4719 = vmul.f32 %v4533, %v4694
      %v4720 = vmul.f32 %v4537, %v4694
      %v4721 = vmul.f32 %v4541, %v4694
      %v4722 = vmul.f32 %v4545, %v4694
      %v4723 = vmul.f32 %v4549, %v4694
      %v4724 = vmul.f32 %v4553, %v4694
      %v4725 = vmul.f32 %v4557, %v4694
      %v4726 = vmul.f32 %v4561, %v4694
      %v4727 = vmul.f32 %v4565, %v4694
      %v4728 = vmul.f32 %v4569, %v4694
      %v4729 = vmul.f32 %v4573, %v4694
      %v4730 = vmul.f32 %v4577, %v4694
      %v4731 = vmul.f32 %v4581, %v4694
      %v4732 = vmul.f32 %v4585, %v4694
      %v4733 = vmul.f32 %v4589, %v4694
      %v4734 = vmul.f32 %v4593, %v4694
      %v4735 = vmul.f32 %v4597, %v4694
      %v4736 = vmul.f32 %v4601, %v4694
      %v4737 = vmul.f32 %v4605, %v4694
      %v4738 = vmul.f32 %v4609, %v4694
      %v4739 = vmul.f32 %v4613, %v4694
      %v4740 = vmul.f32 %v4617, %v4694
      %v4741 = vmul.f32 %v4621, %v4694
      %v4742 = vmul.f32 %v4625, %v4694
      %v4743 = vmul.f32 %v4629, %v4694
      %v4744 = vmul.f32 %v4633, %v4694
      %v4745 = vmul.f32 %v4637, %v4694
      %v4746 = vmul.f32 %v4641, %v4694
      %v4747 = vmul.f32 %v4645, %v4694
      %v4748 = vmul.f32 %v4649, %v4694
      %v4749 = vmul.f32 %v4653, %v4694
      %v4750 = vmul.f32 %v4657, %v4694
      %v4751 = vmul.f32 %v4661, %v4694
      %v4752 = vmul.f32 %v4665, %v4694
      %v4753 = vmul.f32 %v4669, %v4694
      %v4754 = vmul.f32 %v4673, %v4694
      %v4755 = vmul.f32 %v4677, %v4694
      %v4756 = vmul.f32 %v4681, %v4694
      %v4757 = vmul.f32 %v4685, %v4694
      %v4758 = vmul.f32 %v4689, %v4694
      %v4759 = vadd.f32 %v4371, %v4695
      %v4760 = vadd.f32 %v4372, %v4696
      %v4761 = vadd.f32 %v4373, %v4697
      %v4762 = vadd.f32 %v4374, %v4698
      %v4763 = vadd.f32 %v4375, %v4699
      %v4764 = vadd.f32 %v4376, %v4700
      %v4765 = vadd.f32 %v4377, %v4701
      %v4766 = vadd.f32 %v4378, %v4702
      %v4767 = vadd.f32 %v4379, %v4703
      %v4768 = vadd.f32 %v4380, %v4704
      %v4769 = vadd.f32 %v4381, %v4705
      %v4770 = vadd.f32 %v4382, %v4706
      %v4771 = vadd.f32 %v4383, %v4707
      %v4772 = vadd.f32 %v4384, %v4708
      %v4773 = vadd.f32 %v4385, %v4709
      %v4774 = vadd.f32 %v4386, %v4710
      %v4775 = vadd.f32 %v4387, %v4711
      %v4776 = vadd.f32 %v4388, %v4712
      %v4777 = vadd.f32 %v4389, %v4713
      %v4778 = vadd.f32 %v4390, %v4714
      %v4779 = vadd.f32 %v4391, %v4715
      %v4780 = vadd.f32 %v4392, %v4716
      %v4781 = vadd.f32 %v4393, %v4717
      %v4782 = vadd.f32 %v4394, %v4718
      %v4783 = vadd.f32 %v4395, %v4719
      %v4784 = vadd.f32 %v4396, %v4720
      %v4785 = vadd.f32 %v4397, %v4721
      %v4786 = vadd.f32 %v4398, %v4722
      %v4787 = vadd.f32 %v4399, %v4723
      %v4788 = vadd.f32 %v4400, %v4724
      %v4789 = vadd.f32 %v4401, %v4725
      %v4790 = vadd.f32 %v4402, %v4726
      %v4791 = vadd.f32 %v4403, %v4727
      %v4792 = vadd.f32 %v4404, %v4728
      %v4793 = vadd.f32 %v4405, %v4729
      %v4794 = vadd.f32 %v4406, %v4730
      %v4795 = vadd.f32 %v4407, %v4731
      %v4796 = vadd.f32 %v4408, %v4732
      %v4797 = vadd.f32 %v4409, %v4733
      %v4798 = vadd.f32 %v4410, %v4734
      %v4799 = vadd.f32 %v4411, %v4735
      %v4800 = vadd.f32 %v4412, %v4736
      %v4801 = vadd.f32 %v4413, %v4737
      %v4802 = vadd.f32 %v4414, %v4738
      %v4803 = vadd.f32 %v4415, %v4739
      %v4804 = vadd.f32 %v4416, %v4740
      %v4805 = vadd.f32 %v4417, %v4741
      %v4806 = vadd.f32 %v4418, %v4742
      %v4807 = vadd.f32 %v4419, %v4743
      %v4808 = vadd.f32 %v4420, %v4744
      %v4809 = vadd.f32 %v4421, %v4745
      %v4810 = vadd.f32 %v4422, %v4746
      %v4811 = vadd.f32 %v4423, %v4747
      %v4812 = vadd.f32 %v4424, %v4748
      %v4813 = vadd.f32 %v4425, %v4749
      %v4814 = vadd.f32 %v4426, %v4750
      %v4815 = vadd.f32 %v4427, %v4751
      %v4816 = vadd.f32 %v4428, %v4752
      %v4817 = vadd.f32 %v4429, %v4753
      %v4818 = vadd.f32 %v4430, %v4754
      %v4819 = vadd.f32 %v4431, %v4755
      %v4820 = vadd.f32 %v4432, %v4756
      %v4821 = vadd.f32 %v4433, %v4757
      %v4822 = vadd.f32 %v4434, %v4758
      %4823 = vst [vmem:[%s5] sm:$0xff] %v4759
      %4824 = vst [vmem:[%s5 + $0x8] sm:$0xff] %v4760
      %4825 = vst [vmem:[%s5 + $0x10] sm:$0xff] %v4761
      %4826 = vst [vmem:[%s5 + $0x18] sm:$0xff] %v4762
      %4827 = vst [vmem:[%s5 + $0x20] sm:$0xff] %v4763
      %4828 = vst [vmem:[%s5 + $0x28] sm:$0xff] %v4764
      %4829 = vst [vmem:[%s5 + $0x30] sm:$0xff] %v4765
      %4830 = vst [vmem:[%s5 + $0x38] sm:$0xff] %v4766
      %4831 = vst [vmem:[%s5 + $0x40] sm:$0xff] %v4767
      %4832 = vst [vmem:[%s5 + $0x48] sm:$0xff] %v4768
      %4833 = vst [vmem:[%s5 + $0x50] sm:$0xff] %v4769
      %4834 = vst [vmem:[%s5 + $0x58] sm:$0xff] %v4770
      %4835 = vst [vmem:[%s5 + $0x60] sm:$0xff] %v4771
      %4836 = vst [vmem:[%s5 + $0x68] sm:$0xff] %v4772
      %4837 = vst [vmem:[%s5 + $0x70] sm:$0xff] %v4773
      %4838 = vst [vmem:[%s5 + $0x78] sm:$0xff] %v4774
      %4839 = vst [vmem:[%s5 + $0x80] sm:$0xff] %v4775
      %4840 = vst [vmem:[%s5 + $0x88] sm:$0xff] %v4776
      %4841 = vst [vmem:[%s5 + $0x90] sm:$0xff] %v4777
      %4842 = vst [vmem:[%s5 + $0x98] sm:$0xff] %v4778
      %4843 = vst [vmem:[%s5 + $0xa0] sm:$0xff] %v4779
      %4844 = vst [vmem:[%s5 + $0xa8] sm:$0xff] %v4780
      %4845 = vst [vmem:[%s5 + $0xb0] sm:$0xff] %v4781
      %4846 = vst [vmem:[%s5 + $0xb8] sm:$0xff] %v4782
      %4847 = vst [vmem:[%s5 + $0xc0] sm:$0xff] %v4783
      %4848 = vst [vmem:[%s5 + $0xc8] sm:$0xff] %v4784
      %4849 = vst [vmem:[%s5 + $0xd0] sm:$0xff] %v4785
      %4850 = vst [vmem:[%s5 + $0xd8] sm:$0xff] %v4786
      %4851 = vst [vmem:[%s5 + $0xe0] sm:$0xff] %v4787
      %4852 = vst [vmem:[%s5 + $0xe8] sm:$0xff] %v4788
      %4853 = vst [vmem:[%s5 + $0xf0] sm:$0xff] %v4789
      %4854 = vst [vmem:[%s5 + $0xf8] sm:$0xff] %v4790
      %4855 = vst [vmem:[%s5 + $0x100] sm:$0xff] %v4791
      %4856 = vst [vmem:[%s5 + $0x108] sm:$0xff] %v4792
      %4857 = vst [vmem:[%s5 + $0x110] sm:$0xff] %v4793
      %4858 = vst [vmem:[%s5 + $0x118] sm:$0xff] %v4794
      %4859 = vst [vmem:[%s5 + $0x120] sm:$0xff] %v4795
      %4860 = vst [vmem:[%s5 + $0x128] sm:$0xff] %v4796
      %4861 = vst [vmem:[%s5 + $0x130] sm:$0xff] %v4797
      %4862 = vst [vmem:[%s5 + $0x138] sm:$0xff] %v4798
      %4863 = vst [vmem:[%s5 + $0x140] sm:$0xff] %v4799
      %4864 = vst [vmem:[%s5 + $0x148] sm:$0xff] %v4800
      %4865 = vst [vmem:[%s5 + $0x150] sm:$0xff] %v4801
      %4866 = vst [vmem:[%s5 + $0x158] sm:$0xff] %v4802
      %4867 = vst [vmem:[%s5 + $0x160] sm:$0xff] %v4803
      %4868 = vst [vmem:[%s5 + $0x168] sm:$0xff] %v4804
      %4869 = vst [vmem:[%s5 + $0x170] sm:$0xff] %v4805
      %4870 = vst [vmem:[%s5 + $0x178] sm:$0xff] %v4806
      %4871 = vst [vmem:[%s5 + $0x180] sm:$0xff] %v4807
      %4872 = vst [vmem:[%s5 + $0x188] sm:$0xff] %v4808
      %4873 = vst [vmem:[%s5 + $0x190] sm:$0xff] %v4809
      %4874 = vst [vmem:[%s5 + $0x198] sm:$0xff] %v4810
      %4875 = vst [vmem:[%s5 + $0x1a0] sm:$0xff] %v4811
      %4876 = vst [vmem:[%s5 + $0x1a8] sm:$0xff] %v4812
      %4877 = vst [vmem:[%s5 + $0x1b0] sm:$0xff] %v4813
      %4878 = vst [vmem:[%s5 + $0x1b8] sm:$0xff] %v4814
      %4879 = vst [vmem:[%s5 + $0x1c0] sm:$0xff] %v4815
      %4880 = vst [vmem:[%s5 + $0x1c8] sm:$0xff] %v4816
      %4881 = vst [vmem:[%s5 + $0x1d0] sm:$0xff] %v4817
      %4882 = vst [vmem:[%s5 + $0x1d8] sm:$0xff] %v4818
      %4883 = vst [vmem:[%s5 + $0x1e0] sm:$0xff] %v4819
      %4884 = vst [vmem:[%s5 + $0x1e8] sm:$0xff] %v4820
      %4885 = vst [vmem:[%s5 + $0x1f0] sm:$0xff] %v4821
      %4886 = vst [vmem:[%s5 + $0x1f8] sm:$0xff] %v4822
    $region53: #{tpu_custom_call.1} parent=1 // pred_fallthru
      _
    // Predicated region
    $region54: #{tpu_custom_call.1} parent=1 // pred_check
      _
    $region55: #{tpu_custom_call.1} parent=1 // pred_check_branch
      %4888 = sbr.rel (0) target = $region57
    $region56: #{tpu_custom_call.1} parent=1 // pred_region
      _
    $region57: #{tpu_custom_call.1} parent=1 // pred_fallthru
      _
    // Predicated region
    $region58: #{tpu_custom_call.1} parent=1 // pred_check
      _
    $region59: #{tpu_custom_call.1} parent=1 // pred_check_branch
      %4890 = sbr.rel (0) target = $region61
    $region60: #{tpu_custom_call.1} parent=1 // pred_region
      _
    $region61: #{tpu_custom_call.1} parent=1 // pred_fallthru
      _
    %4891 = vsyncpa [#allocation5], 1
    %4892 = vsyncpa [#allocation7], 1
    %4893 = vsyncpa [#allocation10], 1

</llo_original>
